<compile_context>
chip_gen: v5e
topology: v5e:2x2
jax: 0.10.0
libtpu: 0.0.40
codegen_flags: <defaults>
</compile_context>

<pallas_src>
import functools

import jax
import jax.numpy as jnp
from jax import lax
from jax.experimental import pallas as pl
from jax.experimental.pallas import tpu as pltpu


def _fused_layer0_kernel(*refs, depth, K, dils, strides, pads, l_fulls, l_outs,
                         c_ins, c_out, b_blk):
    """Fused depth x (Conv1d -> BN(eval) -> ReLU) for B_blk batch elements.

    refs layout:
      refs[0]                      x_ref    VMEM [B_blk, C_in0, L0]   (NCL)
      refs[1 + 2i], refs[2 + 2i]   w_ref_i  SMEM [C_out*C_in_i*K]  (BN folded)
                                   sh_ref_i SMEM [C_out]
      refs[1 + 2*depth]            o_ref    VMEM [B_blk, C_out, L_final]
    """
    x_ref = refs[0]
    w_refs = [refs[1 + 2 * i] for i in range(depth)]
    sh_refs = [refs[2 + 2 * i] for i in range(depth)]
    o_ref = refs[1 + 2 * depth]

    def shifted_tap(x, offset, out_len):
        """tap[..., l] = x[..., l + offset] for in-range l, zero outside (static)."""
        b, c, n = x.shape
        pieces = []
        if offset >= 0:
            avail = max(0, min(out_len, n - offset))
            if avail > 0:
                pieces.append(lax.slice_in_dim(x, offset, offset + avail, axis=2))
            if out_len - avail > 0:
                pieces.append(jnp.zeros((b, c, out_len - avail), jnp.float32))
        else:
            lead = min(-offset, out_len)
            pieces.append(jnp.zeros((b, c, lead), jnp.float32))
            avail = max(0, min(out_len - lead, n))
            if avail > 0:
                pieces.append(lax.slice_in_dim(x, 0, avail, axis=2))
            tail = out_len - lead - avail
            if tail > 0:
                pieces.append(jnp.zeros((b, c, tail), jnp.float32))
        return pieces[0] if len(pieces) == 1 else jnp.concatenate(pieces, axis=2)

    x = x_ref[...].astype(jnp.float32)                        # [B_blk, C_in0, L0]
    for i in range(depth):
        d, s, p = dils[i], strides[i], pads[i]
        c_in, lf, lo = c_ins[i], l_fulls[i], l_outs[i]
        w_ref, sh_ref = w_refs[i], sh_refs[i]

        # K lane-shifted tap views (stride-1 "same" conv), then per-input-channel
        # rows shared by every output channel.
        taps = [shifted_tap(x, k * d - p, lf) for k in range(K)]
        rows = [[taps[k][:, ci, :] for ci in range(c_in)] for k in range(K)]

        if s > 1:
            # Constant 0/1 decimation matrix: column j selects lane j*s.
            li = lax.broadcasted_iota(jnp.int32, (lf, lo), 0)
            lj = lax.broadcasted_iota(jnp.int32, (lf, lo), 1)
            sel = (li == s * lj).astype(jnp.float32)

        ys = []
        for co in range(c_out):
            acc = jnp.zeros((b_blk, lf), jnp.float32)
            for k in range(K):
                for ci in range(c_in):
                    w_scalar = w_ref[(co * c_in + ci) * K + k]   # SMEM scalar
                    acc = acc + w_scalar * rows[k][ci]           # VPU FMA, lane-dense
            if s > 1:
                acc = jnp.dot(acc, sel, preferred_element_type=jnp.float32)
            ys.append(jnp.maximum(acc + sh_ref[co], 0.0))        # shift + ReLU
        x = jnp.stack(ys, axis=1)                                # [B_blk, C_out, lo]

    o_ref[...] = x.astype(o_ref.dtype)


def prepare_layer0_params(params, *, eps=1e-5):
    """Fold conv bias + eval-mode BatchNorm into (flat scaled weight, shift).

    Input per block (PyTorch layout): w [C_out, C_in, K],
    bias/gamma/beta/mean/var [C_out].
    Output per block: w_flat [C_out*C_in*K] with BN scale folded in (row-major
    (co, ci, k) order), shift [C_out] = (bias - mean)*scale + beta.
    """
    fused = []
    for p in params:
        c_out, c_in, _ = p["w"].shape
        scale = p["gamma"] / jnp.sqrt(p["var"] + eps)                  # [C_out]
        w_flat = (p["w"] * scale[:, None, None]).reshape(-1)
        shift = (p["bias"] - p["mean"]) * scale + p["beta"]
        fused.append(dict(w_flat=w_flat.astype(jnp.float32),
                          shift=shift.astype(jnp.float32),
                          c_in=int(c_in), c_out=int(c_out)))
    return fused


def layer0_forward(x_ncl, fused_params, *, dilation, stride, kernel_size=3,
                   batch_block=None):
    """layer0.forward: fused sequential blocks. x_ncl: [N, C_in, L] -> [N, C_out, L_out]."""
    depth = len(fused_params)
    di = list(dilation) if isinstance(dilation, (list, tuple)) else [dilation] * depth
    if len(di) != depth:
        raise ValueError("depth != len(dilation)")

    N, c_in0, L0 = x_ncl.shape
    K = kernel_size
    c_out = fused_params[0]["c_out"]

    # Static per-block geometry (PyTorch Conv1d output-length formula).
    strides, pads, c_ins, l_fulls, l_outs = [], [], [], [], []
    L_cur = L0
    for i, fp in enumerate(fused_params):
        s = stride if i == 0 else 1
        p = di[i] * (K - 1) // 2                      # "same"-style padding
        lf = L_cur + 2 * p - di[i] * (K - 1)          # stride-1 conv length
        lo = (lf - 1) // s + 1                        # after stride decimation
        strides.append(s); pads.append(p)
        c_ins.append(fp["c_in"]); l_fulls.append(lf); l_outs.append(lo)
        L_cur = lo
    L_final = L_cur

    # Fold several batch elements into each grid step (amortize step overhead).
    if batch_block is None:
        batch_block = 1
        for cand in range(min(N, 8), 0, -1):
            if N % cand == 0:
                batch_block = cand
                break
    if N % batch_block != 0:
        raise ValueError("batch_block must divide N")

    inputs = [x_ncl]
    in_specs = [pl.BlockSpec((batch_block, c_in0, L0), lambda b: (b, 0, 0))]
    for fp in fused_params:
        inputs += [fp["w_flat"], fp["shift"]]
        in_specs += [pl.BlockSpec(memory_space=pltpu.MemorySpace.SMEM),
                     pl.BlockSpec(memory_space=pltpu.MemorySpace.SMEM)]

    kernel = functools.partial(
        _fused_layer0_kernel,
        depth=depth, K=K, dils=tuple(di), strides=tuple(strides),
        pads=tuple(pads), l_fulls=tuple(l_fulls), l_outs=tuple(l_outs),
        c_ins=tuple(c_ins), c_out=c_out, b_blk=batch_block)

    # NCL in, NCL out: no wrapper-side transposes, output lane dim = L (dense).
    return pl.pallas_call(
        kernel,
        out_shape=jax.ShapeDtypeStruct((N, c_out, L_final), x_ncl.dtype),
        grid_spec=pltpu.PrefetchScalarGridSpec(
            num_scalar_prefetch=0,
            grid=(N // batch_block,),
            in_specs=in_specs,
            out_specs=pl.BlockSpec((batch_block, c_out, L_final),
                                   lambda b: (b, 0, 0))),
        compiler_params=pltpu.CompilerParams(
            dimension_semantics=("parallel",)),
    )(*inputs)


def init_layer0_params(key, in_channels, out_channels, depth, kernel_size=3):
    """Deterministic synthetic PyTorch-style parameters for `depth` blocks."""
    params = []
    for i in range(depth):
        c_in = in_channels if i == 0 else out_channels
        key, k_w, k_b, k_g, k_be, k_m, k_v = jax.random.split(key, 7)
        params.append(dict(
            w=jax.random.normal(k_w, (out_channels, c_in, kernel_size),
                                jnp.float32) * 0.1,        # PyTorch [C_out,C_in,K]
            bias=jax.random.normal(k_b, (out_channels,), jnp.float32) * 0.1,
            gamma=1.0 + 0.1 * jax.random.normal(k_g, (out_channels,), jnp.float32),
            beta=0.1 * jax.random.normal(k_be, (out_channels,), jnp.float32),
            mean=0.1 * jax.random.normal(k_m, (out_channels,), jnp.float32),
            var=jnp.abs(jax.random.normal(k_v, (out_channels,), jnp.float32)) + 0.5,
        ))
    return params


def layer0_reference(x_ncl, params, *, dilation, stride, kernel_size=3, eps=1e-5):
    """Pure-JAX/XLA reference (un-fused Conv1d + BN(eval) + ReLU per block)."""
    depth = len(params)
    di = dilation if isinstance(dilation, (list, tuple)) else [dilation] * depth
    x = x_ncl
    for i, p in enumerate(params):
        s = stride if i == 0 else 1
        pad = di[i] * (kernel_size - 1) // 2
        y = lax.conv_general_dilated(
            x, p["w"], window_strides=(s,), padding=[(pad, pad)],
            rhs_dilation=(di[i],), dimension_numbers=("NCH", "OIH", "NCH"),
            precision=lax.Precision.HIGHEST)
        y = y + p["bias"][None, :, None]
        scale = p["gamma"] / jnp.sqrt(p["var"] + eps)
        y = scale[None, :, None] * (y - p["mean"][None, :, None]) + p["beta"][None, :, None]
        x = jnp.maximum(y, 0.0)
    return x


if __name__ == "__main__":
    # Small shapes consistent with the module: Conv1d-style NCL input.
    N, C_IN, C_OUT, L = 2, 4, 8, 16
    DEPTH, DILATION, STRIDE, KSIZE = 2, [1, 2], 2, 3

    key = jax.random.PRNGKey(0)
    key, kx = jax.random.split(key)
    x = jax.random.normal(kx, (N, C_IN, L), jnp.float32)

    raw_params = init_layer0_params(key, C_IN, C_OUT, DEPTH, kernel_size=KSIZE)
    fused_params = prepare_layer0_params(raw_params)

    out = layer0_forward(x, fused_params, dilation=DILATION, stride=STRIDE,
                         kernel_size=KSIZE)
    out = jax.block_until_ready(out)

    # Expected output: [N, C_OUT, L//STRIDE] = [2, 8, 8]
    assert out.shape == (N, C_OUT, L // STRIDE), out.shape

    ref = jax.block_until_ready(
        layer0_reference(x, raw_params, dilation=DILATION, stride=STRIDE,
                         kernel_size=KSIZE))
    err = float(jnp.max(jnp.abs(out - ref)))
    assert jnp.allclose(out, ref, atol=1e-2, rtol=1e-2), "max abs err = %f" % err

    print("KERNEL_OK")
</pallas_src>

<mosaic_0001>
module attributes {stable_mosaic.version = 11 : i64} {
  func.func @_fused_layer0_kernel(%arg0: i32, %arg1: memref<2x4x16xf32, #tpu.memory_space<vmem>>, %arg2: memref<96xf32, #tpu.memory_space<smem>>, %arg3: memref<8xf32, #tpu.memory_space<smem>>, %arg4: memref<192xf32, #tpu.memory_space<smem>>, %arg5: memref<8xf32, #tpu.memory_space<smem>>, %arg6: memref<2x8x8xf32, #tpu.memory_space<vmem>>) attributes {dimension_semantics = [#tpu.dimension_semantics<parallel>], iteration_bounds = array<i64: 1>, scalar_prefetch = 0 : i64, scratch_operands = 0 : i64, tpu.core_type = #tpu.core_type<tc>, window_params = [{transform_indices = @transform_0, window_bounds = array<i64: 2, 4, 16>}, {transform_indices = @transform_1, window_bounds = array<i64: 96>}, {transform_indices = @transform_2, window_bounds = array<i64: 8>}, {transform_indices = @transform_3, window_bounds = array<i64: 192>}, {transform_indices = @transform_4, window_bounds = array<i64: 8>}, {transform_indices = @transform_5, window_bounds = array<i64: 2, 8, 8>}]} {
    %c0 = arith.constant 0 : index
    %c0_0 = arith.constant 0 : index
    %c0_1 = arith.constant 0 : index
    %0 = vector.load %arg1[%c0, %c0_0, %c0_1] : memref<2x4x16xf32, #tpu.memory_space<vmem>>, vector<2x4x16xf32>
    %cst = arith.constant 0.000000e+00 : f32
    %1 = vector.broadcast %cst : f32 to vector<2x4x1xf32>
    %2 = vector.extract_strided_slice %0 {offsets = [0, 0, 0], sizes = [2, 4, 15], strides = [1, 1, 1]} : vector<2x4x16xf32> to vector<2x4x15xf32>
    %3 = tpu.concatenate %1, %2 in 2 : vector<2x4x1xf32>, vector<2x4x15xf32> -> vector<2x4x16xf32>
    %4 = vector.extract_strided_slice %0 {offsets = [0, 0, 0], sizes = [2, 4, 16], strides = [1, 1, 1]} : vector<2x4x16xf32> to vector<2x4x16xf32>
    %5 = vector.extract_strided_slice %0 {offsets = [0, 0, 1], sizes = [2, 4, 15], strides = [1, 1, 1]} : vector<2x4x16xf32> to vector<2x4x15xf32>
    %cst_2 = arith.constant 0.000000e+00 : f32
    %6 = vector.broadcast %cst_2 : f32 to vector<2x4x1xf32>
    %7 = tpu.concatenate %5, %6 in 2 : vector<2x4x15xf32>, vector<2x4x1xf32> -> vector<2x4x16xf32>
    %8 = vector.extract_strided_slice %3 {offsets = [0, 0, 0], sizes = [2, 1, 16], strides = [1, 1, 1]} : vector<2x4x16xf32> to vector<2x1x16xf32>
    %9 = vector.shape_cast %8 : vector<2x1x16xf32> to vector<2x16xf32>
    %10 = vector.extract_strided_slice %3 {offsets = [0, 1, 0], sizes = [2, 1, 16], strides = [1, 1, 1]} : vector<2x4x16xf32> to vector<2x1x16xf32>
    %11 = vector.shape_cast %10 : vector<2x1x16xf32> to vector<2x16xf32>
    %12 = vector.extract_strided_slice %3 {offsets = [0, 2, 0], sizes = [2, 1, 16], strides = [1, 1, 1]} : vector<2x4x16xf32> to vector<2x1x16xf32>
    %13 = vector.shape_cast %12 : vector<2x1x16xf32> to vector<2x16xf32>
    %14 = vector.extract_strided_slice %3 {offsets = [0, 3, 0], sizes = [2, 1, 16], strides = [1, 1, 1]} : vector<2x4x16xf32> to vector<2x1x16xf32>
    %15 = vector.shape_cast %14 : vector<2x1x16xf32> to vector<2x16xf32>
    %16 = vector.extract_strided_slice %4 {offsets = [0, 0, 0], sizes = [2, 1, 16], strides = [1, 1, 1]} : vector<2x4x16xf32> to vector<2x1x16xf32>
    %17 = vector.shape_cast %16 : vector<2x1x16xf32> to vector<2x16xf32>
    %18 = vector.extract_strided_slice %4 {offsets = [0, 1, 0], sizes = [2, 1, 16], strides = [1, 1, 1]} : vector<2x4x16xf32> to vector<2x1x16xf32>
    %19 = vector.shape_cast %18 : vector<2x1x16xf32> to vector<2x16xf32>
    %20 = vector.extract_strided_slice %4 {offsets = [0, 2, 0], sizes = [2, 1, 16], strides = [1, 1, 1]} : vector<2x4x16xf32> to vector<2x1x16xf32>
    %21 = vector.shape_cast %20 : vector<2x1x16xf32> to vector<2x16xf32>
    %22 = vector.extract_strided_slice %4 {offsets = [0, 3, 0], sizes = [2, 1, 16], strides = [1, 1, 1]} : vector<2x4x16xf32> to vector<2x1x16xf32>
    %23 = vector.shape_cast %22 : vector<2x1x16xf32> to vector<2x16xf32>
    %24 = vector.extract_strided_slice %7 {offsets = [0, 0, 0], sizes = [2, 1, 16], strides = [1, 1, 1]} : vector<2x4x16xf32> to vector<2x1x16xf32>
    %25 = vector.shape_cast %24 : vector<2x1x16xf32> to vector<2x16xf32>
    %26 = vector.extract_strided_slice %7 {offsets = [0, 1, 0], sizes = [2, 1, 16], strides = [1, 1, 1]} : vector<2x4x16xf32> to vector<2x1x16xf32>
    %27 = vector.shape_cast %26 : vector<2x1x16xf32> to vector<2x16xf32>
    %28 = vector.extract_strided_slice %7 {offsets = [0, 2, 0], sizes = [2, 1, 16], strides = [1, 1, 1]} : vector<2x4x16xf32> to vector<2x1x16xf32>
    %29 = vector.shape_cast %28 : vector<2x1x16xf32> to vector<2x16xf32>
    %30 = vector.extract_strided_slice %7 {offsets = [0, 3, 0], sizes = [2, 1, 16], strides = [1, 1, 1]} : vector<2x4x16xf32> to vector<2x1x16xf32>
    %31 = vector.shape_cast %30 : vector<2x1x16xf32> to vector<2x16xf32>
    %32 = tpu.iota {dimensions = array<i32: 0>} : vector<16x8xi32>
    %33 = tpu.iota {dimensions = array<i32: 1>} : vector<16x8xi32>
    %c2_i32 = arith.constant 2 : i32
    %34 = vector.broadcast %c2_i32 : i32 to vector<16x8xi32>
    %35 = arith.muli %34, %33 : vector<16x8xi32>
    %36 = arith.cmpi eq, %32, %35 : vector<16x8xi32>
    %37 = arith.extui %36 : vector<16x8xi1> to vector<16x8xi32>
    %38 = arith.sitofp %37 : vector<16x8xi32> to vector<16x8xf32>
    %cst_3 = arith.constant 0.000000e+00 : f32
    %39 = vector.broadcast %cst_3 : f32 to vector<2x16xf32>
    %c0_4 = arith.constant 0 : index
    %40 = memref.load %arg2[%c0_4] : memref<96xf32, #tpu.memory_space<smem>>
    %41 = vector.broadcast %40 : f32 to vector<2x16xf32>
    %42 = arith.mulf %41, %9 : vector<2x16xf32>
    %43 = arith.addf %39, %42 : vector<2x16xf32>
    %c3 = arith.constant 3 : index
    %44 = memref.load %arg2[%c3] : memref<96xf32, #tpu.memory_space<smem>>
    %45 = vector.broadcast %44 : f32 to vector<2x16xf32>
    %46 = arith.mulf %45, %11 : vector<2x16xf32>
    %47 = arith.addf %43, %46 : vector<2x16xf32>
    %c6 = arith.constant 6 : index
    %48 = memref.load %arg2[%c6] : memref<96xf32, #tpu.memory_space<smem>>
    %49 = vector.broadcast %48 : f32 to vector<2x16xf32>
    %50 = arith.mulf %49, %13 : vector<2x16xf32>
    %51 = arith.addf %47, %50 : vector<2x16xf32>
    %c9 = arith.constant 9 : index
    %52 = memref.load %arg2[%c9] : memref<96xf32, #tpu.memory_space<smem>>
    %53 = vector.broadcast %52 : f32 to vector<2x16xf32>
    %54 = arith.mulf %53, %15 : vector<2x16xf32>
    %55 = arith.addf %51, %54 : vector<2x16xf32>
    %c1 = arith.constant 1 : index
    %56 = memref.load %arg2[%c1] : memref<96xf32, #tpu.memory_space<smem>>
    %57 = vector.broadcast %56 : f32 to vector<2x16xf32>
    %58 = arith.mulf %57, %17 : vector<2x16xf32>
    %59 = arith.addf %55, %58 : vector<2x16xf32>
    %c4 = arith.constant 4 : index
    %60 = memref.load %arg2[%c4] : memref<96xf32, #tpu.memory_space<smem>>
    %61 = vector.broadcast %60 : f32 to vector<2x16xf32>
    %62 = arith.mulf %61, %19 : vector<2x16xf32>
    %63 = arith.addf %59, %62 : vector<2x16xf32>
    %c7 = arith.constant 7 : index
    %64 = memref.load %arg2[%c7] : memref<96xf32, #tpu.memory_space<smem>>
    %65 = vector.broadcast %64 : f32 to vector<2x16xf32>
    %66 = arith.mulf %65, %21 : vector<2x16xf32>
    %67 = arith.addf %63, %66 : vector<2x16xf32>
    %c10 = arith.constant 10 : index
    %68 = memref.load %arg2[%c10] : memref<96xf32, #tpu.memory_space<smem>>
    %69 = vector.broadcast %68 : f32 to vector<2x16xf32>
    %70 = arith.mulf %69, %23 : vector<2x16xf32>
    %71 = arith.addf %67, %70 : vector<2x16xf32>
    %c2 = arith.constant 2 : index
    %72 = memref.load %arg2[%c2] : memref<96xf32, #tpu.memory_space<smem>>
    %73 = vector.broadcast %72 : f32 to vector<2x16xf32>
    %74 = arith.mulf %73, %25 : vector<2x16xf32>
    %75 = arith.addf %71, %74 : vector<2x16xf32>
    %c5 = arith.constant 5 : index
    %76 = memref.load %arg2[%c5] : memref<96xf32, #tpu.memory_space<smem>>
    %77 = vector.broadcast %76 : f32 to vector<2x16xf32>
    %78 = arith.mulf %77, %27 : vector<2x16xf32>
    %79 = arith.addf %75, %78 : vector<2x16xf32>
    %c8 = arith.constant 8 : index
    %80 = memref.load %arg2[%c8] : memref<96xf32, #tpu.memory_space<smem>>
    %81 = vector.broadcast %80 : f32 to vector<2x16xf32>
    %82 = arith.mulf %81, %29 : vector<2x16xf32>
    %83 = arith.addf %79, %82 : vector<2x16xf32>
    %c11 = arith.constant 11 : index
    %84 = memref.load %arg2[%c11] : memref<96xf32, #tpu.memory_space<smem>>
    %85 = vector.broadcast %84 : f32 to vector<2x16xf32>
    %86 = arith.mulf %85, %31 : vector<2x16xf32>
    %87 = arith.addf %83, %86 : vector<2x16xf32>
    %cst_5 = arith.constant dense<0.000000e+00> : vector<2x8xf32>
    %88 = tpu.matmul %87, %38, %cst_5 {dimension_numbers = #tpu.dot_dimension_numbers<[1], [0], [0], [1], [0, 0, 1, 1], [], []>} : vector<2x16xf32>, vector<16x8xf32>, vector<2x8xf32> -> vector<2x8xf32>
    %c0_6 = arith.constant 0 : index
    %89 = memref.load %arg3[%c0_6] : memref<8xf32, #tpu.memory_space<smem>>
    %90 = vector.broadcast %89 : f32 to vector<2x8xf32>
    %91 = arith.addf %88, %90 : vector<2x8xf32>
    %cst_7 = arith.constant 0.000000e+00 : f32
    %92 = vector.broadcast %cst_7 : f32 to vector<2x8xf32>
    %93 = arith.maximumf %91, %92 : vector<2x8xf32>
    %cst_8 = arith.constant 0.000000e+00 : f32
    %94 = vector.broadcast %cst_8 : f32 to vector<2x16xf32>
    %c12 = arith.constant 12 : index
    %95 = memref.load %arg2[%c12] : memref<96xf32, #tpu.memory_space<smem>>
    %96 = vector.broadcast %95 : f32 to vector<2x16xf32>
    %97 = arith.mulf %96, %9 : vector<2x16xf32>
    %98 = arith.addf %94, %97 : vector<2x16xf32>
    %c15 = arith.constant 15 : index
    %99 = memref.load %arg2[%c15] : memref<96xf32, #tpu.memory_space<smem>>
    %100 = vector.broadcast %99 : f32 to vector<2x16xf32>
    %101 = arith.mulf %100, %11 : vector<2x16xf32>
    %102 = arith.addf %98, %101 : vector<2x16xf32>
    %c18 = arith.constant 18 : index
    %103 = memref.load %arg2[%c18] : memref<96xf32, #tpu.memory_space<smem>>
    %104 = vector.broadcast %103 : f32 to vector<2x16xf32>
    %105 = arith.mulf %104, %13 : vector<2x16xf32>
    %106 = arith.addf %102, %105 : vector<2x16xf32>
    %c21 = arith.constant 21 : index
    %107 = memref.load %arg2[%c21] : memref<96xf32, #tpu.memory_space<smem>>
    %108 = vector.broadcast %107 : f32 to vector<2x16xf32>
    %109 = arith.mulf %108, %15 : vector<2x16xf32>
    %110 = arith.addf %106, %109 : vector<2x16xf32>
    %c13 = arith.constant 13 : index
    %111 = memref.load %arg2[%c13] : memref<96xf32, #tpu.memory_space<smem>>
    %112 = vector.broadcast %111 : f32 to vector<2x16xf32>
    %113 = arith.mulf %112, %17 : vector<2x16xf32>
    %114 = arith.addf %110, %113 : vector<2x16xf32>
    %c16 = arith.constant 16 : index
    %115 = memref.load %arg2[%c16] : memref<96xf32, #tpu.memory_space<smem>>
    %116 = vector.broadcast %115 : f32 to vector<2x16xf32>
    %117 = arith.mulf %116, %19 : vector<2x16xf32>
    %118 = arith.addf %114, %117 : vector<2x16xf32>
    %c19 = arith.constant 19 : index
    %119 = memref.load %arg2[%c19] : memref<96xf32, #tpu.memory_space<smem>>
    %120 = vector.broadcast %119 : f32 to vector<2x16xf32>
    %121 = arith.mulf %120, %21 : vector<2x16xf32>
    %122 = arith.addf %118, %121 : vector<2x16xf32>
    %c22 = arith.constant 22 : index
    %123 = memref.load %arg2[%c22] : memref<96xf32, #tpu.memory_space<smem>>
    %124 = vector.broadcast %123 : f32 to vector<2x16xf32>
    %125 = arith.mulf %124, %23 : vector<2x16xf32>
    %126 = arith.addf %122, %125 : vector<2x16xf32>
    %c14 = arith.constant 14 : index
    %127 = memref.load %arg2[%c14] : memref<96xf32, #tpu.memory_space<smem>>
    %128 = vector.broadcast %127 : f32 to vector<2x16xf32>
    %129 = arith.mulf %128, %25 : vector<2x16xf32>
    %130 = arith.addf %126, %129 : vector<2x16xf32>
    %c17 = arith.constant 17 : index
    %131 = memref.load %arg2[%c17] : memref<96xf32, #tpu.memory_space<smem>>
    %132 = vector.broadcast %131 : f32 to vector<2x16xf32>
    %133 = arith.mulf %132, %27 : vector<2x16xf32>
    %134 = arith.addf %130, %133 : vector<2x16xf32>
    %c20 = arith.constant 20 : index
    %135 = memref.load %arg2[%c20] : memref<96xf32, #tpu.memory_space<smem>>
    %136 = vector.broadcast %135 : f32 to vector<2x16xf32>
    %137 = arith.mulf %136, %29 : vector<2x16xf32>
    %138 = arith.addf %134, %137 : vector<2x16xf32>
    %c23 = arith.constant 23 : index
    %139 = memref.load %arg2[%c23] : memref<96xf32, #tpu.memory_space<smem>>
    %140 = vector.broadcast %139 : f32 to vector<2x16xf32>
    %141 = arith.mulf %140, %31 : vector<2x16xf32>
    %142 = arith.addf %138, %141 : vector<2x16xf32>
    %cst_9 = arith.constant dense<0.000000e+00> : vector<2x8xf32>
    %143 = tpu.matmul %142, %38, %cst_9 {dimension_numbers = #tpu.dot_dimension_numbers<[1], [0], [0], [1], [0, 0, 1, 1], [], []>} : vector<2x16xf32>, vector<16x8xf32>, vector<2x8xf32> -> vector<2x8xf32>
    %c1_10 = arith.constant 1 : index
    %144 = memref.load %arg3[%c1_10] : memref<8xf32, #tpu.memory_space<smem>>
    %145 = vector.broadcast %144 : f32 to vector<2x8xf32>
    %146 = arith.addf %143, %145 : vector<2x8xf32>
    %cst_11 = arith.constant 0.000000e+00 : f32
    %147 = vector.broadcast %cst_11 : f32 to vector<2x8xf32>
    %148 = arith.maximumf %146, %147 : vector<2x8xf32>
    %cst_12 = arith.constant 0.000000e+00 : f32
    %149 = vector.broadcast %cst_12 : f32 to vector<2x16xf32>
    %c24 = arith.constant 24 : index
    %150 = memref.load %arg2[%c24] : memref<96xf32, #tpu.memory_space<smem>>
    %151 = vector.broadcast %150 : f32 to vector<2x16xf32>
    %152 = arith.mulf %151, %9 : vector<2x16xf32>
    %153 = arith.addf %149, %152 : vector<2x16xf32>
    %c27 = arith.constant 27 : index
    %154 = memref.load %arg2[%c27] : memref<96xf32, #tpu.memory_space<smem>>
    %155 = vector.broadcast %154 : f32 to vector<2x16xf32>
    %156 = arith.mulf %155, %11 : vector<2x16xf32>
    %157 = arith.addf %153, %156 : vector<2x16xf32>
    %c30 = arith.constant 30 : index
    %158 = memref.load %arg2[%c30] : memref<96xf32, #tpu.memory_space<smem>>
    %159 = vector.broadcast %158 : f32 to vector<2x16xf32>
    %160 = arith.mulf %159, %13 : vector<2x16xf32>
    %161 = arith.addf %157, %160 : vector<2x16xf32>
    %c33 = arith.constant 33 : index
    %162 = memref.load %arg2[%c33] : memref<96xf32, #tpu.memory_space<smem>>
    %163 = vector.broadcast %162 : f32 to vector<2x16xf32>
    %164 = arith.mulf %163, %15 : vector<2x16xf32>
    %165 = arith.addf %161, %164 : vector<2x16xf32>
    %c25 = arith.constant 25 : index
    %166 = memref.load %arg2[%c25] : memref<96xf32, #tpu.memory_space<smem>>
    %167 = vector.broadcast %166 : f32 to vector<2x16xf32>
    %168 = arith.mulf %167, %17 : vector<2x16xf32>
    %169 = arith.addf %165, %168 : vector<2x16xf32>
    %c28 = arith.constant 28 : index
    %170 = memref.load %arg2[%c28] : memref<96xf32, #tpu.memory_space<smem>>
    %171 = vector.broadcast %170 : f32 to vector<2x16xf32>
    %172 = arith.mulf %171, %19 : vector<2x16xf32>
    %173 = arith.addf %169, %172 : vector<2x16xf32>
    %c31 = arith.constant 31 : index
    %174 = memref.load %arg2[%c31] : memref<96xf32, #tpu.memory_space<smem>>
    %175 = vector.broadcast %174 : f32 to vector<2x16xf32>
    %176 = arith.mulf %175, %21 : vector<2x16xf32>
    %177 = arith.addf %173, %176 : vector<2x16xf32>
    %c34 = arith.constant 34 : index
    %178 = memref.load %arg2[%c34] : memref<96xf32, #tpu.memory_space<smem>>
    %179 = vector.broadcast %178 : f32 to vector<2x16xf32>
    %180 = arith.mulf %179, %23 : vector<2x16xf32>
    %181 = arith.addf %177, %180 : vector<2x16xf32>
    %c26 = arith.constant 26 : index
    %182 = memref.load %arg2[%c26] : memref<96xf32, #tpu.memory_space<smem>>
    %183 = vector.broadcast %182 : f32 to vector<2x16xf32>
    %184 = arith.mulf %183, %25 : vector<2x16xf32>
    %185 = arith.addf %181, %184 : vector<2x16xf32>
    %c29 = arith.constant 29 : index
    %186 = memref.load %arg2[%c29] : memref<96xf32, #tpu.memory_space<smem>>
    %187 = vector.broadcast %186 : f32 to vector<2x16xf32>
    %188 = arith.mulf %187, %27 : vector<2x16xf32>
    %189 = arith.addf %185, %188 : vector<2x16xf32>
    %c32 = arith.constant 32 : index
    %190 = memref.load %arg2[%c32] : memref<96xf32, #tpu.memory_space<smem>>
    %191 = vector.broadcast %190 : f32 to vector<2x16xf32>
    %192 = arith.mulf %191, %29 : vector<2x16xf32>
    %193 = arith.addf %189, %192 : vector<2x16xf32>
    %c35 = arith.constant 35 : index
    %194 = memref.load %arg2[%c35] : memref<96xf32, #tpu.memory_space<smem>>
    %195 = vector.broadcast %194 : f32 to vector<2x16xf32>
    %196 = arith.mulf %195, %31 : vector<2x16xf32>
    %197 = arith.addf %193, %196 : vector<2x16xf32>
    %cst_13 = arith.constant dense<0.000000e+00> : vector<2x8xf32>
    %198 = tpu.matmul %197, %38, %cst_13 {dimension_numbers = #tpu.dot_dimension_numbers<[1], [0], [0], [1], [0, 0, 1, 1], [], []>} : vector<2x16xf32>, vector<16x8xf32>, vector<2x8xf32> -> vector<2x8xf32>
    %c2_14 = arith.constant 2 : index
    %199 = memref.load %arg3[%c2_14] : memref<8xf32, #tpu.memory_space<smem>>
    %200 = vector.broadcast %199 : f32 to vector<2x8xf32>
    %201 = arith.addf %198, %200 : vector<2x8xf32>
    %cst_15 = arith.constant 0.000000e+00 : f32
    %202 = vector.broadcast %cst_15 : f32 to vector<2x8xf32>
    %203 = arith.maximumf %201, %202 : vector<2x8xf32>
    %cst_16 = arith.constant 0.000000e+00 : f32
    %204 = vector.broadcast %cst_16 : f32 to vector<2x16xf32>
    %c36 = arith.constant 36 : index
    %205 = memref.load %arg2[%c36] : memref<96xf32, #tpu.memory_space<smem>>
    %206 = vector.broadcast %205 : f32 to vector<2x16xf32>
    %207 = arith.mulf %206, %9 : vector<2x16xf32>
    %208 = arith.addf %204, %207 : vector<2x16xf32>
    %c39 = arith.constant 39 : index
    %209 = memref.load %arg2[%c39] : memref<96xf32, #tpu.memory_space<smem>>
    %210 = vector.broadcast %209 : f32 to vector<2x16xf32>
    %211 = arith.mulf %210, %11 : vector<2x16xf32>
    %212 = arith.addf %208, %211 : vector<2x16xf32>
    %c42 = arith.constant 42 : index
    %213 = memref.load %arg2[%c42] : memref<96xf32, #tpu.memory_space<smem>>
    %214 = vector.broadcast %213 : f32 to vector<2x16xf32>
    %215 = arith.mulf %214, %13 : vector<2x16xf32>
    %216 = arith.addf %212, %215 : vector<2x16xf32>
    %c45 = arith.constant 45 : index
    %217 = memref.load %arg2[%c45] : memref<96xf32, #tpu.memory_space<smem>>
    %218 = vector.broadcast %217 : f32 to vector<2x16xf32>
    %219 = arith.mulf %218, %15 : vector<2x16xf32>
    %220 = arith.addf %216, %219 : vector<2x16xf32>
    %c37 = arith.constant 37 : index
    %221 = memref.load %arg2[%c37] : memref<96xf32, #tpu.memory_space<smem>>
    %222 = vector.broadcast %221 : f32 to vector<2x16xf32>
    %223 = arith.mulf %222, %17 : vector<2x16xf32>
    %224 = arith.addf %220, %223 : vector<2x16xf32>
    %c40 = arith.constant 40 : index
    %225 = memref.load %arg2[%c40] : memref<96xf32, #tpu.memory_space<smem>>
    %226 = vector.broadcast %225 : f32 to vector<2x16xf32>
    %227 = arith.mulf %226, %19 : vector<2x16xf32>
    %228 = arith.addf %224, %227 : vector<2x16xf32>
    %c43 = arith.constant 43 : index
    %229 = memref.load %arg2[%c43] : memref<96xf32, #tpu.memory_space<smem>>
    %230 = vector.broadcast %229 : f32 to vector<2x16xf32>
    %231 = arith.mulf %230, %21 : vector<2x16xf32>
    %232 = arith.addf %228, %231 : vector<2x16xf32>
    %c46 = arith.constant 46 : index
    %233 = memref.load %arg2[%c46] : memref<96xf32, #tpu.memory_space<smem>>
    %234 = vector.broadcast %233 : f32 to vector<2x16xf32>
    %235 = arith.mulf %234, %23 : vector<2x16xf32>
    %236 = arith.addf %232, %235 : vector<2x16xf32>
    %c38 = arith.constant 38 : index
    %237 = memref.load %arg2[%c38] : memref<96xf32, #tpu.memory_space<smem>>
    %238 = vector.broadcast %237 : f32 to vector<2x16xf32>
    %239 = arith.mulf %238, %25 : vector<2x16xf32>
    %240 = arith.addf %236, %239 : vector<2x16xf32>
    %c41 = arith.constant 41 : index
    %241 = memref.load %arg2[%c41] : memref<96xf32, #tpu.memory_space<smem>>
    %242 = vector.broadcast %241 : f32 to vector<2x16xf32>
    %243 = arith.mulf %242, %27 : vector<2x16xf32>
    %244 = arith.addf %240, %243 : vector<2x16xf32>
    %c44 = arith.constant 44 : index
    %245 = memref.load %arg2[%c44] : memref<96xf32, #tpu.memory_space<smem>>
    %246 = vector.broadcast %245 : f32 to vector<2x16xf32>
    %247 = arith.mulf %246, %29 : vector<2x16xf32>
    %248 = arith.addf %244, %247 : vector<2x16xf32>
    %c47 = arith.constant 47 : index
    %249 = memref.load %arg2[%c47] : memref<96xf32, #tpu.memory_space<smem>>
    %250 = vector.broadcast %249 : f32 to vector<2x16xf32>
    %251 = arith.mulf %250, %31 : vector<2x16xf32>
    %252 = arith.addf %248, %251 : vector<2x16xf32>
    %cst_17 = arith.constant dense<0.000000e+00> : vector<2x8xf32>
    %253 = tpu.matmul %252, %38, %cst_17 {dimension_numbers = #tpu.dot_dimension_numbers<[1], [0], [0], [1], [0, 0, 1, 1], [], []>} : vector<2x16xf32>, vector<16x8xf32>, vector<2x8xf32> -> vector<2x8xf32>
    %c3_18 = arith.constant 3 : index
    %254 = memref.load %arg3[%c3_18] : memref<8xf32, #tpu.memory_space<smem>>
    %255 = vector.broadcast %254 : f32 to vector<2x8xf32>
    %256 = arith.addf %253, %255 : vector<2x8xf32>
    %cst_19 = arith.constant 0.000000e+00 : f32
    %257 = vector.broadcast %cst_19 : f32 to vector<2x8xf32>
    %258 = arith.maximumf %256, %257 : vector<2x8xf32>
    %cst_20 = arith.constant 0.000000e+00 : f32
    %259 = vector.broadcast %cst_20 : f32 to vector<2x16xf32>
    %c48 = arith.constant 48 : index
    %260 = memref.load %arg2[%c48] : memref<96xf32, #tpu.memory_space<smem>>
    %261 = vector.broadcast %260 : f32 to vector<2x16xf32>
    %262 = arith.mulf %261, %9 : vector<2x16xf32>
    %263 = arith.addf %259, %262 : vector<2x16xf32>
    %c51 = arith.constant 51 : index
    %264 = memref.load %arg2[%c51] : memref<96xf32, #tpu.memory_space<smem>>
    %265 = vector.broadcast %264 : f32 to vector<2x16xf32>
    %266 = arith.mulf %265, %11 : vector<2x16xf32>
    %267 = arith.addf %263, %266 : vector<2x16xf32>
    %c54 = arith.constant 54 : index
    %268 = memref.load %arg2[%c54] : memref<96xf32, #tpu.memory_space<smem>>
    %269 = vector.broadcast %268 : f32 to vector<2x16xf32>
    %270 = arith.mulf %269, %13 : vector<2x16xf32>
    %271 = arith.addf %267, %270 : vector<2x16xf32>
    %c57 = arith.constant 57 : index
    %272 = memref.load %arg2[%c57] : memref<96xf32, #tpu.memory_space<smem>>
    %273 = vector.broadcast %272 : f32 to vector<2x16xf32>
    %274 = arith.mulf %273, %15 : vector<2x16xf32>
    %275 = arith.addf %271, %274 : vector<2x16xf32>
    %c49 = arith.constant 49 : index
    %276 = memref.load %arg2[%c49] : memref<96xf32, #tpu.memory_space<smem>>
    %277 = vector.broadcast %276 : f32 to vector<2x16xf32>
    %278 = arith.mulf %277, %17 : vector<2x16xf32>
    %279 = arith.addf %275, %278 : vector<2x16xf32>
    %c52 = arith.constant 52 : index
    %280 = memref.load %arg2[%c52] : memref<96xf32, #tpu.memory_space<smem>>
    %281 = vector.broadcast %280 : f32 to vector<2x16xf32>
    %282 = arith.mulf %281, %19 : vector<2x16xf32>
    %283 = arith.addf %279, %282 : vector<2x16xf32>
    %c55 = arith.constant 55 : index
    %284 = memref.load %arg2[%c55] : memref<96xf32, #tpu.memory_space<smem>>
    %285 = vector.broadcast %284 : f32 to vector<2x16xf32>
    %286 = arith.mulf %285, %21 : vector<2x16xf32>
    %287 = arith.addf %283, %286 : vector<2x16xf32>
    %c58 = arith.constant 58 : index
    %288 = memref.load %arg2[%c58] : memref<96xf32, #tpu.memory_space<smem>>
    %289 = vector.broadcast %288 : f32 to vector<2x16xf32>
    %290 = arith.mulf %289, %23 : vector<2x16xf32>
    %291 = arith.addf %287, %290 : vector<2x16xf32>
    %c50 = arith.constant 50 : index
    %292 = memref.load %arg2[%c50] : memref<96xf32, #tpu.memory_space<smem>>
    %293 = vector.broadcast %292 : f32 to vector<2x16xf32>
    %294 = arith.mulf %293, %25 : vector<2x16xf32>
    %295 = arith.addf %291, %294 : vector<2x16xf32>
    %c53 = arith.constant 53 : index
    %296 = memref.load %arg2[%c53] : memref<96xf32, #tpu.memory_space<smem>>
    %297 = vector.broadcast %296 : f32 to vector<2x16xf32>
    %298 = arith.mulf %297, %27 : vector<2x16xf32>
    %299 = arith.addf %295, %298 : vector<2x16xf32>
    %c56 = arith.constant 56 : index
    %300 = memref.load %arg2[%c56] : memref<96xf32, #tpu.memory_space<smem>>
    %301 = vector.broadcast %300 : f32 to vector<2x16xf32>
    %302 = arith.mulf %301, %29 : vector<2x16xf32>
    %303 = arith.addf %299, %302 : vector<2x16xf32>
    %c59 = arith.constant 59 : index
    %304 = memref.load %arg2[%c59] : memref<96xf32, #tpu.memory_space<smem>>
    %305 = vector.broadcast %304 : f32 to vector<2x16xf32>
    %306 = arith.mulf %305, %31 : vector<2x16xf32>
    %307 = arith.addf %303, %306 : vector<2x16xf32>
    %cst_21 = arith.constant dense<0.000000e+00> : vector<2x8xf32>
    %308 = tpu.matmul %307, %38, %cst_21 {dimension_numbers = #tpu.dot_dimension_numbers<[1], [0], [0], [1], [0, 0, 1, 1], [], []>} : vector<2x16xf32>, vector<16x8xf32>, vector<2x8xf32> -> vector<2x8xf32>
    %c4_22 = arith.constant 4 : index
    %309 = memref.load %arg3[%c4_22] : memref<8xf32, #tpu.memory_space<smem>>
    %310 = vector.broadcast %309 : f32 to vector<2x8xf32>
    %311 = arith.addf %308, %310 : vector<2x8xf32>
    %cst_23 = arith.constant 0.000000e+00 : f32
    %312 = vector.broadcast %cst_23 : f32 to vector<2x8xf32>
    %313 = arith.maximumf %311, %312 : vector<2x8xf32>
    %cst_24 = arith.constant 0.000000e+00 : f32
    %314 = vector.broadcast %cst_24 : f32 to vector<2x16xf32>
    %c60 = arith.constant 60 : index
    %315 = memref.load %arg2[%c60] : memref<96xf32, #tpu.memory_space<smem>>
    %316 = vector.broadcast %315 : f32 to vector<2x16xf32>
    %317 = arith.mulf %316, %9 : vector<2x16xf32>
    %318 = arith.addf %314, %317 : vector<2x16xf32>
    %c63 = arith.constant 63 : index
    %319 = memref.load %arg2[%c63] : memref<96xf32, #tpu.memory_space<smem>>
    %320 = vector.broadcast %319 : f32 to vector<2x16xf32>
    %321 = arith.mulf %320, %11 : vector<2x16xf32>
    %322 = arith.addf %318, %321 : vector<2x16xf32>
    %c66 = arith.constant 66 : index
    %323 = memref.load %arg2[%c66] : memref<96xf32, #tpu.memory_space<smem>>
    %324 = vector.broadcast %323 : f32 to vector<2x16xf32>
    %325 = arith.mulf %324, %13 : vector<2x16xf32>
    %326 = arith.addf %322, %325 : vector<2x16xf32>
    %c69 = arith.constant 69 : index
    %327 = memref.load %arg2[%c69] : memref<96xf32, #tpu.memory_space<smem>>
    %328 = vector.broadcast %327 : f32 to vector<2x16xf32>
    %329 = arith.mulf %328, %15 : vector<2x16xf32>
    %330 = arith.addf %326, %329 : vector<2x16xf32>
    %c61 = arith.constant 61 : index
    %331 = memref.load %arg2[%c61] : memref<96xf32, #tpu.memory_space<smem>>
    %332 = vector.broadcast %331 : f32 to vector<2x16xf32>
    %333 = arith.mulf %332, %17 : vector<2x16xf32>
    %334 = arith.addf %330, %333 : vector<2x16xf32>
    %c64 = arith.constant 64 : index
    %335 = memref.load %arg2[%c64] : memref<96xf32, #tpu.memory_space<smem>>
    %336 = vector.broadcast %335 : f32 to vector<2x16xf32>
    %337 = arith.mulf %336, %19 : vector<2x16xf32>
    %338 = arith.addf %334, %337 : vector<2x16xf32>
    %c67 = arith.constant 67 : index
    %339 = memref.load %arg2[%c67] : memref<96xf32, #tpu.memory_space<smem>>
    %340 = vector.broadcast %339 : f32 to vector<2x16xf32>
    %341 = arith.mulf %340, %21 : vector<2x16xf32>
    %342 = arith.addf %338, %341 : vector<2x16xf32>
    %c70 = arith.constant 70 : index
    %343 = memref.load %arg2[%c70] : memref<96xf32, #tpu.memory_space<smem>>
    %344 = vector.broadcast %343 : f32 to vector<2x16xf32>
    %345 = arith.mulf %344, %23 : vector<2x16xf32>
    %346 = arith.addf %342, %345 : vector<2x16xf32>
    %c62 = arith.constant 62 : index
    %347 = memref.load %arg2[%c62] : memref<96xf32, #tpu.memory_space<smem>>
    %348 = vector.broadcast %347 : f32 to vector<2x16xf32>
    %349 = arith.mulf %348, %25 : vector<2x16xf32>
    %350 = arith.addf %346, %349 : vector<2x16xf32>
    %c65 = arith.constant 65 : index
    %351 = memref.load %arg2[%c65] : memref<96xf32, #tpu.memory_space<smem>>
    %352 = vector.broadcast %351 : f32 to vector<2x16xf32>
    %353 = arith.mulf %352, %27 : vector<2x16xf32>
    %354 = arith.addf %350, %353 : vector<2x16xf32>
    %c68 = arith.constant 68 : index
    %355 = memref.load %arg2[%c68] : memref<96xf32, #tpu.memory_space<smem>>
    %356 = vector.broadcast %355 : f32 to vector<2x16xf32>
    %357 = arith.mulf %356, %29 : vector<2x16xf32>
    %358 = arith.addf %354, %357 : vector<2x16xf32>
    %c71 = arith.constant 71 : index
    %359 = memref.load %arg2[%c71] : memref<96xf32, #tpu.memory_space<smem>>
    %360 = vector.broadcast %359 : f32 to vector<2x16xf32>
    %361 = arith.mulf %360, %31 : vector<2x16xf32>
    %362 = arith.addf %358, %361 : vector<2x16xf32>
    %cst_25 = arith.constant dense<0.000000e+00> : vector<2x8xf32>
    %363 = tpu.matmul %362, %38, %cst_25 {dimension_numbers = #tpu.dot_dimension_numbers<[1], [0], [0], [1], [0, 0, 1, 1], [], []>} : vector<2x16xf32>, vector<16x8xf32>, vector<2x8xf32> -> vector<2x8xf32>
    %c5_26 = arith.constant 5 : index
    %364 = memref.load %arg3[%c5_26] : memref<8xf32, #tpu.memory_space<smem>>
    %365 = vector.broadcast %364 : f32 to vector<2x8xf32>
    %366 = arith.addf %363, %365 : vector<2x8xf32>
    %cst_27 = arith.constant 0.000000e+00 : f32
    %367 = vector.broadcast %cst_27 : f32 to vector<2x8xf32>
    %368 = arith.maximumf %366, %367 : vector<2x8xf32>
    %cst_28 = arith.constant 0.000000e+00 : f32
    %369 = vector.broadcast %cst_28 : f32 to vector<2x16xf32>
    %c72 = arith.constant 72 : index
    %370 = memref.load %arg2[%c72] : memref<96xf32, #tpu.memory_space<smem>>
    %371 = vector.broadcast %370 : f32 to vector<2x16xf32>
    %372 = arith.mulf %371, %9 : vector<2x16xf32>
    %373 = arith.addf %369, %372 : vector<2x16xf32>
    %c75 = arith.constant 75 : index
    %374 = memref.load %arg2[%c75] : memref<96xf32, #tpu.memory_space<smem>>
    %375 = vector.broadcast %374 : f32 to vector<2x16xf32>
    %376 = arith.mulf %375, %11 : vector<2x16xf32>
    %377 = arith.addf %373, %376 : vector<2x16xf32>
    %c78 = arith.constant 78 : index
    %378 = memref.load %arg2[%c78] : memref<96xf32, #tpu.memory_space<smem>>
    %379 = vector.broadcast %378 : f32 to vector<2x16xf32>
    %380 = arith.mulf %379, %13 : vector<2x16xf32>
    %381 = arith.addf %377, %380 : vector<2x16xf32>
    %c81 = arith.constant 81 : index
    %382 = memref.load %arg2[%c81] : memref<96xf32, #tpu.memory_space<smem>>
    %383 = vector.broadcast %382 : f32 to vector<2x16xf32>
    %384 = arith.mulf %383, %15 : vector<2x16xf32>
    %385 = arith.addf %381, %384 : vector<2x16xf32>
    %c73 = arith.constant 73 : index
    %386 = memref.load %arg2[%c73] : memref<96xf32, #tpu.memory_space<smem>>
    %387 = vector.broadcast %386 : f32 to vector<2x16xf32>
    %388 = arith.mulf %387, %17 : vector<2x16xf32>
    %389 = arith.addf %385, %388 : vector<2x16xf32>
    %c76 = arith.constant 76 : index
    %390 = memref.load %arg2[%c76] : memref<96xf32, #tpu.memory_space<smem>>
    %391 = vector.broadcast %390 : f32 to vector<2x16xf32>
    %392 = arith.mulf %391, %19 : vector<2x16xf32>
    %393 = arith.addf %389, %392 : vector<2x16xf32>
    %c79 = arith.constant 79 : index
    %394 = memref.load %arg2[%c79] : memref<96xf32, #tpu.memory_space<smem>>
    %395 = vector.broadcast %394 : f32 to vector<2x16xf32>
    %396 = arith.mulf %395, %21 : vector<2x16xf32>
    %397 = arith.addf %393, %396 : vector<2x16xf32>
    %c82 = arith.constant 82 : index
    %398 = memref.load %arg2[%c82] : memref<96xf32, #tpu.memory_space<smem>>
    %399 = vector.broadcast %398 : f32 to vector<2x16xf32>
    %400 = arith.mulf %399, %23 : vector<2x16xf32>
    %401 = arith.addf %397, %400 : vector<2x16xf32>
    %c74 = arith.constant 74 : index
    %402 = memref.load %arg2[%c74] : memref<96xf32, #tpu.memory_space<smem>>
    %403 = vector.broadcast %402 : f32 to vector<2x16xf32>
    %404 = arith.mulf %403, %25 : vector<2x16xf32>
    %405 = arith.addf %401, %404 : vector<2x16xf32>
    %c77 = arith.constant 77 : index
    %406 = memref.load %arg2[%c77] : memref<96xf32, #tpu.memory_space<smem>>
    %407 = vector.broadcast %406 : f32 to vector<2x16xf32>
    %408 = arith.mulf %407, %27 : vector<2x16xf32>
    %409 = arith.addf %405, %408 : vector<2x16xf32>
    %c80 = arith.constant 80 : index
    %410 = memref.load %arg2[%c80] : memref<96xf32, #tpu.memory_space<smem>>
    %411 = vector.broadcast %410 : f32 to vector<2x16xf32>
    %412 = arith.mulf %411, %29 : vector<2x16xf32>
    %413 = arith.addf %409, %412 : vector<2x16xf32>
    %c83 = arith.constant 83 : index
    %414 = memref.load %arg2[%c83] : memref<96xf32, #tpu.memory_space<smem>>
    %415 = vector.broadcast %414 : f32 to vector<2x16xf32>
    %416 = arith.mulf %415, %31 : vector<2x16xf32>
    %417 = arith.addf %413, %416 : vector<2x16xf32>
    %cst_29 = arith.constant dense<0.000000e+00> : vector<2x8xf32>
    %418 = tpu.matmul %417, %38, %cst_29 {dimension_numbers = #tpu.dot_dimension_numbers<[1], [0], [0], [1], [0, 0, 1, 1], [], []>} : vector<2x16xf32>, vector<16x8xf32>, vector<2x8xf32> -> vector<2x8xf32>
    %c6_30 = arith.constant 6 : index
    %419 = memref.load %arg3[%c6_30] : memref<8xf32, #tpu.memory_space<smem>>
    %420 = vector.broadcast %419 : f32 to vector<2x8xf32>
    %421 = arith.addf %418, %420 : vector<2x8xf32>
    %cst_31 = arith.constant 0.000000e+00 : f32
    %422 = vector.broadcast %cst_31 : f32 to vector<2x8xf32>
    %423 = arith.maximumf %421, %422 : vector<2x8xf32>
    %cst_32 = arith.constant 0.000000e+00 : f32
    %424 = vector.broadcast %cst_32 : f32 to vector<2x16xf32>
    %c84 = arith.constant 84 : index
    %425 = memref.load %arg2[%c84] : memref<96xf32, #tpu.memory_space<smem>>
    %426 = vector.broadcast %425 : f32 to vector<2x16xf32>
    %427 = arith.mulf %426, %9 : vector<2x16xf32>
    %428 = arith.addf %424, %427 : vector<2x16xf32>
    %c87 = arith.constant 87 : index
    %429 = memref.load %arg2[%c87] : memref<96xf32, #tpu.memory_space<smem>>
    %430 = vector.broadcast %429 : f32 to vector<2x16xf32>
    %431 = arith.mulf %430, %11 : vector<2x16xf32>
    %432 = arith.addf %428, %431 : vector<2x16xf32>
    %c90 = arith.constant 90 : index
    %433 = memref.load %arg2[%c90] : memref<96xf32, #tpu.memory_space<smem>>
    %434 = vector.broadcast %433 : f32 to vector<2x16xf32>
    %435 = arith.mulf %434, %13 : vector<2x16xf32>
    %436 = arith.addf %432, %435 : vector<2x16xf32>
    %c93 = arith.constant 93 : index
    %437 = memref.load %arg2[%c93] : memref<96xf32, #tpu.memory_space<smem>>
    %438 = vector.broadcast %437 : f32 to vector<2x16xf32>
    %439 = arith.mulf %438, %15 : vector<2x16xf32>
    %440 = arith.addf %436, %439 : vector<2x16xf32>
    %c85 = arith.constant 85 : index
    %441 = memref.load %arg2[%c85] : memref<96xf32, #tpu.memory_space<smem>>
    %442 = vector.broadcast %441 : f32 to vector<2x16xf32>
    %443 = arith.mulf %442, %17 : vector<2x16xf32>
    %444 = arith.addf %440, %443 : vector<2x16xf32>
    %c88 = arith.constant 88 : index
    %445 = memref.load %arg2[%c88] : memref<96xf32, #tpu.memory_space<smem>>
    %446 = vector.broadcast %445 : f32 to vector<2x16xf32>
    %447 = arith.mulf %446, %19 : vector<2x16xf32>
    %448 = arith.addf %444, %447 : vector<2x16xf32>
    %c91 = arith.constant 91 : index
    %449 = memref.load %arg2[%c91] : memref<96xf32, #tpu.memory_space<smem>>
    %450 = vector.broadcast %449 : f32 to vector<2x16xf32>
    %451 = arith.mulf %450, %21 : vector<2x16xf32>
    %452 = arith.addf %448, %451 : vector<2x16xf32>
    %c94 = arith.constant 94 : index
    %453 = memref.load %arg2[%c94] : memref<96xf32, #tpu.memory_space<smem>>
    %454 = vector.broadcast %453 : f32 to vector<2x16xf32>
    %455 = arith.mulf %454, %23 : vector<2x16xf32>
    %456 = arith.addf %452, %455 : vector<2x16xf32>
    %c86 = arith.constant 86 : index
    %457 = memref.load %arg2[%c86] : memref<96xf32, #tpu.memory_space<smem>>
    %458 = vector.broadcast %457 : f32 to vector<2x16xf32>
    %459 = arith.mulf %458, %25 : vector<2x16xf32>
    %460 = arith.addf %456, %459 : vector<2x16xf32>
    %c89 = arith.constant 89 : index
    %461 = memref.load %arg2[%c89] : memref<96xf32, #tpu.memory_space<smem>>
    %462 = vector.broadcast %461 : f32 to vector<2x16xf32>
    %463 = arith.mulf %462, %27 : vector<2x16xf32>
    %464 = arith.addf %460, %463 : vector<2x16xf32>
    %c92 = arith.constant 92 : index
    %465 = memref.load %arg2[%c92] : memref<96xf32, #tpu.memory_space<smem>>
    %466 = vector.broadcast %465 : f32 to vector<2x16xf32>
    %467 = arith.mulf %466, %29 : vector<2x16xf32>
    %468 = arith.addf %464, %467 : vector<2x16xf32>
    %c95 = arith.constant 95 : index
    %469 = memref.load %arg2[%c95] : memref<96xf32, #tpu.memory_space<smem>>
    %470 = vector.broadcast %469 : f32 to vector<2x16xf32>
    %471 = arith.mulf %470, %31 : vector<2x16xf32>
    %472 = arith.addf %468, %471 : vector<2x16xf32>
    %cst_33 = arith.constant dense<0.000000e+00> : vector<2x8xf32>
    %473 = tpu.matmul %472, %38, %cst_33 {dimension_numbers = #tpu.dot_dimension_numbers<[1], [0], [0], [1], [0, 0, 1, 1], [], []>} : vector<2x16xf32>, vector<16x8xf32>, vector<2x8xf32> -> vector<2x8xf32>
    %c7_34 = arith.constant 7 : index
    %474 = memref.load %arg3[%c7_34] : memref<8xf32, #tpu.memory_space<smem>>
    %475 = vector.broadcast %474 : f32 to vector<2x8xf32>
    %476 = arith.addf %473, %475 : vector<2x8xf32>
    %cst_35 = arith.constant 0.000000e+00 : f32
    %477 = vector.broadcast %cst_35 : f32 to vector<2x8xf32>
    %478 = arith.maximumf %476, %477 : vector<2x8xf32>
    %479 = vector.shape_cast %93 : vector<2x8xf32> to vector<2x1x8xf32>
    %480 = vector.shape_cast %148 : vector<2x8xf32> to vector<2x1x8xf32>
    %481 = vector.shape_cast %203 : vector<2x8xf32> to vector<2x1x8xf32>
    %482 = vector.shape_cast %258 : vector<2x8xf32> to vector<2x1x8xf32>
    %483 = vector.shape_cast %313 : vector<2x8xf32> to vector<2x1x8xf32>
    %484 = vector.shape_cast %368 : vector<2x8xf32> to vector<2x1x8xf32>
    %485 = vector.shape_cast %423 : vector<2x8xf32> to vector<2x1x8xf32>
    %486 = vector.shape_cast %478 : vector<2x8xf32> to vector<2x1x8xf32>
    %487 = tpu.concatenate %479, %480, %481, %482, %483, %484, %485, %486 in 1 : vector<2x1x8xf32>, vector<2x1x8xf32>, vector<2x1x8xf32>, vector<2x1x8xf32>, vector<2x1x8xf32>, vector<2x1x8xf32>, vector<2x1x8xf32>, vector<2x1x8xf32> -> vector<2x8x8xf32>
    %cst_36 = arith.constant 0.000000e+00 : f32
    %488 = vector.broadcast %cst_36 : f32 to vector<2x8x2xf32>
    %489 = vector.extract_strided_slice %487 {offsets = [0, 0, 0], sizes = [2, 8, 6], strides = [1, 1, 1]} : vector<2x8x8xf32> to vector<2x8x6xf32>
    %490 = tpu.concatenate %488, %489 in 2 : vector<2x8x2xf32>, vector<2x8x6xf32> -> vector<2x8x8xf32>
    %491 = vector.extract_strided_slice %487 {offsets = [0, 0, 0], sizes = [2, 8, 8], strides = [1, 1, 1]} : vector<2x8x8xf32> to vector<2x8x8xf32>
    %492 = vector.extract_strided_slice %487 {offsets = [0, 0, 2], sizes = [2, 8, 6], strides = [1, 1, 1]} : vector<2x8x8xf32> to vector<2x8x6xf32>
    %cst_37 = arith.constant 0.000000e+00 : f32
    %493 = vector.broadcast %cst_37 : f32 to vector<2x8x2xf32>
    %494 = tpu.concatenate %492, %493 in 2 : vector<2x8x6xf32>, vector<2x8x2xf32> -> vector<2x8x8xf32>
    %495 = vector.extract_strided_slice %490 {offsets = [0, 0, 0], sizes = [2, 1, 8], strides = [1, 1, 1]} : vector<2x8x8xf32> to vector<2x1x8xf32>
    %496 = vector.shape_cast %495 : vector<2x1x8xf32> to vector<2x8xf32>
    %497 = vector.extract_strided_slice %490 {offsets = [0, 1, 0], sizes = [2, 1, 8], strides = [1, 1, 1]} : vector<2x8x8xf32> to vector<2x1x8xf32>
    %498 = vector.shape_cast %497 : vector<2x1x8xf32> to vector<2x8xf32>
    %499 = vector.extract_strided_slice %490 {offsets = [0, 2, 0], sizes = [2, 1, 8], strides = [1, 1, 1]} : vector<2x8x8xf32> to vector<2x1x8xf32>
    %500 = vector.shape_cast %499 : vector<2x1x8xf32> to vector<2x8xf32>
    %501 = vector.extract_strided_slice %490 {offsets = [0, 3, 0], sizes = [2, 1, 8], strides = [1, 1, 1]} : vector<2x8x8xf32> to vector<2x1x8xf32>
    %502 = vector.shape_cast %501 : vector<2x1x8xf32> to vector<2x8xf32>
    %503 = vector.extract_strided_slice %490 {offsets = [0, 4, 0], sizes = [2, 1, 8], strides = [1, 1, 1]} : vector<2x8x8xf32> to vector<2x1x8xf32>
    %504 = vector.shape_cast %503 : vector<2x1x8xf32> to vector<2x8xf32>
    %505 = vector.extract_strided_slice %490 {offsets = [0, 5, 0], sizes = [2, 1, 8], strides = [1, 1, 1]} : vector<2x8x8xf32> to vector<2x1x8xf32>
    %506 = vector.shape_cast %505 : vector<2x1x8xf32> to vector<2x8xf32>
    %507 = vector.extract_strided_slice %490 {offsets = [0, 6, 0], sizes = [2, 1, 8], strides = [1, 1, 1]} : vector<2x8x8xf32> to vector<2x1x8xf32>
    %508 = vector.shape_cast %507 : vector<2x1x8xf32> to vector<2x8xf32>
    %509 = vector.extract_strided_slice %490 {offsets = [0, 7, 0], sizes = [2, 1, 8], strides = [1, 1, 1]} : vector<2x8x8xf32> to vector<2x1x8xf32>
    %510 = vector.shape_cast %509 : vector<2x1x8xf32> to vector<2x8xf32>
    %511 = vector.extract_strided_slice %491 {offsets = [0, 0, 0], sizes = [2, 1, 8], strides = [1, 1, 1]} : vector<2x8x8xf32> to vector<2x1x8xf32>
    %512 = vector.shape_cast %511 : vector<2x1x8xf32> to vector<2x8xf32>
    %513 = vector.extract_strided_slice %491 {offsets = [0, 1, 0], sizes = [2, 1, 8], strides = [1, 1, 1]} : vector<2x8x8xf32> to vector<2x1x8xf32>
    %514 = vector.shape_cast %513 : vector<2x1x8xf32> to vector<2x8xf32>
    %515 = vector.extract_strided_slice %491 {offsets = [0, 2, 0], sizes = [2, 1, 8], strides = [1, 1, 1]} : vector<2x8x8xf32> to vector<2x1x8xf32>
    %516 = vector.shape_cast %515 : vector<2x1x8xf32> to vector<2x8xf32>
    %517 = vector.extract_strided_slice %491 {offsets = [0, 3, 0], sizes = [2, 1, 8], strides = [1, 1, 1]} : vector<2x8x8xf32> to vector<2x1x8xf32>
    %518 = vector.shape_cast %517 : vector<2x1x8xf32> to vector<2x8xf32>
    %519 = vector.extract_strided_slice %491 {offsets = [0, 4, 0], sizes = [2, 1, 8], strides = [1, 1, 1]} : vector<2x8x8xf32> to vector<2x1x8xf32>
    %520 = vector.shape_cast %519 : vector<2x1x8xf32> to vector<2x8xf32>
    %521 = vector.extract_strided_slice %491 {offsets = [0, 5, 0], sizes = [2, 1, 8], strides = [1, 1, 1]} : vector<2x8x8xf32> to vector<2x1x8xf32>
    %522 = vector.shape_cast %521 : vector<2x1x8xf32> to vector<2x8xf32>
    %523 = vector.extract_strided_slice %491 {offsets = [0, 6, 0], sizes = [2, 1, 8], strides = [1, 1, 1]} : vector<2x8x8xf32> to vector<2x1x8xf32>
    %524 = vector.shape_cast %523 : vector<2x1x8xf32> to vector<2x8xf32>
    %525 = vector.extract_strided_slice %491 {offsets = [0, 7, 0], sizes = [2, 1, 8], strides = [1, 1, 1]} : vector<2x8x8xf32> to vector<2x1x8xf32>
    %526 = vector.shape_cast %525 : vector<2x1x8xf32> to vector<2x8xf32>
    %527 = vector.extract_strided_slice %494 {offsets = [0, 0, 0], sizes = [2, 1, 8], strides = [1, 1, 1]} : vector<2x8x8xf32> to vector<2x1x8xf32>
    %528 = vector.shape_cast %527 : vector<2x1x8xf32> to vector<2x8xf32>
    %529 = vector.extract_strided_slice %494 {offsets = [0, 1, 0], sizes = [2, 1, 8], strides = [1, 1, 1]} : vector<2x8x8xf32> to vector<2x1x8xf32>
    %530 = vector.shape_cast %529 : vector<2x1x8xf32> to vector<2x8xf32>
    %531 = vector.extract_strided_slice %494 {offsets = [0, 2, 0], sizes = [2, 1, 8], strides = [1, 1, 1]} : vector<2x8x8xf32> to vector<2x1x8xf32>
    %532 = vector.shape_cast %531 : vector<2x1x8xf32> to vector<2x8xf32>
    %533 = vector.extract_strided_slice %494 {offsets = [0, 3, 0], sizes = [2, 1, 8], strides = [1, 1, 1]} : vector<2x8x8xf32> to vector<2x1x8xf32>
    %534 = vector.shape_cast %533 : vector<2x1x8xf32> to vector<2x8xf32>
    %535 = vector.extract_strided_slice %494 {offsets = [0, 4, 0], sizes = [2, 1, 8], strides = [1, 1, 1]} : vector<2x8x8xf32> to vector<2x1x8xf32>
    %536 = vector.shape_cast %535 : vector<2x1x8xf32> to vector<2x8xf32>
    %537 = vector.extract_strided_slice %494 {offsets = [0, 5, 0], sizes = [2, 1, 8], strides = [1, 1, 1]} : vector<2x8x8xf32> to vector<2x1x8xf32>
    %538 = vector.shape_cast %537 : vector<2x1x8xf32> to vector<2x8xf32>
    %539 = vector.extract_strided_slice %494 {offsets = [0, 6, 0], sizes = [2, 1, 8], strides = [1, 1, 1]} : vector<2x8x8xf32> to vector<2x1x8xf32>
    %540 = vector.shape_cast %539 : vector<2x1x8xf32> to vector<2x8xf32>
    %541 = vector.extract_strided_slice %494 {offsets = [0, 7, 0], sizes = [2, 1, 8], strides = [1, 1, 1]} : vector<2x8x8xf32> to vector<2x1x8xf32>
    %542 = vector.shape_cast %541 : vector<2x1x8xf32> to vector<2x8xf32>
    %cst_38 = arith.constant 0.000000e+00 : f32
    %543 = vector.broadcast %cst_38 : f32 to vector<2x8xf32>
    %c0_39 = arith.constant 0 : index
    %544 = memref.load %arg4[%c0_39] : memref<192xf32, #tpu.memory_space<smem>>
    %545 = vector.broadcast %544 : f32 to vector<2x8xf32>
    %546 = arith.mulf %545, %496 : vector<2x8xf32>
    %547 = arith.addf %543, %546 : vector<2x8xf32>
    %c3_40 = arith.constant 3 : index
    %548 = memref.load %arg4[%c3_40] : memref<192xf32, #tpu.memory_space<smem>>
    %549 = vector.broadcast %548 : f32 to vector<2x8xf32>
    %550 = arith.mulf %549, %498 : vector<2x8xf32>
    %551 = arith.addf %547, %550 : vector<2x8xf32>
    %c6_41 = arith.constant 6 : index
    %552 = memref.load %arg4[%c6_41] : memref<192xf32, #tpu.memory_space<smem>>
    %553 = vector.broadcast %552 : f32 to vector<2x8xf32>
    %554 = arith.mulf %553, %500 : vector<2x8xf32>
    %555 = arith.addf %551, %554 : vector<2x8xf32>
    %c9_42 = arith.constant 9 : index
    %556 = memref.load %arg4[%c9_42] : memref<192xf32, #tpu.memory_space<smem>>
    %557 = vector.broadcast %556 : f32 to vector<2x8xf32>
    %558 = arith.mulf %557, %502 : vector<2x8xf32>
    %559 = arith.addf %555, %558 : vector<2x8xf32>
    %c12_43 = arith.constant 12 : index
    %560 = memref.load %arg4[%c12_43] : memref<192xf32, #tpu.memory_space<smem>>
    %561 = vector.broadcast %560 : f32 to vector<2x8xf32>
    %562 = arith.mulf %561, %504 : vector<2x8xf32>
    %563 = arith.addf %559, %562 : vector<2x8xf32>
    %c15_44 = arith.constant 15 : index
    %564 = memref.load %arg4[%c15_44] : memref<192xf32, #tpu.memory_space<smem>>
    %565 = vector.broadcast %564 : f32 to vector<2x8xf32>
    %566 = arith.mulf %565, %506 : vector<2x8xf32>
    %567 = arith.addf %563, %566 : vector<2x8xf32>
    %c18_45 = arith.constant 18 : index
    %568 = memref.load %arg4[%c18_45] : memref<192xf32, #tpu.memory_space<smem>>
    %569 = vector.broadcast %568 : f32 to vector<2x8xf32>
    %570 = arith.mulf %569, %508 : vector<2x8xf32>
    %571 = arith.addf %567, %570 : vector<2x8xf32>
    %c21_46 = arith.constant 21 : index
    %572 = memref.load %arg4[%c21_46] : memref<192xf32, #tpu.memory_space<smem>>
    %573 = vector.broadcast %572 : f32 to vector<2x8xf32>
    %574 = arith.mulf %573, %510 : vector<2x8xf32>
    %575 = arith.addf %571, %574 : vector<2x8xf32>
    %c1_47 = arith.constant 1 : index
    %576 = memref.load %arg4[%c1_47] : memref<192xf32, #tpu.memory_space<smem>>
    %577 = vector.broadcast %576 : f32 to vector<2x8xf32>
    %578 = arith.mulf %577, %512 : vector<2x8xf32>
    %579 = arith.addf %575, %578 : vector<2x8xf32>
    %c4_48 = arith.constant 4 : index
    %580 = memref.load %arg4[%c4_48] : memref<192xf32, #tpu.memory_space<smem>>
    %581 = vector.broadcast %580 : f32 to vector<2x8xf32>
    %582 = arith.mulf %581, %514 : vector<2x8xf32>
    %583 = arith.addf %579, %582 : vector<2x8xf32>
    %c7_49 = arith.constant 7 : index
    %584 = memref.load %arg4[%c7_49] : memref<192xf32, #tpu.memory_space<smem>>
    %585 = vector.broadcast %584 : f32 to vector<2x8xf32>
    %586 = arith.mulf %585, %516 : vector<2x8xf32>
    %587 = arith.addf %583, %586 : vector<2x8xf32>
    %c10_50 = arith.constant 10 : index
    %588 = memref.load %arg4[%c10_50] : memref<192xf32, #tpu.memory_space<smem>>
    %589 = vector.broadcast %588 : f32 to vector<2x8xf32>
    %590 = arith.mulf %589, %518 : vector<2x8xf32>
    %591 = arith.addf %587, %590 : vector<2x8xf32>
    %c13_51 = arith.constant 13 : index
    %592 = memref.load %arg4[%c13_51] : memref<192xf32, #tpu.memory_space<smem>>
    %593 = vector.broadcast %592 : f32 to vector<2x8xf32>
    %594 = arith.mulf %593, %520 : vector<2x8xf32>
    %595 = arith.addf %591, %594 : vector<2x8xf32>
    %c16_52 = arith.constant 16 : index
    %596 = memref.load %arg4[%c16_52] : memref<192xf32, #tpu.memory_space<smem>>
    %597 = vector.broadcast %596 : f32 to vector<2x8xf32>
    %598 = arith.mulf %597, %522 : vector<2x8xf32>
    %599 = arith.addf %595, %598 : vector<2x8xf32>
    %c19_53 = arith.constant 19 : index
    %600 = memref.load %arg4[%c19_53] : memref<192xf32, #tpu.memory_space<smem>>
    %601 = vector.broadcast %600 : f32 to vector<2x8xf32>
    %602 = arith.mulf %601, %524 : vector<2x8xf32>
    %603 = arith.addf %599, %602 : vector<2x8xf32>
    %c22_54 = arith.constant 22 : index
    %604 = memref.load %arg4[%c22_54] : memref<192xf32, #tpu.memory_space<smem>>
    %605 = vector.broadcast %604 : f32 to vector<2x8xf32>
    %606 = arith.mulf %605, %526 : vector<2x8xf32>
    %607 = arith.addf %603, %606 : vector<2x8xf32>
    %c2_55 = arith.constant 2 : index
    %608 = memref.load %arg4[%c2_55] : memref<192xf32, #tpu.memory_space<smem>>
    %609 = vector.broadcast %608 : f32 to vector<2x8xf32>
    %610 = arith.mulf %609, %528 : vector<2x8xf32>
    %611 = arith.addf %607, %610 : vector<2x8xf32>
    %c5_56 = arith.constant 5 : index
    %612 = memref.load %arg4[%c5_56] : memref<192xf32, #tpu.memory_space<smem>>
    %613 = vector.broadcast %612 : f32 to vector<2x8xf32>
    %614 = arith.mulf %613, %530 : vector<2x8xf32>
    %615 = arith.addf %611, %614 : vector<2x8xf32>
    %c8_57 = arith.constant 8 : index
    %616 = memref.load %arg4[%c8_57] : memref<192xf32, #tpu.memory_space<smem>>
    %617 = vector.broadcast %616 : f32 to vector<2x8xf32>
    %618 = arith.mulf %617, %532 : vector<2x8xf32>
    %619 = arith.addf %615, %618 : vector<2x8xf32>
    %c11_58 = arith.constant 11 : index
    %620 = memref.load %arg4[%c11_58] : memref<192xf32, #tpu.memory_space<smem>>
    %621 = vector.broadcast %620 : f32 to vector<2x8xf32>
    %622 = arith.mulf %621, %534 : vector<2x8xf32>
    %623 = arith.addf %619, %622 : vector<2x8xf32>
    %c14_59 = arith.constant 14 : index
    %624 = memref.load %arg4[%c14_59] : memref<192xf32, #tpu.memory_space<smem>>
    %625 = vector.broadcast %624 : f32 to vector<2x8xf32>
    %626 = arith.mulf %625, %536 : vector<2x8xf32>
    %627 = arith.addf %623, %626 : vector<2x8xf32>
    %c17_60 = arith.constant 17 : index
    %628 = memref.load %arg4[%c17_60] : memref<192xf32, #tpu.memory_space<smem>>
    %629 = vector.broadcast %628 : f32 to vector<2x8xf32>
    %630 = arith.mulf %629, %538 : vector<2x8xf32>
    %631 = arith.addf %627, %630 : vector<2x8xf32>
    %c20_61 = arith.constant 20 : index
    %632 = memref.load %arg4[%c20_61] : memref<192xf32, #tpu.memory_space<smem>>
    %633 = vector.broadcast %632 : f32 to vector<2x8xf32>
    %634 = arith.mulf %633, %540 : vector<2x8xf32>
    %635 = arith.addf %631, %634 : vector<2x8xf32>
    %c23_62 = arith.constant 23 : index
    %636 = memref.load %arg4[%c23_62] : memref<192xf32, #tpu.memory_space<smem>>
    %637 = vector.broadcast %636 : f32 to vector<2x8xf32>
    %638 = arith.mulf %637, %542 : vector<2x8xf32>
    %639 = arith.addf %635, %638 : vector<2x8xf32>
    %c0_63 = arith.constant 0 : index
    %640 = memref.load %arg5[%c0_63] : memref<8xf32, #tpu.memory_space<smem>>
    %641 = vector.broadcast %640 : f32 to vector<2x8xf32>
    %642 = arith.addf %639, %641 : vector<2x8xf32>
    %cst_64 = arith.constant 0.000000e+00 : f32
    %643 = vector.broadcast %cst_64 : f32 to vector<2x8xf32>
    %644 = arith.maximumf %642, %643 : vector<2x8xf32>
    %cst_65 = arith.constant 0.000000e+00 : f32
    %645 = vector.broadcast %cst_65 : f32 to vector<2x8xf32>
    %c24_66 = arith.constant 24 : index
    %646 = memref.load %arg4[%c24_66] : memref<192xf32, #tpu.memory_space<smem>>
    %647 = vector.broadcast %646 : f32 to vector<2x8xf32>
    %648 = arith.mulf %647, %496 : vector<2x8xf32>
    %649 = arith.addf %645, %648 : vector<2x8xf32>
    %c27_67 = arith.constant 27 : index
    %650 = memref.load %arg4[%c27_67] : memref<192xf32, #tpu.memory_space<smem>>
    %651 = vector.broadcast %650 : f32 to vector<2x8xf32>
    %652 = arith.mulf %651, %498 : vector<2x8xf32>
    %653 = arith.addf %649, %652 : vector<2x8xf32>
    %c30_68 = arith.constant 30 : index
    %654 = memref.load %arg4[%c30_68] : memref<192xf32, #tpu.memory_space<smem>>
    %655 = vector.broadcast %654 : f32 to vector<2x8xf32>
    %656 = arith.mulf %655, %500 : vector<2x8xf32>
    %657 = arith.addf %653, %656 : vector<2x8xf32>
    %c33_69 = arith.constant 33 : index
    %658 = memref.load %arg4[%c33_69] : memref<192xf32, #tpu.memory_space<smem>>
    %659 = vector.broadcast %658 : f32 to vector<2x8xf32>
    %660 = arith.mulf %659, %502 : vector<2x8xf32>
    %661 = arith.addf %657, %660 : vector<2x8xf32>
    %c36_70 = arith.constant 36 : index
    %662 = memref.load %arg4[%c36_70] : memref<192xf32, #tpu.memory_space<smem>>
    %663 = vector.broadcast %662 : f32 to vector<2x8xf32>
    %664 = arith.mulf %663, %504 : vector<2x8xf32>
    %665 = arith.addf %661, %664 : vector<2x8xf32>
    %c39_71 = arith.constant 39 : index
    %666 = memref.load %arg4[%c39_71] : memref<192xf32, #tpu.memory_space<smem>>
    %667 = vector.broadcast %666 : f32 to vector<2x8xf32>
    %668 = arith.mulf %667, %506 : vector<2x8xf32>
    %669 = arith.addf %665, %668 : vector<2x8xf32>
    %c42_72 = arith.constant 42 : index
    %670 = memref.load %arg4[%c42_72] : memref<192xf32, #tpu.memory_space<smem>>
    %671 = vector.broadcast %670 : f32 to vector<2x8xf32>
    %672 = arith.mulf %671, %508 : vector<2x8xf32>
    %673 = arith.addf %669, %672 : vector<2x8xf32>
    %c45_73 = arith.constant 45 : index
    %674 = memref.load %arg4[%c45_73] : memref<192xf32, #tpu.memory_space<smem>>
    %675 = vector.broadcast %674 : f32 to vector<2x8xf32>
    %676 = arith.mulf %675, %510 : vector<2x8xf32>
    %677 = arith.addf %673, %676 : vector<2x8xf32>
    %c25_74 = arith.constant 25 : index
    %678 = memref.load %arg4[%c25_74] : memref<192xf32, #tpu.memory_space<smem>>
    %679 = vector.broadcast %678 : f32 to vector<2x8xf32>
    %680 = arith.mulf %679, %512 : vector<2x8xf32>
    %681 = arith.addf %677, %680 : vector<2x8xf32>
    %c28_75 = arith.constant 28 : index
    %682 = memref.load %arg4[%c28_75] : memref<192xf32, #tpu.memory_space<smem>>
    %683 = vector.broadcast %682 : f32 to vector<2x8xf32>
    %684 = arith.mulf %683, %514 : vector<2x8xf32>
    %685 = arith.addf %681, %684 : vector<2x8xf32>
    %c31_76 = arith.constant 31 : index
    %686 = memref.load %arg4[%c31_76] : memref<192xf32, #tpu.memory_space<smem>>
    %687 = vector.broadcast %686 : f32 to vector<2x8xf32>
    %688 = arith.mulf %687, %516 : vector<2x8xf32>
    %689 = arith.addf %685, %688 : vector<2x8xf32>
    %c34_77 = arith.constant 34 : index
    %690 = memref.load %arg4[%c34_77] : memref<192xf32, #tpu.memory_space<smem>>
    %691 = vector.broadcast %690 : f32 to vector<2x8xf32>
    %692 = arith.mulf %691, %518 : vector<2x8xf32>
    %693 = arith.addf %689, %692 : vector<2x8xf32>
    %c37_78 = arith.constant 37 : index
    %694 = memref.load %arg4[%c37_78] : memref<192xf32, #tpu.memory_space<smem>>
    %695 = vector.broadcast %694 : f32 to vector<2x8xf32>
    %696 = arith.mulf %695, %520 : vector<2x8xf32>
    %697 = arith.addf %693, %696 : vector<2x8xf32>
    %c40_79 = arith.constant 40 : index
    %698 = memref.load %arg4[%c40_79] : memref<192xf32, #tpu.memory_space<smem>>
    %699 = vector.broadcast %698 : f32 to vector<2x8xf32>
    %700 = arith.mulf %699, %522 : vector<2x8xf32>
    %701 = arith.addf %697, %700 : vector<2x8xf32>
    %c43_80 = arith.constant 43 : index
    %702 = memref.load %arg4[%c43_80] : memref<192xf32, #tpu.memory_space<smem>>
    %703 = vector.broadcast %702 : f32 to vector<2x8xf32>
    %704 = arith.mulf %703, %524 : vector<2x8xf32>
    %705 = arith.addf %701, %704 : vector<2x8xf32>
    %c46_81 = arith.constant 46 : index
    %706 = memref.load %arg4[%c46_81] : memref<192xf32, #tpu.memory_space<smem>>
    %707 = vector.broadcast %706 : f32 to vector<2x8xf32>
    %708 = arith.mulf %707, %526 : vector<2x8xf32>
    %709 = arith.addf %705, %708 : vector<2x8xf32>
    %c26_82 = arith.constant 26 : index
    %710 = memref.load %arg4[%c26_82] : memref<192xf32, #tpu.memory_space<smem>>
    %711 = vector.broadcast %710 : f32 to vector<2x8xf32>
    %712 = arith.mulf %711, %528 : vector<2x8xf32>
    %713 = arith.addf %709, %712 : vector<2x8xf32>
    %c29_83 = arith.constant 29 : index
    %714 = memref.load %arg4[%c29_83] : memref<192xf32, #tpu.memory_space<smem>>
    %715 = vector.broadcast %714 : f32 to vector<2x8xf32>
    %716 = arith.mulf %715, %530 : vector<2x8xf32>
    %717 = arith.addf %713, %716 : vector<2x8xf32>
    %c32_84 = arith.constant 32 : index
    %718 = memref.load %arg4[%c32_84] : memref<192xf32, #tpu.memory_space<smem>>
    %719 = vector.broadcast %718 : f32 to vector<2x8xf32>
    %720 = arith.mulf %719, %532 : vector<2x8xf32>
    %721 = arith.addf %717, %720 : vector<2x8xf32>
    %c35_85 = arith.constant 35 : index
    %722 = memref.load %arg4[%c35_85] : memref<192xf32, #tpu.memory_space<smem>>
    %723 = vector.broadcast %722 : f32 to vector<2x8xf32>
    %724 = arith.mulf %723, %534 : vector<2x8xf32>
    %725 = arith.addf %721, %724 : vector<2x8xf32>
    %c38_86 = arith.constant 38 : index
    %726 = memref.load %arg4[%c38_86] : memref<192xf32, #tpu.memory_space<smem>>
    %727 = vector.broadcast %726 : f32 to vector<2x8xf32>
    %728 = arith.mulf %727, %536 : vector<2x8xf32>
    %729 = arith.addf %725, %728 : vector<2x8xf32>
    %c41_87 = arith.constant 41 : index
    %730 = memref.load %arg4[%c41_87] : memref<192xf32, #tpu.memory_space<smem>>
    %731 = vector.broadcast %730 : f32 to vector<2x8xf32>
    %732 = arith.mulf %731, %538 : vector<2x8xf32>
    %733 = arith.addf %729, %732 : vector<2x8xf32>
    %c44_88 = arith.constant 44 : index
    %734 = memref.load %arg4[%c44_88] : memref<192xf32, #tpu.memory_space<smem>>
    %735 = vector.broadcast %734 : f32 to vector<2x8xf32>
    %736 = arith.mulf %735, %540 : vector<2x8xf32>
    %737 = arith.addf %733, %736 : vector<2x8xf32>
    %c47_89 = arith.constant 47 : index
    %738 = memref.load %arg4[%c47_89] : memref<192xf32, #tpu.memory_space<smem>>
    %739 = vector.broadcast %738 : f32 to vector<2x8xf32>
    %740 = arith.mulf %739, %542 : vector<2x8xf32>
    %741 = arith.addf %737, %740 : vector<2x8xf32>
    %c1_90 = arith.constant 1 : index
    %742 = memref.load %arg5[%c1_90] : memref<8xf32, #tpu.memory_space<smem>>
    %743 = vector.broadcast %742 : f32 to vector<2x8xf32>
    %744 = arith.addf %741, %743 : vector<2x8xf32>
    %cst_91 = arith.constant 0.000000e+00 : f32
    %745 = vector.broadcast %cst_91 : f32 to vector<2x8xf32>
    %746 = arith.maximumf %744, %745 : vector<2x8xf32>
    %cst_92 = arith.constant 0.000000e+00 : f32
    %747 = vector.broadcast %cst_92 : f32 to vector<2x8xf32>
    %c48_93 = arith.constant 48 : index
    %748 = memref.load %arg4[%c48_93] : memref<192xf32, #tpu.memory_space<smem>>
    %749 = vector.broadcast %748 : f32 to vector<2x8xf32>
    %750 = arith.mulf %749, %496 : vector<2x8xf32>
    %751 = arith.addf %747, %750 : vector<2x8xf32>
    %c51_94 = arith.constant 51 : index
    %752 = memref.load %arg4[%c51_94] : memref<192xf32, #tpu.memory_space<smem>>
    %753 = vector.broadcast %752 : f32 to vector<2x8xf32>
    %754 = arith.mulf %753, %498 : vector<2x8xf32>
    %755 = arith.addf %751, %754 : vector<2x8xf32>
    %c54_95 = arith.constant 54 : index
    %756 = memref.load %arg4[%c54_95] : memref<192xf32, #tpu.memory_space<smem>>
    %757 = vector.broadcast %756 : f32 to vector<2x8xf32>
    %758 = arith.mulf %757, %500 : vector<2x8xf32>
    %759 = arith.addf %755, %758 : vector<2x8xf32>
    %c57_96 = arith.constant 57 : index
    %760 = memref.load %arg4[%c57_96] : memref<192xf32, #tpu.memory_space<smem>>
    %761 = vector.broadcast %760 : f32 to vector<2x8xf32>
    %762 = arith.mulf %761, %502 : vector<2x8xf32>
    %763 = arith.addf %759, %762 : vector<2x8xf32>
    %c60_97 = arith.constant 60 : index
    %764 = memref.load %arg4[%c60_97] : memref<192xf32, #tpu.memory_space<smem>>
    %765 = vector.broadcast %764 : f32 to vector<2x8xf32>
    %766 = arith.mulf %765, %504 : vector<2x8xf32>
    %767 = arith.addf %763, %766 : vector<2x8xf32>
    %c63_98 = arith.constant 63 : index
    %768 = memref.load %arg4[%c63_98] : memref<192xf32, #tpu.memory_space<smem>>
    %769 = vector.broadcast %768 : f32 to vector<2x8xf32>
    %770 = arith.mulf %769, %506 : vector<2x8xf32>
    %771 = arith.addf %767, %770 : vector<2x8xf32>
    %c66_99 = arith.constant 66 : index
    %772 = memref.load %arg4[%c66_99] : memref<192xf32, #tpu.memory_space<smem>>
    %773 = vector.broadcast %772 : f32 to vector<2x8xf32>
    %774 = arith.mulf %773, %508 : vector<2x8xf32>
    %775 = arith.addf %771, %774 : vector<2x8xf32>
    %c69_100 = arith.constant 69 : index
    %776 = memref.load %arg4[%c69_100] : memref<192xf32, #tpu.memory_space<smem>>
    %777 = vector.broadcast %776 : f32 to vector<2x8xf32>
    %778 = arith.mulf %777, %510 : vector<2x8xf32>
    %779 = arith.addf %775, %778 : vector<2x8xf32>
    %c49_101 = arith.constant 49 : index
    %780 = memref.load %arg4[%c49_101] : memref<192xf32, #tpu.memory_space<smem>>
    %781 = vector.broadcast %780 : f32 to vector<2x8xf32>
    %782 = arith.mulf %781, %512 : vector<2x8xf32>
    %783 = arith.addf %779, %782 : vector<2x8xf32>
    %c52_102 = arith.constant 52 : index
    %784 = memref.load %arg4[%c52_102] : memref<192xf32, #tpu.memory_space<smem>>
    %785 = vector.broadcast %784 : f32 to vector<2x8xf32>
    %786 = arith.mulf %785, %514 : vector<2x8xf32>
    %787 = arith.addf %783, %786 : vector<2x8xf32>
    %c55_103 = arith.constant 55 : index
    %788 = memref.load %arg4[%c55_103] : memref<192xf32, #tpu.memory_space<smem>>
    %789 = vector.broadcast %788 : f32 to vector<2x8xf32>
    %790 = arith.mulf %789, %516 : vector<2x8xf32>
    %791 = arith.addf %787, %790 : vector<2x8xf32>
    %c58_104 = arith.constant 58 : index
    %792 = memref.load %arg4[%c58_104] : memref<192xf32, #tpu.memory_space<smem>>
    %793 = vector.broadcast %792 : f32 to vector<2x8xf32>
    %794 = arith.mulf %793, %518 : vector<2x8xf32>
    %795 = arith.addf %791, %794 : vector<2x8xf32>
    %c61_105 = arith.constant 61 : index
    %796 = memref.load %arg4[%c61_105] : memref<192xf32, #tpu.memory_space<smem>>
    %797 = vector.broadcast %796 : f32 to vector<2x8xf32>
    %798 = arith.mulf %797, %520 : vector<2x8xf32>
    %799 = arith.addf %795, %798 : vector<2x8xf32>
    %c64_106 = arith.constant 64 : index
    %800 = memref.load %arg4[%c64_106] : memref<192xf32, #tpu.memory_space<smem>>
    %801 = vector.broadcast %800 : f32 to vector<2x8xf32>
    %802 = arith.mulf %801, %522 : vector<2x8xf32>
    %803 = arith.addf %799, %802 : vector<2x8xf32>
    %c67_107 = arith.constant 67 : index
    %804 = memref.load %arg4[%c67_107] : memref<192xf32, #tpu.memory_space<smem>>
    %805 = vector.broadcast %804 : f32 to vector<2x8xf32>
    %806 = arith.mulf %805, %524 : vector<2x8xf32>
    %807 = arith.addf %803, %806 : vector<2x8xf32>
    %c70_108 = arith.constant 70 : index
    %808 = memref.load %arg4[%c70_108] : memref<192xf32, #tpu.memory_space<smem>>
    %809 = vector.broadcast %808 : f32 to vector<2x8xf32>
    %810 = arith.mulf %809, %526 : vector<2x8xf32>
    %811 = arith.addf %807, %810 : vector<2x8xf32>
    %c50_109 = arith.constant 50 : index
    %812 = memref.load %arg4[%c50_109] : memref<192xf32, #tpu.memory_space<smem>>
    %813 = vector.broadcast %812 : f32 to vector<2x8xf32>
    %814 = arith.mulf %813, %528 : vector<2x8xf32>
    %815 = arith.addf %811, %814 : vector<2x8xf32>
    %c53_110 = arith.constant 53 : index
    %816 = memref.load %arg4[%c53_110] : memref<192xf32, #tpu.memory_space<smem>>
    %817 = vector.broadcast %816 : f32 to vector<2x8xf32>
    %818 = arith.mulf %817, %530 : vector<2x8xf32>
    %819 = arith.addf %815, %818 : vector<2x8xf32>
    %c56_111 = arith.constant 56 : index
    %820 = memref.load %arg4[%c56_111] : memref<192xf32, #tpu.memory_space<smem>>
    %821 = vector.broadcast %820 : f32 to vector<2x8xf32>
    %822 = arith.mulf %821, %532 : vector<2x8xf32>
    %823 = arith.addf %819, %822 : vector<2x8xf32>
    %c59_112 = arith.constant 59 : index
    %824 = memref.load %arg4[%c59_112] : memref<192xf32, #tpu.memory_space<smem>>
    %825 = vector.broadcast %824 : f32 to vector<2x8xf32>
    %826 = arith.mulf %825, %534 : vector<2x8xf32>
    %827 = arith.addf %823, %826 : vector<2x8xf32>
    %c62_113 = arith.constant 62 : index
    %828 = memref.load %arg4[%c62_113] : memref<192xf32, #tpu.memory_space<smem>>
    %829 = vector.broadcast %828 : f32 to vector<2x8xf32>
    %830 = arith.mulf %829, %536 : vector<2x8xf32>
    %831 = arith.addf %827, %830 : vector<2x8xf32>
    %c65_114 = arith.constant 65 : index
    %832 = memref.load %arg4[%c65_114] : memref<192xf32, #tpu.memory_space<smem>>
    %833 = vector.broadcast %832 : f32 to vector<2x8xf32>
    %834 = arith.mulf %833, %538 : vector<2x8xf32>
    %835 = arith.addf %831, %834 : vector<2x8xf32>
    %c68_115 = arith.constant 68 : index
    %836 = memref.load %arg4[%c68_115] : memref<192xf32, #tpu.memory_space<smem>>
    %837 = vector.broadcast %836 : f32 to vector<2x8xf32>
    %838 = arith.mulf %837, %540 : vector<2x8xf32>
    %839 = arith.addf %835, %838 : vector<2x8xf32>
    %c71_116 = arith.constant 71 : index
    %840 = memref.load %arg4[%c71_116] : memref<192xf32, #tpu.memory_space<smem>>
    %841 = vector.broadcast %840 : f32 to vector<2x8xf32>
    %842 = arith.mulf %841, %542 : vector<2x8xf32>
    %843 = arith.addf %839, %842 : vector<2x8xf32>
    %c2_117 = arith.constant 2 : index
    %844 = memref.load %arg5[%c2_117] : memref<8xf32, #tpu.memory_space<smem>>
    %845 = vector.broadcast %844 : f32 to vector<2x8xf32>
    %846 = arith.addf %843, %845 : vector<2x8xf32>
    %cst_118 = arith.constant 0.000000e+00 : f32
    %847 = vector.broadcast %cst_118 : f32 to vector<2x8xf32>
    %848 = arith.maximumf %846, %847 : vector<2x8xf32>
    %cst_119 = arith.constant 0.000000e+00 : f32
    %849 = vector.broadcast %cst_119 : f32 to vector<2x8xf32>
    %c72_120 = arith.constant 72 : index
    %850 = memref.load %arg4[%c72_120] : memref<192xf32, #tpu.memory_space<smem>>
    %851 = vector.broadcast %850 : f32 to vector<2x8xf32>
    %852 = arith.mulf %851, %496 : vector<2x8xf32>
    %853 = arith.addf %849, %852 : vector<2x8xf32>
    %c75_121 = arith.constant 75 : index
    %854 = memref.load %arg4[%c75_121] : memref<192xf32, #tpu.memory_space<smem>>
    %855 = vector.broadcast %854 : f32 to vector<2x8xf32>
    %856 = arith.mulf %855, %498 : vector<2x8xf32>
    %857 = arith.addf %853, %856 : vector<2x8xf32>
    %c78_122 = arith.constant 78 : index
    %858 = memref.load %arg4[%c78_122] : memref<192xf32, #tpu.memory_space<smem>>
    %859 = vector.broadcast %858 : f32 to vector<2x8xf32>
    %860 = arith.mulf %859, %500 : vector<2x8xf32>
    %861 = arith.addf %857, %860 : vector<2x8xf32>
    %c81_123 = arith.constant 81 : index
    %862 = memref.load %arg4[%c81_123] : memref<192xf32, #tpu.memory_space<smem>>
    %863 = vector.broadcast %862 : f32 to vector<2x8xf32>
    %864 = arith.mulf %863, %502 : vector<2x8xf32>
    %865 = arith.addf %861, %864 : vector<2x8xf32>
    %c84_124 = arith.constant 84 : index
    %866 = memref.load %arg4[%c84_124] : memref<192xf32, #tpu.memory_space<smem>>
    %867 = vector.broadcast %866 : f32 to vector<2x8xf32>
    %868 = arith.mulf %867, %504 : vector<2x8xf32>
    %869 = arith.addf %865, %868 : vector<2x8xf32>
    %c87_125 = arith.constant 87 : index
    %870 = memref.load %arg4[%c87_125] : memref<192xf32, #tpu.memory_space<smem>>
    %871 = vector.broadcast %870 : f32 to vector<2x8xf32>
    %872 = arith.mulf %871, %506 : vector<2x8xf32>
    %873 = arith.addf %869, %872 : vector<2x8xf32>
    %c90_126 = arith.constant 90 : index
    %874 = memref.load %arg4[%c90_126] : memref<192xf32, #tpu.memory_space<smem>>
    %875 = vector.broadcast %874 : f32 to vector<2x8xf32>
    %876 = arith.mulf %875, %508 : vector<2x8xf32>
    %877 = arith.addf %873, %876 : vector<2x8xf32>
    %c93_127 = arith.constant 93 : index
    %878 = memref.load %arg4[%c93_127] : memref<192xf32, #tpu.memory_space<smem>>
    %879 = vector.broadcast %878 : f32 to vector<2x8xf32>
    %880 = arith.mulf %879, %510 : vector<2x8xf32>
    %881 = arith.addf %877, %880 : vector<2x8xf32>
    %c73_128 = arith.constant 73 : index
    %882 = memref.load %arg4[%c73_128] : memref<192xf32, #tpu.memory_space<smem>>
    %883 = vector.broadcast %882 : f32 to vector<2x8xf32>
    %884 = arith.mulf %883, %512 : vector<2x8xf32>
    %885 = arith.addf %881, %884 : vector<2x8xf32>
    %c76_129 = arith.constant 76 : index
    %886 = memref.load %arg4[%c76_129] : memref<192xf32, #tpu.memory_space<smem>>
    %887 = vector.broadcast %886 : f32 to vector<2x8xf32>
    %888 = arith.mulf %887, %514 : vector<2x8xf32>
    %889 = arith.addf %885, %888 : vector<2x8xf32>
    %c79_130 = arith.constant 79 : index
    %890 = memref.load %arg4[%c79_130] : memref<192xf32, #tpu.memory_space<smem>>
    %891 = vector.broadcast %890 : f32 to vector<2x8xf32>
    %892 = arith.mulf %891, %516 : vector<2x8xf32>
    %893 = arith.addf %889, %892 : vector<2x8xf32>
    %c82_131 = arith.constant 82 : index
    %894 = memref.load %arg4[%c82_131] : memref<192xf32, #tpu.memory_space<smem>>
    %895 = vector.broadcast %894 : f32 to vector<2x8xf32>
    %896 = arith.mulf %895, %518 : vector<2x8xf32>
    %897 = arith.addf %893, %896 : vector<2x8xf32>
    %c85_132 = arith.constant 85 : index
    %898 = memref.load %arg4[%c85_132] : memref<192xf32, #tpu.memory_space<smem>>
    %899 = vector.broadcast %898 : f32 to vector<2x8xf32>
    %900 = arith.mulf %899, %520 : vector<2x8xf32>
    %901 = arith.addf %897, %900 : vector<2x8xf32>
    %c88_133 = arith.constant 88 : index
    %902 = memref.load %arg4[%c88_133] : memref<192xf32, #tpu.memory_space<smem>>
    %903 = vector.broadcast %902 : f32 to vector<2x8xf32>
    %904 = arith.mulf %903, %522 : vector<2x8xf32>
    %905 = arith.addf %901, %904 : vector<2x8xf32>
    %c91_134 = arith.constant 91 : index
    %906 = memref.load %arg4[%c91_134] : memref<192xf32, #tpu.memory_space<smem>>
    %907 = vector.broadcast %906 : f32 to vector<2x8xf32>
    %908 = arith.mulf %907, %524 : vector<2x8xf32>
    %909 = arith.addf %905, %908 : vector<2x8xf32>
    %c94_135 = arith.constant 94 : index
    %910 = memref.load %arg4[%c94_135] : memref<192xf32, #tpu.memory_space<smem>>
    %911 = vector.broadcast %910 : f32 to vector<2x8xf32>
    %912 = arith.mulf %911, %526 : vector<2x8xf32>
    %913 = arith.addf %909, %912 : vector<2x8xf32>
    %c74_136 = arith.constant 74 : index
    %914 = memref.load %arg4[%c74_136] : memref<192xf32, #tpu.memory_space<smem>>
    %915 = vector.broadcast %914 : f32 to vector<2x8xf32>
    %916 = arith.mulf %915, %528 : vector<2x8xf32>
    %917 = arith.addf %913, %916 : vector<2x8xf32>
    %c77_137 = arith.constant 77 : index
    %918 = memref.load %arg4[%c77_137] : memref<192xf32, #tpu.memory_space<smem>>
    %919 = vector.broadcast %918 : f32 to vector<2x8xf32>
    %920 = arith.mulf %919, %530 : vector<2x8xf32>
    %921 = arith.addf %917, %920 : vector<2x8xf32>
    %c80_138 = arith.constant 80 : index
    %922 = memref.load %arg4[%c80_138] : memref<192xf32, #tpu.memory_space<smem>>
    %923 = vector.broadcast %922 : f32 to vector<2x8xf32>
    %924 = arith.mulf %923, %532 : vector<2x8xf32>
    %925 = arith.addf %921, %924 : vector<2x8xf32>
    %c83_139 = arith.constant 83 : index
    %926 = memref.load %arg4[%c83_139] : memref<192xf32, #tpu.memory_space<smem>>
    %927 = vector.broadcast %926 : f32 to vector<2x8xf32>
    %928 = arith.mulf %927, %534 : vector<2x8xf32>
    %929 = arith.addf %925, %928 : vector<2x8xf32>
    %c86_140 = arith.constant 86 : index
    %930 = memref.load %arg4[%c86_140] : memref<192xf32, #tpu.memory_space<smem>>
    %931 = vector.broadcast %930 : f32 to vector<2x8xf32>
    %932 = arith.mulf %931, %536 : vector<2x8xf32>
    %933 = arith.addf %929, %932 : vector<2x8xf32>
    %c89_141 = arith.constant 89 : index
    %934 = memref.load %arg4[%c89_141] : memref<192xf32, #tpu.memory_space<smem>>
    %935 = vector.broadcast %934 : f32 to vector<2x8xf32>
    %936 = arith.mulf %935, %538 : vector<2x8xf32>
    %937 = arith.addf %933, %936 : vector<2x8xf32>
    %c92_142 = arith.constant 92 : index
    %938 = memref.load %arg4[%c92_142] : memref<192xf32, #tpu.memory_space<smem>>
    %939 = vector.broadcast %938 : f32 to vector<2x8xf32>
    %940 = arith.mulf %939, %540 : vector<2x8xf32>
    %941 = arith.addf %937, %940 : vector<2x8xf32>
    %c95_143 = arith.constant 95 : index
    %942 = memref.load %arg4[%c95_143] : memref<192xf32, #tpu.memory_space<smem>>
    %943 = vector.broadcast %942 : f32 to vector<2x8xf32>
    %944 = arith.mulf %943, %542 : vector<2x8xf32>
    %945 = arith.addf %941, %944 : vector<2x8xf32>
    %c3_144 = arith.constant 3 : index
    %946 = memref.load %arg5[%c3_144] : memref<8xf32, #tpu.memory_space<smem>>
    %947 = vector.broadcast %946 : f32 to vector<2x8xf32>
    %948 = arith.addf %945, %947 : vector<2x8xf32>
    %cst_145 = arith.constant 0.000000e+00 : f32
    %949 = vector.broadcast %cst_145 : f32 to vector<2x8xf32>
    %950 = arith.maximumf %948, %949 : vector<2x8xf32>
    %cst_146 = arith.constant 0.000000e+00 : f32
    %951 = vector.broadcast %cst_146 : f32 to vector<2x8xf32>
    %c96 = arith.constant 96 : index
    %952 = memref.load %arg4[%c96] : memref<192xf32, #tpu.memory_space<smem>>
    %953 = vector.broadcast %952 : f32 to vector<2x8xf32>
    %954 = arith.mulf %953, %496 : vector<2x8xf32>
    %955 = arith.addf %951, %954 : vector<2x8xf32>
    %c99 = arith.constant 99 : index
    %956 = memref.load %arg4[%c99] : memref<192xf32, #tpu.memory_space<smem>>
    %957 = vector.broadcast %956 : f32 to vector<2x8xf32>
    %958 = arith.mulf %957, %498 : vector<2x8xf32>
    %959 = arith.addf %955, %958 : vector<2x8xf32>
    %c102 = arith.constant 102 : index
    %960 = memref.load %arg4[%c102] : memref<192xf32, #tpu.memory_space<smem>>
    %961 = vector.broadcast %960 : f32 to vector<2x8xf32>
    %962 = arith.mulf %961, %500 : vector<2x8xf32>
    %963 = arith.addf %959, %962 : vector<2x8xf32>
    %c105 = arith.constant 105 : index
    %964 = memref.load %arg4[%c105] : memref<192xf32, #tpu.memory_space<smem>>
    %965 = vector.broadcast %964 : f32 to vector<2x8xf32>
    %966 = arith.mulf %965, %502 : vector<2x8xf32>
    %967 = arith.addf %963, %966 : vector<2x8xf32>
    %c108 = arith.constant 108 : index
    %968 = memref.load %arg4[%c108] : memref<192xf32, #tpu.memory_space<smem>>
    %969 = vector.broadcast %968 : f32 to vector<2x8xf32>
    %970 = arith.mulf %969, %504 : vector<2x8xf32>
    %971 = arith.addf %967, %970 : vector<2x8xf32>
    %c111 = arith.constant 111 : index
    %972 = memref.load %arg4[%c111] : memref<192xf32, #tpu.memory_space<smem>>
    %973 = vector.broadcast %972 : f32 to vector<2x8xf32>
    %974 = arith.mulf %973, %506 : vector<2x8xf32>
    %975 = arith.addf %971, %974 : vector<2x8xf32>
    %c114 = arith.constant 114 : index
    %976 = memref.load %arg4[%c114] : memref<192xf32, #tpu.memory_space<smem>>
    %977 = vector.broadcast %976 : f32 to vector<2x8xf32>
    %978 = arith.mulf %977, %508 : vector<2x8xf32>
    %979 = arith.addf %975, %978 : vector<2x8xf32>
    %c117 = arith.constant 117 : index
    %980 = memref.load %arg4[%c117] : memref<192xf32, #tpu.memory_space<smem>>
    %981 = vector.broadcast %980 : f32 to vector<2x8xf32>
    %982 = arith.mulf %981, %510 : vector<2x8xf32>
    %983 = arith.addf %979, %982 : vector<2x8xf32>
    %c97 = arith.constant 97 : index
    %984 = memref.load %arg4[%c97] : memref<192xf32, #tpu.memory_space<smem>>
    %985 = vector.broadcast %984 : f32 to vector<2x8xf32>
    %986 = arith.mulf %985, %512 : vector<2x8xf32>
    %987 = arith.addf %983, %986 : vector<2x8xf32>
    %c100 = arith.constant 100 : index
    %988 = memref.load %arg4[%c100] : memref<192xf32, #tpu.memory_space<smem>>
    %989 = vector.broadcast %988 : f32 to vector<2x8xf32>
    %990 = arith.mulf %989, %514 : vector<2x8xf32>
    %991 = arith.addf %987, %990 : vector<2x8xf32>
    %c103 = arith.constant 103 : index
    %992 = memref.load %arg4[%c103] : memref<192xf32, #tpu.memory_space<smem>>
    %993 = vector.broadcast %992 : f32 to vector<2x8xf32>
    %994 = arith.mulf %993, %516 : vector<2x8xf32>
    %995 = arith.addf %991, %994 : vector<2x8xf32>
    %c106 = arith.constant 106 : index
    %996 = memref.load %arg4[%c106] : memref<192xf32, #tpu.memory_space<smem>>
    %997 = vector.broadcast %996 : f32 to vector<2x8xf32>
    %998 = arith.mulf %997, %518 : vector<2x8xf32>
    %999 = arith.addf %995, %998 : vector<2x8xf32>
    %c109 = arith.constant 109 : index
    %1000 = memref.load %arg4[%c109] : memref<192xf32, #tpu.memory_space<smem>>
    %1001 = vector.broadcast %1000 : f32 to vector<2x8xf32>
    %1002 = arith.mulf %1001, %520 : vector<2x8xf32>
    %1003 = arith.addf %999, %1002 : vector<2x8xf32>
    %c112 = arith.constant 112 : index
    %1004 = memref.load %arg4[%c112] : memref<192xf32, #tpu.memory_space<smem>>
    %1005 = vector.broadcast %1004 : f32 to vector<2x8xf32>
    %1006 = arith.mulf %1005, %522 : vector<2x8xf32>
    %1007 = arith.addf %1003, %1006 : vector<2x8xf32>
    %c115 = arith.constant 115 : index
    %1008 = memref.load %arg4[%c115] : memref<192xf32, #tpu.memory_space<smem>>
    %1009 = vector.broadcast %1008 : f32 to vector<2x8xf32>
    %1010 = arith.mulf %1009, %524 : vector<2x8xf32>
    %1011 = arith.addf %1007, %1010 : vector<2x8xf32>
    %c118 = arith.constant 118 : index
    %1012 = memref.load %arg4[%c118] : memref<192xf32, #tpu.memory_space<smem>>
    %1013 = vector.broadcast %1012 : f32 to vector<2x8xf32>
    %1014 = arith.mulf %1013, %526 : vector<2x8xf32>
    %1015 = arith.addf %1011, %1014 : vector<2x8xf32>
    %c98 = arith.constant 98 : index
    %1016 = memref.load %arg4[%c98] : memref<192xf32, #tpu.memory_space<smem>>
    %1017 = vector.broadcast %1016 : f32 to vector<2x8xf32>
    %1018 = arith.mulf %1017, %528 : vector<2x8xf32>
    %1019 = arith.addf %1015, %1018 : vector<2x8xf32>
    %c101 = arith.constant 101 : index
    %1020 = memref.load %arg4[%c101] : memref<192xf32, #tpu.memory_space<smem>>
    %1021 = vector.broadcast %1020 : f32 to vector<2x8xf32>
    %1022 = arith.mulf %1021, %530 : vector<2x8xf32>
    %1023 = arith.addf %1019, %1022 : vector<2x8xf32>
    %c104 = arith.constant 104 : index
    %1024 = memref.load %arg4[%c104] : memref<192xf32, #tpu.memory_space<smem>>
    %1025 = vector.broadcast %1024 : f32 to vector<2x8xf32>
    %1026 = arith.mulf %1025, %532 : vector<2x8xf32>
    %1027 = arith.addf %1023, %1026 : vector<2x8xf32>
    %c107 = arith.constant 107 : index
    %1028 = memref.load %arg4[%c107] : memref<192xf32, #tpu.memory_space<smem>>
    %1029 = vector.broadcast %1028 : f32 to vector<2x8xf32>
    %1030 = arith.mulf %1029, %534 : vector<2x8xf32>
    %1031 = arith.addf %1027, %1030 : vector<2x8xf32>
    %c110 = arith.constant 110 : index
    %1032 = memref.load %arg4[%c110] : memref<192xf32, #tpu.memory_space<smem>>
    %1033 = vector.broadcast %1032 : f32 to vector<2x8xf32>
    %1034 = arith.mulf %1033, %536 : vector<2x8xf32>
    %1035 = arith.addf %1031, %1034 : vector<2x8xf32>
    %c113 = arith.constant 113 : index
    %1036 = memref.load %arg4[%c113] : memref<192xf32, #tpu.memory_space<smem>>
    %1037 = vector.broadcast %1036 : f32 to vector<2x8xf32>
    %1038 = arith.mulf %1037, %538 : vector<2x8xf32>
    %1039 = arith.addf %1035, %1038 : vector<2x8xf32>
    %c116 = arith.constant 116 : index
    %1040 = memref.load %arg4[%c116] : memref<192xf32, #tpu.memory_space<smem>>
    %1041 = vector.broadcast %1040 : f32 to vector<2x8xf32>
    %1042 = arith.mulf %1041, %540 : vector<2x8xf32>
    %1043 = arith.addf %1039, %1042 : vector<2x8xf32>
    %c119 = arith.constant 119 : index
    %1044 = memref.load %arg4[%c119] : memref<192xf32, #tpu.memory_space<smem>>
    %1045 = vector.broadcast %1044 : f32 to vector<2x8xf32>
    %1046 = arith.mulf %1045, %542 : vector<2x8xf32>
    %1047 = arith.addf %1043, %1046 : vector<2x8xf32>
    %c4_147 = arith.constant 4 : index
    %1048 = memref.load %arg5[%c4_147] : memref<8xf32, #tpu.memory_space<smem>>
    %1049 = vector.broadcast %1048 : f32 to vector<2x8xf32>
    %1050 = arith.addf %1047, %1049 : vector<2x8xf32>
    %cst_148 = arith.constant 0.000000e+00 : f32
    %1051 = vector.broadcast %cst_148 : f32 to vector<2x8xf32>
    %1052 = arith.maximumf %1050, %1051 : vector<2x8xf32>
    %cst_149 = arith.constant 0.000000e+00 : f32
    %1053 = vector.broadcast %cst_149 : f32 to vector<2x8xf32>
    %c120 = arith.constant 120 : index
    %1054 = memref.load %arg4[%c120] : memref<192xf32, #tpu.memory_space<smem>>
    %1055 = vector.broadcast %1054 : f32 to vector<2x8xf32>
    %1056 = arith.mulf %1055, %496 : vector<2x8xf32>
    %1057 = arith.addf %1053, %1056 : vector<2x8xf32>
    %c123 = arith.constant 123 : index
    %1058 = memref.load %arg4[%c123] : memref<192xf32, #tpu.memory_space<smem>>
    %1059 = vector.broadcast %1058 : f32 to vector<2x8xf32>
    %1060 = arith.mulf %1059, %498 : vector<2x8xf32>
    %1061 = arith.addf %1057, %1060 : vector<2x8xf32>
    %c126 = arith.constant 126 : index
    %1062 = memref.load %arg4[%c126] : memref<192xf32, #tpu.memory_space<smem>>
    %1063 = vector.broadcast %1062 : f32 to vector<2x8xf32>
    %1064 = arith.mulf %1063, %500 : vector<2x8xf32>
    %1065 = arith.addf %1061, %1064 : vector<2x8xf32>
    %c129 = arith.constant 129 : index
    %1066 = memref.load %arg4[%c129] : memref<192xf32, #tpu.memory_space<smem>>
    %1067 = vector.broadcast %1066 : f32 to vector<2x8xf32>
    %1068 = arith.mulf %1067, %502 : vector<2x8xf32>
    %1069 = arith.addf %1065, %1068 : vector<2x8xf32>
    %c132 = arith.constant 132 : index
    %1070 = memref.load %arg4[%c132] : memref<192xf32, #tpu.memory_space<smem>>
    %1071 = vector.broadcast %1070 : f32 to vector<2x8xf32>
    %1072 = arith.mulf %1071, %504 : vector<2x8xf32>
    %1073 = arith.addf %1069, %1072 : vector<2x8xf32>
    %c135 = arith.constant 135 : index
    %1074 = memref.load %arg4[%c135] : memref<192xf32, #tpu.memory_space<smem>>
    %1075 = vector.broadcast %1074 : f32 to vector<2x8xf32>
    %1076 = arith.mulf %1075, %506 : vector<2x8xf32>
    %1077 = arith.addf %1073, %1076 : vector<2x8xf32>
    %c138 = arith.constant 138 : index
    %1078 = memref.load %arg4[%c138] : memref<192xf32, #tpu.memory_space<smem>>
    %1079 = vector.broadcast %1078 : f32 to vector<2x8xf32>
    %1080 = arith.mulf %1079, %508 : vector<2x8xf32>
    %1081 = arith.addf %1077, %1080 : vector<2x8xf32>
    %c141 = arith.constant 141 : index
    %1082 = memref.load %arg4[%c141] : memref<192xf32, #tpu.memory_space<smem>>
    %1083 = vector.broadcast %1082 : f32 to vector<2x8xf32>
    %1084 = arith.mulf %1083, %510 : vector<2x8xf32>
    %1085 = arith.addf %1081, %1084 : vector<2x8xf32>
    %c121 = arith.constant 121 : index
    %1086 = memref.load %arg4[%c121] : memref<192xf32, #tpu.memory_space<smem>>
    %1087 = vector.broadcast %1086 : f32 to vector<2x8xf32>
    %1088 = arith.mulf %1087, %512 : vector<2x8xf32>
    %1089 = arith.addf %1085, %1088 : vector<2x8xf32>
    %c124 = arith.constant 124 : index
    %1090 = memref.load %arg4[%c124] : memref<192xf32, #tpu.memory_space<smem>>
    %1091 = vector.broadcast %1090 : f32 to vector<2x8xf32>
    %1092 = arith.mulf %1091, %514 : vector<2x8xf32>
    %1093 = arith.addf %1089, %1092 : vector<2x8xf32>
    %c127 = arith.constant 127 : index
    %1094 = memref.load %arg4[%c127] : memref<192xf32, #tpu.memory_space<smem>>
    %1095 = vector.broadcast %1094 : f32 to vector<2x8xf32>
    %1096 = arith.mulf %1095, %516 : vector<2x8xf32>
    %1097 = arith.addf %1093, %1096 : vector<2x8xf32>
    %c130 = arith.constant 130 : index
    %1098 = memref.load %arg4[%c130] : memref<192xf32, #tpu.memory_space<smem>>
    %1099 = vector.broadcast %1098 : f32 to vector<2x8xf32>
    %1100 = arith.mulf %1099, %518 : vector<2x8xf32>
    %1101 = arith.addf %1097, %1100 : vector<2x8xf32>
    %c133 = arith.constant 133 : index
    %1102 = memref.load %arg4[%c133] : memref<192xf32, #tpu.memory_space<smem>>
    %1103 = vector.broadcast %1102 : f32 to vector<2x8xf32>
    %1104 = arith.mulf %1103, %520 : vector<2x8xf32>
    %1105 = arith.addf %1101, %1104 : vector<2x8xf32>
    %c136 = arith.constant 136 : index
    %1106 = memref.load %arg4[%c136] : memref<192xf32, #tpu.memory_space<smem>>
    %1107 = vector.broadcast %1106 : f32 to vector<2x8xf32>
    %1108 = arith.mulf %1107, %522 : vector<2x8xf32>
    %1109 = arith.addf %1105, %1108 : vector<2x8xf32>
    %c139 = arith.constant 139 : index
    %1110 = memref.load %arg4[%c139] : memref<192xf32, #tpu.memory_space<smem>>
    %1111 = vector.broadcast %1110 : f32 to vector<2x8xf32>
    %1112 = arith.mulf %1111, %524 : vector<2x8xf32>
    %1113 = arith.addf %1109, %1112 : vector<2x8xf32>
    %c142 = arith.constant 142 : index
    %1114 = memref.load %arg4[%c142] : memref<192xf32, #tpu.memory_space<smem>>
    %1115 = vector.broadcast %1114 : f32 to vector<2x8xf32>
    %1116 = arith.mulf %1115, %526 : vector<2x8xf32>
    %1117 = arith.addf %1113, %1116 : vector<2x8xf32>
    %c122 = arith.constant 122 : index
    %1118 = memref.load %arg4[%c122] : memref<192xf32, #tpu.memory_space<smem>>
    %1119 = vector.broadcast %1118 : f32 to vector<2x8xf32>
    %1120 = arith.mulf %1119, %528 : vector<2x8xf32>
    %1121 = arith.addf %1117, %1120 : vector<2x8xf32>
    %c125 = arith.constant 125 : index
    %1122 = memref.load %arg4[%c125] : memref<192xf32, #tpu.memory_space<smem>>
    %1123 = vector.broadcast %1122 : f32 to vector<2x8xf32>
    %1124 = arith.mulf %1123, %530 : vector<2x8xf32>
    %1125 = arith.addf %1121, %1124 : vector<2x8xf32>
    %c128 = arith.constant 128 : index
    %1126 = memref.load %arg4[%c128] : memref<192xf32, #tpu.memory_space<smem>>
    %1127 = vector.broadcast %1126 : f32 to vector<2x8xf32>
    %1128 = arith.mulf %1127, %532 : vector<2x8xf32>
    %1129 = arith.addf %1125, %1128 : vector<2x8xf32>
    %c131 = arith.constant 131 : index
    %1130 = memref.load %arg4[%c131] : memref<192xf32, #tpu.memory_space<smem>>
    %1131 = vector.broadcast %1130 : f32 to vector<2x8xf32>
    %1132 = arith.mulf %1131, %534 : vector<2x8xf32>
    %1133 = arith.addf %1129, %1132 : vector<2x8xf32>
    %c134 = arith.constant 134 : index
    %1134 = memref.load %arg4[%c134] : memref<192xf32, #tpu.memory_space<smem>>
    %1135 = vector.broadcast %1134 : f32 to vector<2x8xf32>
    %1136 = arith.mulf %1135, %536 : vector<2x8xf32>
    %1137 = arith.addf %1133, %1136 : vector<2x8xf32>
    %c137 = arith.constant 137 : index
    %1138 = memref.load %arg4[%c137] : memref<192xf32, #tpu.memory_space<smem>>
    %1139 = vector.broadcast %1138 : f32 to vector<2x8xf32>
    %1140 = arith.mulf %1139, %538 : vector<2x8xf32>
    %1141 = arith.addf %1137, %1140 : vector<2x8xf32>
    %c140 = arith.constant 140 : index
    %1142 = memref.load %arg4[%c140] : memref<192xf32, #tpu.memory_space<smem>>
    %1143 = vector.broadcast %1142 : f32 to vector<2x8xf32>
    %1144 = arith.mulf %1143, %540 : vector<2x8xf32>
    %1145 = arith.addf %1141, %1144 : vector<2x8xf32>
    %c143 = arith.constant 143 : index
    %1146 = memref.load %arg4[%c143] : memref<192xf32, #tpu.memory_space<smem>>
    %1147 = vector.broadcast %1146 : f32 to vector<2x8xf32>
    %1148 = arith.mulf %1147, %542 : vector<2x8xf32>
    %1149 = arith.addf %1145, %1148 : vector<2x8xf32>
    %c5_150 = arith.constant 5 : index
    %1150 = memref.load %arg5[%c5_150] : memref<8xf32, #tpu.memory_space<smem>>
    %1151 = vector.broadcast %1150 : f32 to vector<2x8xf32>
    %1152 = arith.addf %1149, %1151 : vector<2x8xf32>
    %cst_151 = arith.constant 0.000000e+00 : f32
    %1153 = vector.broadcast %cst_151 : f32 to vector<2x8xf32>
    %1154 = arith.maximumf %1152, %1153 : vector<2x8xf32>
    %cst_152 = arith.constant 0.000000e+00 : f32
    %1155 = vector.broadcast %cst_152 : f32 to vector<2x8xf32>
    %c144 = arith.constant 144 : index
    %1156 = memref.load %arg4[%c144] : memref<192xf32, #tpu.memory_space<smem>>
    %1157 = vector.broadcast %1156 : f32 to vector<2x8xf32>
    %1158 = arith.mulf %1157, %496 : vector<2x8xf32>
    %1159 = arith.addf %1155, %1158 : vector<2x8xf32>
    %c147 = arith.constant 147 : index
    %1160 = memref.load %arg4[%c147] : memref<192xf32, #tpu.memory_space<smem>>
    %1161 = vector.broadcast %1160 : f32 to vector<2x8xf32>
    %1162 = arith.mulf %1161, %498 : vector<2x8xf32>
    %1163 = arith.addf %1159, %1162 : vector<2x8xf32>
    %c150 = arith.constant 150 : index
    %1164 = memref.load %arg4[%c150] : memref<192xf32, #tpu.memory_space<smem>>
    %1165 = vector.broadcast %1164 : f32 to vector<2x8xf32>
    %1166 = arith.mulf %1165, %500 : vector<2x8xf32>
    %1167 = arith.addf %1163, %1166 : vector<2x8xf32>
    %c153 = arith.constant 153 : index
    %1168 = memref.load %arg4[%c153] : memref<192xf32, #tpu.memory_space<smem>>
    %1169 = vector.broadcast %1168 : f32 to vector<2x8xf32>
    %1170 = arith.mulf %1169, %502 : vector<2x8xf32>
    %1171 = arith.addf %1167, %1170 : vector<2x8xf32>
    %c156 = arith.constant 156 : index
    %1172 = memref.load %arg4[%c156] : memref<192xf32, #tpu.memory_space<smem>>
    %1173 = vector.broadcast %1172 : f32 to vector<2x8xf32>
    %1174 = arith.mulf %1173, %504 : vector<2x8xf32>
    %1175 = arith.addf %1171, %1174 : vector<2x8xf32>
    %c159 = arith.constant 159 : index
    %1176 = memref.load %arg4[%c159] : memref<192xf32, #tpu.memory_space<smem>>
    %1177 = vector.broadcast %1176 : f32 to vector<2x8xf32>
    %1178 = arith.mulf %1177, %506 : vector<2x8xf32>
    %1179 = arith.addf %1175, %1178 : vector<2x8xf32>
    %c162 = arith.constant 162 : index
    %1180 = memref.load %arg4[%c162] : memref<192xf32, #tpu.memory_space<smem>>
    %1181 = vector.broadcast %1180 : f32 to vector<2x8xf32>
    %1182 = arith.mulf %1181, %508 : vector<2x8xf32>
    %1183 = arith.addf %1179, %1182 : vector<2x8xf32>
    %c165 = arith.constant 165 : index
    %1184 = memref.load %arg4[%c165] : memref<192xf32, #tpu.memory_space<smem>>
    %1185 = vector.broadcast %1184 : f32 to vector<2x8xf32>
    %1186 = arith.mulf %1185, %510 : vector<2x8xf32>
    %1187 = arith.addf %1183, %1186 : vector<2x8xf32>
    %c145 = arith.constant 145 : index
    %1188 = memref.load %arg4[%c145] : memref<192xf32, #tpu.memory_space<smem>>
    %1189 = vector.broadcast %1188 : f32 to vector<2x8xf32>
    %1190 = arith.mulf %1189, %512 : vector<2x8xf32>
    %1191 = arith.addf %1187, %1190 : vector<2x8xf32>
    %c148 = arith.constant 148 : index
    %1192 = memref.load %arg4[%c148] : memref<192xf32, #tpu.memory_space<smem>>
    %1193 = vector.broadcast %1192 : f32 to vector<2x8xf32>
    %1194 = arith.mulf %1193, %514 : vector<2x8xf32>
    %1195 = arith.addf %1191, %1194 : vector<2x8xf32>
    %c151 = arith.constant 151 : index
    %1196 = memref.load %arg4[%c151] : memref<192xf32, #tpu.memory_space<smem>>
    %1197 = vector.broadcast %1196 : f32 to vector<2x8xf32>
    %1198 = arith.mulf %1197, %516 : vector<2x8xf32>
    %1199 = arith.addf %1195, %1198 : vector<2x8xf32>
    %c154 = arith.constant 154 : index
    %1200 = memref.load %arg4[%c154] : memref<192xf32, #tpu.memory_space<smem>>
    %1201 = vector.broadcast %1200 : f32 to vector<2x8xf32>
    %1202 = arith.mulf %1201, %518 : vector<2x8xf32>
    %1203 = arith.addf %1199, %1202 : vector<2x8xf32>
    %c157 = arith.constant 157 : index
    %1204 = memref.load %arg4[%c157] : memref<192xf32, #tpu.memory_space<smem>>
    %1205 = vector.broadcast %1204 : f32 to vector<2x8xf32>
    %1206 = arith.mulf %1205, %520 : vector<2x8xf32>
    %1207 = arith.addf %1203, %1206 : vector<2x8xf32>
    %c160 = arith.constant 160 : index
    %1208 = memref.load %arg4[%c160] : memref<192xf32, #tpu.memory_space<smem>>
    %1209 = vector.broadcast %1208 : f32 to vector<2x8xf32>
    %1210 = arith.mulf %1209, %522 : vector<2x8xf32>
    %1211 = arith.addf %1207, %1210 : vector<2x8xf32>
    %c163 = arith.constant 163 : index
    %1212 = memref.load %arg4[%c163] : memref<192xf32, #tpu.memory_space<smem>>
    %1213 = vector.broadcast %1212 : f32 to vector<2x8xf32>
    %1214 = arith.mulf %1213, %524 : vector<2x8xf32>
    %1215 = arith.addf %1211, %1214 : vector<2x8xf32>
    %c166 = arith.constant 166 : index
    %1216 = memref.load %arg4[%c166] : memref<192xf32, #tpu.memory_space<smem>>
    %1217 = vector.broadcast %1216 : f32 to vector<2x8xf32>
    %1218 = arith.mulf %1217, %526 : vector<2x8xf32>
    %1219 = arith.addf %1215, %1218 : vector<2x8xf32>
    %c146 = arith.constant 146 : index
    %1220 = memref.load %arg4[%c146] : memref<192xf32, #tpu.memory_space<smem>>
    %1221 = vector.broadcast %1220 : f32 to vector<2x8xf32>
    %1222 = arith.mulf %1221, %528 : vector<2x8xf32>
    %1223 = arith.addf %1219, %1222 : vector<2x8xf32>
    %c149 = arith.constant 149 : index
    %1224 = memref.load %arg4[%c149] : memref<192xf32, #tpu.memory_space<smem>>
    %1225 = vector.broadcast %1224 : f32 to vector<2x8xf32>
    %1226 = arith.mulf %1225, %530 : vector<2x8xf32>
    %1227 = arith.addf %1223, %1226 : vector<2x8xf32>
    %c152 = arith.constant 152 : index
    %1228 = memref.load %arg4[%c152] : memref<192xf32, #tpu.memory_space<smem>>
    %1229 = vector.broadcast %1228 : f32 to vector<2x8xf32>
    %1230 = arith.mulf %1229, %532 : vector<2x8xf32>
    %1231 = arith.addf %1227, %1230 : vector<2x8xf32>
    %c155 = arith.constant 155 : index
    %1232 = memref.load %arg4[%c155] : memref<192xf32, #tpu.memory_space<smem>>
    %1233 = vector.broadcast %1232 : f32 to vector<2x8xf32>
    %1234 = arith.mulf %1233, %534 : vector<2x8xf32>
    %1235 = arith.addf %1231, %1234 : vector<2x8xf32>
    %c158 = arith.constant 158 : index
    %1236 = memref.load %arg4[%c158] : memref<192xf32, #tpu.memory_space<smem>>
    %1237 = vector.broadcast %1236 : f32 to vector<2x8xf32>
    %1238 = arith.mulf %1237, %536 : vector<2x8xf32>
    %1239 = arith.addf %1235, %1238 : vector<2x8xf32>
    %c161 = arith.constant 161 : index
    %1240 = memref.load %arg4[%c161] : memref<192xf32, #tpu.memory_space<smem>>
    %1241 = vector.broadcast %1240 : f32 to vector<2x8xf32>
    %1242 = arith.mulf %1241, %538 : vector<2x8xf32>
    %1243 = arith.addf %1239, %1242 : vector<2x8xf32>
    %c164 = arith.constant 164 : index
    %1244 = memref.load %arg4[%c164] : memref<192xf32, #tpu.memory_space<smem>>
    %1245 = vector.broadcast %1244 : f32 to vector<2x8xf32>
    %1246 = arith.mulf %1245, %540 : vector<2x8xf32>
    %1247 = arith.addf %1243, %1246 : vector<2x8xf32>
    %c167 = arith.constant 167 : index
    %1248 = memref.load %arg4[%c167] : memref<192xf32, #tpu.memory_space<smem>>
    %1249 = vector.broadcast %1248 : f32 to vector<2x8xf32>
    %1250 = arith.mulf %1249, %542 : vector<2x8xf32>
    %1251 = arith.addf %1247, %1250 : vector<2x8xf32>
    %c6_153 = arith.constant 6 : index
    %1252 = memref.load %arg5[%c6_153] : memref<8xf32, #tpu.memory_space<smem>>
    %1253 = vector.broadcast %1252 : f32 to vector<2x8xf32>
    %1254 = arith.addf %1251, %1253 : vector<2x8xf32>
    %cst_154 = arith.constant 0.000000e+00 : f32
    %1255 = vector.broadcast %cst_154 : f32 to vector<2x8xf32>
    %1256 = arith.maximumf %1254, %1255 : vector<2x8xf32>
    %cst_155 = arith.constant 0.000000e+00 : f32
    %1257 = vector.broadcast %cst_155 : f32 to vector<2x8xf32>
    %c168 = arith.constant 168 : index
    %1258 = memref.load %arg4[%c168] : memref<192xf32, #tpu.memory_space<smem>>
    %1259 = vector.broadcast %1258 : f32 to vector<2x8xf32>
    %1260 = arith.mulf %1259, %496 : vector<2x8xf32>
    %1261 = arith.addf %1257, %1260 : vector<2x8xf32>
    %c171 = arith.constant 171 : index
    %1262 = memref.load %arg4[%c171] : memref<192xf32, #tpu.memory_space<smem>>
    %1263 = vector.broadcast %1262 : f32 to vector<2x8xf32>
    %1264 = arith.mulf %1263, %498 : vector<2x8xf32>
    %1265 = arith.addf %1261, %1264 : vector<2x8xf32>
    %c174 = arith.constant 174 : index
    %1266 = memref.load %arg4[%c174] : memref<192xf32, #tpu.memory_space<smem>>
    %1267 = vector.broadcast %1266 : f32 to vector<2x8xf32>
    %1268 = arith.mulf %1267, %500 : vector<2x8xf32>
    %1269 = arith.addf %1265, %1268 : vector<2x8xf32>
    %c177 = arith.constant 177 : index
    %1270 = memref.load %arg4[%c177] : memref<192xf32, #tpu.memory_space<smem>>
    %1271 = vector.broadcast %1270 : f32 to vector<2x8xf32>
    %1272 = arith.mulf %1271, %502 : vector<2x8xf32>
    %1273 = arith.addf %1269, %1272 : vector<2x8xf32>
    %c180 = arith.constant 180 : index
    %1274 = memref.load %arg4[%c180] : memref<192xf32, #tpu.memory_space<smem>>
    %1275 = vector.broadcast %1274 : f32 to vector<2x8xf32>
    %1276 = arith.mulf %1275, %504 : vector<2x8xf32>
    %1277 = arith.addf %1273, %1276 : vector<2x8xf32>
    %c183 = arith.constant 183 : index
    %1278 = memref.load %arg4[%c183] : memref<192xf32, #tpu.memory_space<smem>>
    %1279 = vector.broadcast %1278 : f32 to vector<2x8xf32>
    %1280 = arith.mulf %1279, %506 : vector<2x8xf32>
    %1281 = arith.addf %1277, %1280 : vector<2x8xf32>
    %c186 = arith.constant 186 : index
    %1282 = memref.load %arg4[%c186] : memref<192xf32, #tpu.memory_space<smem>>
    %1283 = vector.broadcast %1282 : f32 to vector<2x8xf32>
    %1284 = arith.mulf %1283, %508 : vector<2x8xf32>
    %1285 = arith.addf %1281, %1284 : vector<2x8xf32>
    %c189 = arith.constant 189 : index
    %1286 = memref.load %arg4[%c189] : memref<192xf32, #tpu.memory_space<smem>>
    %1287 = vector.broadcast %1286 : f32 to vector<2x8xf32>
    %1288 = arith.mulf %1287, %510 : vector<2x8xf32>
    %1289 = arith.addf %1285, %1288 : vector<2x8xf32>
    %c169 = arith.constant 169 : index
    %1290 = memref.load %arg4[%c169] : memref<192xf32, #tpu.memory_space<smem>>
    %1291 = vector.broadcast %1290 : f32 to vector<2x8xf32>
    %1292 = arith.mulf %1291, %512 : vector<2x8xf32>
    %1293 = arith.addf %1289, %1292 : vector<2x8xf32>
    %c172 = arith.constant 172 : index
    %1294 = memref.load %arg4[%c172] : memref<192xf32, #tpu.memory_space<smem>>
    %1295 = vector.broadcast %1294 : f32 to vector<2x8xf32>
    %1296 = arith.mulf %1295, %514 : vector<2x8xf32>
    %1297 = arith.addf %1293, %1296 : vector<2x8xf32>
    %c175 = arith.constant 175 : index
    %1298 = memref.load %arg4[%c175] : memref<192xf32, #tpu.memory_space<smem>>
    %1299 = vector.broadcast %1298 : f32 to vector<2x8xf32>
    %1300 = arith.mulf %1299, %516 : vector<2x8xf32>
    %1301 = arith.addf %1297, %1300 : vector<2x8xf32>
    %c178 = arith.constant 178 : index
    %1302 = memref.load %arg4[%c178] : memref<192xf32, #tpu.memory_space<smem>>
    %1303 = vector.broadcast %1302 : f32 to vector<2x8xf32>
    %1304 = arith.mulf %1303, %518 : vector<2x8xf32>
    %1305 = arith.addf %1301, %1304 : vector<2x8xf32>
    %c181 = arith.constant 181 : index
    %1306 = memref.load %arg4[%c181] : memref<192xf32, #tpu.memory_space<smem>>
    %1307 = vector.broadcast %1306 : f32 to vector<2x8xf32>
    %1308 = arith.mulf %1307, %520 : vector<2x8xf32>
    %1309 = arith.addf %1305, %1308 : vector<2x8xf32>
    %c184 = arith.constant 184 : index
    %1310 = memref.load %arg4[%c184] : memref<192xf32, #tpu.memory_space<smem>>
    %1311 = vector.broadcast %1310 : f32 to vector<2x8xf32>
    %1312 = arith.mulf %1311, %522 : vector<2x8xf32>
    %1313 = arith.addf %1309, %1312 : vector<2x8xf32>
    %c187 = arith.constant 187 : index
    %1314 = memref.load %arg4[%c187] : memref<192xf32, #tpu.memory_space<smem>>
    %1315 = vector.broadcast %1314 : f32 to vector<2x8xf32>
    %1316 = arith.mulf %1315, %524 : vector<2x8xf32>
    %1317 = arith.addf %1313, %1316 : vector<2x8xf32>
    %c190 = arith.constant 190 : index
    %1318 = memref.load %arg4[%c190] : memref<192xf32, #tpu.memory_space<smem>>
    %1319 = vector.broadcast %1318 : f32 to vector<2x8xf32>
    %1320 = arith.mulf %1319, %526 : vector<2x8xf32>
    %1321 = arith.addf %1317, %1320 : vector<2x8xf32>
    %c170 = arith.constant 170 : index
    %1322 = memref.load %arg4[%c170] : memref<192xf32, #tpu.memory_space<smem>>
    %1323 = vector.broadcast %1322 : f32 to vector<2x8xf32>
    %1324 = arith.mulf %1323, %528 : vector<2x8xf32>
    %1325 = arith.addf %1321, %1324 : vector<2x8xf32>
    %c173 = arith.constant 173 : index
    %1326 = memref.load %arg4[%c173] : memref<192xf32, #tpu.memory_space<smem>>
    %1327 = vector.broadcast %1326 : f32 to vector<2x8xf32>
    %1328 = arith.mulf %1327, %530 : vector<2x8xf32>
    %1329 = arith.addf %1325, %1328 : vector<2x8xf32>
    %c176 = arith.constant 176 : index
    %1330 = memref.load %arg4[%c176] : memref<192xf32, #tpu.memory_space<smem>>
    %1331 = vector.broadcast %1330 : f32 to vector<2x8xf32>
    %1332 = arith.mulf %1331, %532 : vector<2x8xf32>
    %1333 = arith.addf %1329, %1332 : vector<2x8xf32>
    %c179 = arith.constant 179 : index
    %1334 = memref.load %arg4[%c179] : memref<192xf32, #tpu.memory_space<smem>>
    %1335 = vector.broadcast %1334 : f32 to vector<2x8xf32>
    %1336 = arith.mulf %1335, %534 : vector<2x8xf32>
    %1337 = arith.addf %1333, %1336 : vector<2x8xf32>
    %c182 = arith.constant 182 : index
    %1338 = memref.load %arg4[%c182] : memref<192xf32, #tpu.memory_space<smem>>
    %1339 = vector.broadcast %1338 : f32 to vector<2x8xf32>
    %1340 = arith.mulf %1339, %536 : vector<2x8xf32>
    %1341 = arith.addf %1337, %1340 : vector<2x8xf32>
    %c185 = arith.constant 185 : index
    %1342 = memref.load %arg4[%c185] : memref<192xf32, #tpu.memory_space<smem>>
    %1343 = vector.broadcast %1342 : f32 to vector<2x8xf32>
    %1344 = arith.mulf %1343, %538 : vector<2x8xf32>
    %1345 = arith.addf %1341, %1344 : vector<2x8xf32>
    %c188 = arith.constant 188 : index
    %1346 = memref.load %arg4[%c188] : memref<192xf32, #tpu.memory_space<smem>>
    %1347 = vector.broadcast %1346 : f32 to vector<2x8xf32>
    %1348 = arith.mulf %1347, %540 : vector<2x8xf32>
    %1349 = arith.addf %1345, %1348 : vector<2x8xf32>
    %c191 = arith.constant 191 : index
    %1350 = memref.load %arg4[%c191] : memref<192xf32, #tpu.memory_space<smem>>
    %1351 = vector.broadcast %1350 : f32 to vector<2x8xf32>
    %1352 = arith.mulf %1351, %542 : vector<2x8xf32>
    %1353 = arith.addf %1349, %1352 : vector<2x8xf32>
    %c7_156 = arith.constant 7 : index
    %1354 = memref.load %arg5[%c7_156] : memref<8xf32, #tpu.memory_space<smem>>
    %1355 = vector.broadcast %1354 : f32 to vector<2x8xf32>
    %1356 = arith.addf %1353, %1355 : vector<2x8xf32>
    %cst_157 = arith.constant 0.000000e+00 : f32
    %1357 = vector.broadcast %cst_157 : f32 to vector<2x8xf32>
    %1358 = arith.maximumf %1356, %1357 : vector<2x8xf32>
    %1359 = vector.shape_cast %644 : vector<2x8xf32> to vector<2x1x8xf32>
    %1360 = vector.shape_cast %746 : vector<2x8xf32> to vector<2x1x8xf32>
    %1361 = vector.shape_cast %848 : vector<2x8xf32> to vector<2x1x8xf32>
    %1362 = vector.shape_cast %950 : vector<2x8xf32> to vector<2x1x8xf32>
    %1363 = vector.shape_cast %1052 : vector<2x8xf32> to vector<2x1x8xf32>
    %1364 = vector.shape_cast %1154 : vector<2x8xf32> to vector<2x1x8xf32>
    %1365 = vector.shape_cast %1256 : vector<2x8xf32> to vector<2x1x8xf32>
    %1366 = vector.shape_cast %1358 : vector<2x8xf32> to vector<2x1x8xf32>
    %1367 = tpu.concatenate %1359, %1360, %1361, %1362, %1363, %1364, %1365, %1366 in 1 : vector<2x1x8xf32>, vector<2x1x8xf32>, vector<2x1x8xf32>, vector<2x1x8xf32>, vector<2x1x8xf32>, vector<2x1x8xf32>, vector<2x1x8xf32>, vector<2x1x8xf32> -> vector<2x8x8xf32>
    %c0_158 = arith.constant 0 : index
    %c0_159 = arith.constant 0 : index
    %c0_160 = arith.constant 0 : index
    %1368 = vector.load %arg6[%c0_158, %c0_159, %c0_160] : memref<2x8x8xf32, #tpu.memory_space<vmem>>, vector<2x8x8xf32>
    tpu.vector_store %arg6[%c0_158, %c0_159, %c0_160], %1367 {strides = array<i32>} : memref<2x8x8xf32, #tpu.memory_space<vmem>>, vector<2x8x8xf32>,
    return
  }
  func.func @transform_0(%arg0: i32) -> (i32, i32, i32) {
    %c0_i32 = arith.constant 0 : i32
    %c0_i32_0 = arith.constant 0 : i32
    %c0_i32_1 = arith.constant 0 : i32
    return %arg0, %c0_i32, %c0_i32_0 : i32, i32, i32
  }
  func.func @transform_1(%arg0: i32) -> i32 {
    %c0_i32 = arith.constant 0 : i32
    %c0_i32_0 = arith.constant 0 : i32
    return %c0_i32 : i32
  }
  func.func @transform_2(%arg0: i32) -> i32 {
    %c0_i32 = arith.constant 0 : i32
    %c0_i32_0 = arith.constant 0 : i32
    return %c0_i32 : i32
  }
  func.func @transform_3(%arg0: i32) -> i32 {
    %c0_i32 = arith.constant 0 : i32
    %c0_i32_0 = arith.constant 0 : i32
    return %c0_i32 : i32
  }
  func.func @transform_4(%arg0: i32) -> i32 {
    %c0_i32 = arith.constant 0 : i32
    %c0_i32_0 = arith.constant 0 : i32
    return %c0_i32 : i32
  }
  func.func @transform_5(%arg0: i32) -> (i32, i32, i32) {
    %c0_i32 = arith.constant 0 : i32
    %c0_i32_0 = arith.constant 0 : i32
    %c0_i32_1 = arith.constant 0 : i32
    return %arg0, %c0_i32, %c0_i32_0 : i32, i32, i32
  }
}

</mosaic_0001>

<llo_original>
// kernel: tpu_custom_call.1
$region0: #{tpu_custom_call.1}
  #allocation0 [shape = 'u32[]', space=smem, size = 0x4, offset = 0x4, fixed_abs, tag = 'smem constant byte address 0x4 - core index']
  #allocation1 [shape = 'u32[72,128]{1,0:T(1,128)}', space=vmem, size = 0x9000, scoped, tag = 'internal scratch']
  %s0 = inlined_call_operand.hbm [shape: f32[2,4,16], index: 0, kind: input, shape index: {}]
  %s1 = inlined_call_operand.hbm [shape: f32[96], index: 1, kind: input, shape index: {}]
  %s2 = inlined_call_operand.hbm [shape: f32[8], index: 2, kind: input, shape index: {}]
  %s3 = inlined_call_operand.vmem [shape: f32[192], index: 3, kind: input, shape index: {}]
  %s4 = inlined_call_operand.vmem [shape: f32[8], index: 4, kind: input, shape index: {}]
  %s5 = inlined_call_operand.hbm [shape: f32[2,8,8], index: 5, kind: output, shape index: {}]
  %s6 = sld [smem:[#allocation0]]
  $region50: #{tpu_custom_call.1} parent=0
    _
  %s8 = ssub.s32 1, %s6
  %s9 = scalar_select 0, %s8, %s6
  $region1: #{tpu_custom_call.1} parent=0
    #allocation2 [shape = 'u8[4096]{0}', space=vmem, size = 0x1000, scoped, tag = 'input window, operand 0, single buffered']
    #allocation3 [shape = 's32[1]{0}', space=sflag, size = 0x4, scoped, tag = 'scoped memory for tpu_custom_call.1']
    #allocation4 [shape = 's32[1]{0}', space=sflag, size = 0x4, scoped, tag = 'scoped memory for tpu_custom_call.1']
    #allocation5 [shape = 's32[1]{0}', space=sflag, size = 0x4, scoped, tag = 'scoped memory for tpu_custom_call.1']
    #allocation6 [shape = 's32[1]{0}', space=sflag, size = 0x4, scoped, tag = 'scoped memory for tpu_custom_call.1']
    #allocation7 [shape = 'u8[512]{0}', space=smem, size = 0x200, scoped, tag = 'input window, operand 1, single buffered']
    #allocation8 [shape = 'u8[512]{0}', space=smem, size = 0x200, scoped, tag = 'input window, operand 2, single buffered']
    #allocation9 [shape = 's32[1]{0}', space=sflag, size = 0x4, scoped, tag = 'scoped memory for tpu_custom_call.1']
    #allocation10 [shape = 'u8[1024]{0}', space=smem, size = 0x400, scoped, tag = 'input window, operand 3, single buffered']
    #allocation11 [shape = 'u8[512]{0}', space=smem, size = 0x200, scoped, tag = 'input window, operand 4, single buffered']
    #allocation12 [shape = 's32[1]{0}', space=sflag, size = 0x4, scoped, tag = 'scoped memory for tpu_custom_call.1']
    #allocation13 [shape = 'u8[8192]{0}', space=vmem, size = 0x2000, scoped, tag = 'output window, operand 0, single buffered']
    %10 = vsyncpa [#allocation3], 0
    %11 = vsyncpa [#allocation5], 0
    %12 = vsyncpa [#allocation9], 0
    %13 = vsyncpa [#allocation6], 0
    %14 = vsyncpa [#allocation12], 0
    %15 = vsyncpa [#allocation4], 0
    // Predicated region
    $region2: #{tpu_custom_call.1} parent=1 // pred_check
      _
    $region3: #{tpu_custom_call.1} parent=1 // pred_check_branch
      %17 = sbr.rel (0) target = $region5
    $region4: #{tpu_custom_call.1} parent=1 // pred_region
      %19 = vsyncadd [#allocation3], 0
      %s20 = sshll.u32 %s0, 4
      %s21 = int_to_ptr.hbm [resolvable:$true] %s20
      %s22 = sshll.u32 [#allocation2], 4
      %s23 = int_to_ptr.vmem [resolvable:$true] %s22
      %28 = dma.hbm_to_vmem [thread:$0]  %s21, 128, %s23, [#allocation3], 64, 64, 4
    $region5: #{tpu_custom_call.1} parent=1 // pred_fallthru
      _
    // Predicated region
    $region6: #{tpu_custom_call.1} parent=1 // pred_check
      _
    $region7: #{tpu_custom_call.1} parent=1 // pred_check_branch
      %30 = sbr.rel (0) target = $region9
    $region8: #{tpu_custom_call.1} parent=1 // pred_region
      %32 = vsyncadd [#allocation5], 0
      %s34 = sshll.u32 %s1, 4
      %s35 = int_to_ptr.hbm [resolvable:$true] %s34
      %37 = dma.hbm_to_smem %s35, 16, [#allocation7], [#allocation5]
    $region9: #{tpu_custom_call.1} parent=1 // pred_fallthru
      _
    // Predicated region
    $region10: #{tpu_custom_call.1} parent=1 // pred_check
      _
    $region11: #{tpu_custom_call.1} parent=1 // pred_check_branch
      %39 = sbr.rel (0) target = $region13
    $region12: #{tpu_custom_call.1} parent=1 // pred_region
      %41 = vsyncadd [#allocation9], 0
      %s43 = sshll.u32 %s2, 4
      %s44 = int_to_ptr.hbm [resolvable:$true] %s43
      %46 = dma.hbm_to_smem %s44, 16, [#allocation8], [#allocation9]
    $region13: #{tpu_custom_call.1} parent=1 // pred_fallthru
      _
    // Predicated region
    $region14: #{tpu_custom_call.1} parent=1 // pred_check
      _
    $region15: #{tpu_custom_call.1} parent=1 // pred_check_branch
      %48 = sbr.rel (0) target = $region17
    $region16: #{tpu_custom_call.1} parent=1 // pred_region
      %50 = vsyncadd [#allocation6], 0
      %s52 = sshll.u32 %s3, 4
      %s53 = int_to_ptr.vmem [resolvable:$true] %s52
      %55 = dma.vmem_to_smem %s53, 32, [#allocation10], [#allocation6]
    $region17: #{tpu_custom_call.1} parent=1 // pred_fallthru
      _
    // Predicated region
    $region18: #{tpu_custom_call.1} parent=1 // pred_check
      _
    $region19: #{tpu_custom_call.1} parent=1 // pred_check_branch
      %57 = sbr.rel (0) target = $region21
    $region20: #{tpu_custom_call.1} parent=1 // pred_region
      %59 = vsyncadd [#allocation12], 0
      %s61 = sshll.u32 %s4, 4
      %s62 = int_to_ptr.vmem [resolvable:$true] %s61
      %64 = dma.vmem_to_smem %s62, 16, [#allocation11], [#allocation12]
    $region21: #{tpu_custom_call.1} parent=1 // pred_fallthru
      _
    // Predicated region
    $region22: #{tpu_custom_call.1} parent=1 // pred_check
      _
    $region23: #{tpu_custom_call.1} parent=1 // pred_check_branch
      %66 = sbr.rel (0) target = $region25
    $region24: #{tpu_custom_call.1} parent=1 // pred_region
      %68 = dma.done [#allocation3], 128
    $region25: #{tpu_custom_call.1} parent=1 // pred_fallthru
      _
    // Predicated region
    $region26: #{tpu_custom_call.1} parent=1 // pred_check
      _
    $region27: #{tpu_custom_call.1} parent=1 // pred_check_branch
      %70 = sbr.rel (0) target = $region29
    $region28: #{tpu_custom_call.1} parent=1 // pred_region
      %72 = dma.done [#allocation5], 16
    $region29: #{tpu_custom_call.1} parent=1 // pred_fallthru
      _
    // Predicated region
    $region30: #{tpu_custom_call.1} parent=1 // pred_check
      _
    $region31: #{tpu_custom_call.1} parent=1 // pred_check_branch
      %74 = sbr.rel (0) target = $region33
    $region32: #{tpu_custom_call.1} parent=1 // pred_region
      %76 = dma.done [#allocation9], 16
    $region33: #{tpu_custom_call.1} parent=1 // pred_fallthru
      _
    // Predicated region
    $region34: #{tpu_custom_call.1} parent=1 // pred_check
      _
    $region35: #{tpu_custom_call.1} parent=1 // pred_check_branch
      %78 = sbr.rel (0) target = $region37
    $region36: #{tpu_custom_call.1} parent=1 // pred_region
      %80 = dma.done [#allocation6], 32
    $region37: #{tpu_custom_call.1} parent=1 // pred_fallthru
      _
    // Predicated region
    $region38: #{tpu_custom_call.1} parent=1 // pred_check
      _
    $region39: #{tpu_custom_call.1} parent=1 // pred_check_branch
      %82 = sbr.rel (0) target = $region41
    $region40: #{tpu_custom_call.1} parent=1 // pred_region
      %84 = dma.done [#allocation12], 16
    $region41: #{tpu_custom_call.1} parent=1 // pred_fallthru
      _
    %85 = sfence
    %v86 = vld [vmem:[#allocation2] sm:$0xf]
    %v87 = vld [vmem:[#allocation2 + $0x4] sm:$0xf]
    %90 = vrot.lane.b32.xlu0 %v86, 1
    %v91 = vpop.permute.xlu0 %90
    %92 = vrot.lane.b32.xlu0 %v87, 1
    %v93 = vpop.permute.xlu0 %92
    %vm96 = vcmask 7168
    %v97 = vsel %vm96, 0.0, %v91
    %v98 = vsel %vm96, 0.0, %v93
    %99 = vrot.lane.b32.xlu0 %v86, 127
    %v100 = vpop.permute.xlu0 %99
    %101 = vrot.lane.b32.xlu0 %v87, 127
    %v102 = vpop.permute.xlu0 %101
    %vm105 = vcmask 121856
    %v106 = vsel %vm105, %v100, 0.0
    %v107 = vsel %vm105, %v102, 0.0
    %v108 = vlaneseq
    %v109 = vshrl.u32 %v108, 7
    %v110 = vadd.s32 %v109, 8
    %v111 = vlaneseq
    %v112 = vand.u32 %v111, 127
    %v113 = vmul.u32 %v112, 2
    %vm114 = vcmp.eq.s32.totalorder %v109, %v113
    %vm115 = vcmp.eq.s32.totalorder %v110, %v113
    %v116 = vsel %vm114, 1, 0
    %v117 = vsel %vm115, 1, 0
    %v118 = vcvt.s32.f32 %v116
    %v119 = vcvt.s32.f32 %v117
    %s120 = sld [smem:[#allocation7]]
    %v121 = vstv %s120
    %v122 = vmul.f32 %v121, %v97
    %v123 = vmul.f32 %v121, %v98
    %v124 = vadd.f32 %v122, 0.0
    %v125 = vadd.f32 %v123, 0.0
    %s126 = sld [smem:[#allocation7 + $0x3]]
    %v127 = vstv %s126
    %v128 = vmul.f32 %v127, %v97
    %v129 = vmul.f32 %v127, %v98
    %v132 = vrot.slane %v128, 1
    %v133 = vrot.slane %v129, 1
    %v136 = vadd.f32 %v124, %v132
    %v137 = vadd.f32 %v125, %v133
    %s138 = sld [smem:[#allocation7 + $0x6]]
    %v139 = vstv %s138
    %v140 = vmul.f32 %v139, %v97
    %v141 = vmul.f32 %v139, %v98
    %v144 = vrot.slane %v140, 2
    %v145 = vrot.slane %v141, 2
    %v148 = vadd.f32 %v136, %v144
    %v149 = vadd.f32 %v137, %v145
    %s150 = sld [smem:[#allocation7 + $0x9]]
    %v151 = vstv %s150
    %v152 = vmul.f32 %v151, %v97
    %v153 = vmul.f32 %v151, %v98
    %v156 = vrot.slane %v152, 3
    %v157 = vrot.slane %v153, 3
    %v160 = vadd.f32 %v148, %v156
    %v161 = vadd.f32 %v149, %v157
    %s162 = sld [smem:[#allocation7 + $0x1]]
    %v163 = vstv %s162
    %v164 = vmul.f32 %v163, %v86
    %v165 = vmul.f32 %v163, %v87
    %v166 = vadd.f32 %v160, %v164
    %v167 = vadd.f32 %v161, %v165
    %s168 = sld [smem:[#allocation7 + $0x4]]
    %v169 = vstv %s168
    %v170 = vmul.f32 %v169, %v86
    %v171 = vmul.f32 %v169, %v87
    %v174 = vrot.slane %v170, 1
    %v175 = vrot.slane %v171, 1
    %v178 = vadd.f32 %v166, %v174
    %v179 = vadd.f32 %v167, %v175
    %s180 = sld [smem:[#allocation7 + $0x7]]
    %v181 = vstv %s180
    %v182 = vmul.f32 %v181, %v86
    %v183 = vmul.f32 %v181, %v87
    %v186 = vrot.slane %v182, 2
    %v187 = vrot.slane %v183, 2
    %v190 = vadd.f32 %v178, %v186
    %v191 = vadd.f32 %v179, %v187
    %s192 = sld [smem:[#allocation7 + $0xa]]
    %v193 = vstv %s192
    %v194 = vmul.f32 %v193, %v86
    %v195 = vmul.f32 %v193, %v87
    %v198 = vrot.slane %v194, 3
    %v199 = vrot.slane %v195, 3
    %v202 = vadd.f32 %v190, %v198
    %v203 = vadd.f32 %v191, %v199
    %s204 = sld [smem:[#allocation7 + $0x2]]
    %v205 = vstv %s204
    %v206 = vmul.f32 %v205, %v106
    %v207 = vmul.f32 %v205, %v107
    %v208 = vadd.f32 %v202, %v206
    %v209 = vadd.f32 %v203, %v207
    %s210 = sld [smem:[#allocation7 + $0x5]]
    %v211 = vstv %s210
    %v212 = vmul.f32 %v211, %v106
    %v213 = vmul.f32 %v211, %v107
    %v216 = vrot.slane %v212, 1
    %v217 = vrot.slane %v213, 1
    %v220 = vadd.f32 %v208, %v216
    %v221 = vadd.f32 %v209, %v217
    %s222 = sld [smem:[#allocation7 + $0x8]]
    %v223 = vstv %s222
    %v224 = vmul.f32 %v223, %v106
    %v225 = vmul.f32 %v223, %v107
    %v228 = vrot.slane %v224, 2
    %v229 = vrot.slane %v225, 2
    %v232 = vadd.f32 %v220, %v228
    %v233 = vadd.f32 %v221, %v229
    %s234 = sld [smem:[#allocation7 + $0xb]]
    %v235 = vstv %s234
    %v236 = vmul.f32 %v235, %v106
    %v237 = vmul.f32 %v235, %v107
    %v240 = vrot.slane %v236, 3
    %v241 = vrot.slane %v237, 3
    %v244 = vadd.f32 %v232, %v240
    %v245 = vadd.f32 %v233, %v241
    %s246 = sld [smem:[#allocation8]]
    %v247 = vstv %s246
    %v250 = vrot.slane %v245, 7
    %vm251 = vcmask 1041409
    %v252 = vsel %vm251, %v250, %v244
    %vm253 = vcmask 130048
    %v254 = vsel %vm253, %v252, 0
    %256 = vmatpush.msra.mxu0 0.0
    %257 = vmatpush.msra.mxu0 0.0
    %258 = vmatpush.msra.mxu0 0.0
    %259 = vmatpush.msra.mxu0 0.0
    %260 = vmatpush.msra.mxu0 0.0
    %261 = vmatpush.msra.mxu0 0.0
    %262 = vmatpush.msra.mxu0 0.0
    %263 = vmatpush.msra.mxu0 0.0
    %264 = vmatpush.msra.mxu0 0.0
    %265 = vmatpush.msra.mxu0 0.0
    %266 = vmatpush.msra.mxu0 0.0
    %267 = vmatpush.msra.mxu0 0.0
    %268 = vmatpush.msra.mxu0 0.0
    %269 = vmatpush.msra.mxu0 0.0
    %270 = vmatpush.msra.mxu0 %v119
    %271 = vmatpush.msra.mxu0 %v118
    %272 = vmatmul.f32.gmra.mxu0 %v254
    %v273 = vpop.f32.mrf.mxu0
    %v274 = vadd.f32 %v247, %v273
    %275 = vdwg.mxu0
    %v276 = vmax.f32 %v274, 0.0
    %s277 = sld [smem:[#allocation7 + $0xc]]
    %v278 = vstv %s277
    %v279 = vmul.f32 %v278, %v97
    %v280 = vmul.f32 %v278, %v98
    %v281 = vadd.f32 %v279, 0.0
    %v282 = vadd.f32 %v280, 0.0
    %s283 = sld [smem:[#allocation7 + $0xf]]
    %v284 = vstv %s283
    %v285 = vmul.f32 %v284, %v97
    %v286 = vmul.f32 %v284, %v98
    %v289 = vrot.slane %v285, 1
    %v290 = vrot.slane %v286, 1
    %v293 = vadd.f32 %v281, %v289
    %v294 = vadd.f32 %v282, %v290
    %s295 = sld [smem:[#allocation7 + $0x12]]
    %v296 = vstv %s295
    %v297 = vmul.f32 %v296, %v97
    %v298 = vmul.f32 %v296, %v98
    %v301 = vrot.slane %v297, 2
    %v302 = vrot.slane %v298, 2
    %v305 = vadd.f32 %v293, %v301
    %v306 = vadd.f32 %v294, %v302
    %s307 = sld [smem:[#allocation7 + $0x15]]
    %v308 = vstv %s307
    %v309 = vmul.f32 %v308, %v97
    %v310 = vmul.f32 %v308, %v98
    %v313 = vrot.slane %v309, 3
    %v314 = vrot.slane %v310, 3
    %v317 = vadd.f32 %v305, %v313
    %v318 = vadd.f32 %v306, %v314
    %s319 = sld [smem:[#allocation7 + $0xd]]
    %v320 = vstv %s319
    %v321 = vmul.f32 %v320, %v86
    %v322 = vmul.f32 %v320, %v87
    %v323 = vadd.f32 %v317, %v321
    %v324 = vadd.f32 %v318, %v322
    %s325 = sld [smem:[#allocation7 + $0x10]]
    %v326 = vstv %s325
    %v327 = vmul.f32 %v326, %v86
    %v328 = vmul.f32 %v326, %v87
    %v331 = vrot.slane %v327, 1
    %v332 = vrot.slane %v328, 1
    %v335 = vadd.f32 %v323, %v331
    %v336 = vadd.f32 %v324, %v332
    %s337 = sld [smem:[#allocation7 + $0x13]]
    %v338 = vstv %s337
    %v339 = vmul.f32 %v338, %v86
    %v340 = vmul.f32 %v338, %v87
    %v343 = vrot.slane %v339, 2
    %v344 = vrot.slane %v340, 2
    %v347 = vadd.f32 %v335, %v343
    %v348 = vadd.f32 %v336, %v344
    %s349 = sld [smem:[#allocation7 + $0x16]]
    %v350 = vstv %s349
    %v351 = vmul.f32 %v350, %v86
    %v352 = vmul.f32 %v350, %v87
    %v355 = vrot.slane %v351, 3
    %v356 = vrot.slane %v352, 3
    %v359 = vadd.f32 %v347, %v355
    %v360 = vadd.f32 %v348, %v356
    %s361 = sld [smem:[#allocation7 + $0xe]]
    %v362 = vstv %s361
    %v363 = vmul.f32 %v362, %v106
    %v364 = vmul.f32 %v362, %v107
    %v365 = vadd.f32 %v359, %v363
    %v366 = vadd.f32 %v360, %v364
    %s367 = sld [smem:[#allocation7 + $0x11]]
    %v368 = vstv %s367
    %v369 = vmul.f32 %v368, %v106
    %v370 = vmul.f32 %v368, %v107
    %v373 = vrot.slane %v369, 1
    %v374 = vrot.slane %v370, 1
    %v377 = vadd.f32 %v365, %v373
    %v378 = vadd.f32 %v366, %v374
    %s379 = sld [smem:[#allocation7 + $0x14]]
    %v380 = vstv %s379
    %v381 = vmul.f32 %v380, %v106
    %v382 = vmul.f32 %v380, %v107
    %v385 = vrot.slane %v381, 2
    %v386 = vrot.slane %v382, 2
    %v389 = vadd.f32 %v377, %v385
    %v390 = vadd.f32 %v378, %v386
    %s391 = sld [smem:[#allocation7 + $0x17]]
    %v392 = vstv %s391
    %v393 = vmul.f32 %v392, %v106
    %v394 = vmul.f32 %v392, %v107
    %v397 = vrot.slane %v393, 3
    %v398 = vrot.slane %v394, 3
    %v401 = vadd.f32 %v389, %v397
    %v402 = vadd.f32 %v390, %v398
    %s403 = sld [smem:[#allocation8 + $0x1]]
    %v404 = vstv %s403
    %v407 = vrot.slane %v402, 7
    %v408 = vsel %vm251, %v407, %v401
    %v409 = vsel %vm253, %v408, 0
    %411 = vmatpush.msra.mxu0 0.0
    %412 = vmatpush.msra.mxu0 0.0
    %413 = vmatpush.msra.mxu0 0.0
    %414 = vmatpush.msra.mxu0 0.0
    %415 = vmatpush.msra.mxu0 0.0
    %416 = vmatpush.msra.mxu0 0.0
    %417 = vmatpush.msra.mxu0 0.0
    %418 = vmatpush.msra.mxu0 0.0
    %419 = vmatpush.msra.mxu0 0.0
    %420 = vmatpush.msra.mxu0 0.0
    %421 = vmatpush.msra.mxu0 0.0
    %422 = vmatpush.msra.mxu0 0.0
    %423 = vmatpush.msra.mxu0 0.0
    %424 = vmatpush.msra.mxu0 0.0
    %425 = vmatpush.msra.mxu0 %v119
    %426 = vmatpush.msra.mxu0 %v118
    %427 = vmatmul.f32.gmra.mxu0 %v409
    %v428 = vpop.f32.mrf.mxu0
    %v429 = vadd.f32 %v404, %v428
    %430 = vdwg.mxu0
    %v431 = vmax.f32 %v429, 0.0
    %s432 = sld [smem:[#allocation7 + $0x18]]
    %v433 = vstv %s432
    %v434 = vmul.f32 %v433, %v97
    %v435 = vmul.f32 %v433, %v98
    %v436 = vadd.f32 %v434, 0.0
    %v437 = vadd.f32 %v435, 0.0
    %s438 = sld [smem:[#allocation7 + $0x1b]]
    %v439 = vstv %s438
    %v440 = vmul.f32 %v439, %v97
    %v441 = vmul.f32 %v439, %v98
    %v444 = vrot.slane %v440, 1
    %v445 = vrot.slane %v441, 1
    %v448 = vadd.f32 %v436, %v444
    %v449 = vadd.f32 %v437, %v445
    %s450 = sld [smem:[#allocation7 + $0x1e]]
    %v451 = vstv %s450
    %v452 = vmul.f32 %v451, %v97
    %v453 = vmul.f32 %v451, %v98
    %v456 = vrot.slane %v452, 2
    %v457 = vrot.slane %v453, 2
    %v460 = vadd.f32 %v448, %v456
    %v461 = vadd.f32 %v449, %v457
    %s462 = sld [smem:[#allocation7 + $0x21]]
    %v463 = vstv %s462
    %v464 = vmul.f32 %v463, %v97
    %v465 = vmul.f32 %v463, %v98
    %v468 = vrot.slane %v464, 3
    %v469 = vrot.slane %v465, 3
    %v472 = vadd.f32 %v460, %v468
    %v473 = vadd.f32 %v461, %v469
    %s474 = sld [smem:[#allocation7 + $0x19]]
    %v475 = vstv %s474
    %v476 = vmul.f32 %v475, %v86
    %v477 = vmul.f32 %v475, %v87
    %v478 = vadd.f32 %v472, %v476
    %v479 = vadd.f32 %v473, %v477
    %s480 = sld [smem:[#allocation7 + $0x1c]]
    %v481 = vstv %s480
    %v482 = vmul.f32 %v481, %v86
    %v483 = vmul.f32 %v481, %v87
    %v486 = vrot.slane %v482, 1
    %v487 = vrot.slane %v483, 1
    %v490 = vadd.f32 %v478, %v486
    %v491 = vadd.f32 %v479, %v487
    %s492 = sld [smem:[#allocation7 + $0x1f]]
    %v493 = vstv %s492
    %v494 = vmul.f32 %v493, %v86
    %v495 = vmul.f32 %v493, %v87
    %v498 = vrot.slane %v494, 2
    %v499 = vrot.slane %v495, 2
    %v502 = vadd.f32 %v490, %v498
    %v503 = vadd.f32 %v491, %v499
    %s504 = sld [smem:[#allocation7 + $0x22]]
    %v505 = vstv %s504
    %v506 = vmul.f32 %v505, %v86
    %v507 = vmul.f32 %v505, %v87
    %v510 = vrot.slane %v506, 3
    %v511 = vrot.slane %v507, 3
    %v514 = vadd.f32 %v502, %v510
    %v515 = vadd.f32 %v503, %v511
    %s516 = sld [smem:[#allocation7 + $0x1a]]
    %v517 = vstv %s516
    %v518 = vmul.f32 %v517, %v106
    %v519 = vmul.f32 %v517, %v107
    %v520 = vadd.f32 %v514, %v518
    %v521 = vadd.f32 %v515, %v519
    %s522 = sld [smem:[#allocation7 + $0x1d]]
    %v523 = vstv %s522
    %v524 = vmul.f32 %v523, %v106
    %v525 = vmul.f32 %v523, %v107
    %v528 = vrot.slane %v524, 1
    %v529 = vrot.slane %v525, 1
    %v532 = vadd.f32 %v520, %v528
    %v533 = vadd.f32 %v521, %v529
    %s534 = sld [smem:[#allocation7 + $0x20]]
    %v535 = vstv %s534
    %v536 = vmul.f32 %v535, %v106
    %v537 = vmul.f32 %v535, %v107
    %v540 = vrot.slane %v536, 2
    %v541 = vrot.slane %v537, 2
    %v544 = vadd.f32 %v532, %v540
    %v545 = vadd.f32 %v533, %v541
    %s546 = sld [smem:[#allocation7 + $0x23]]
    %v547 = vstv %s546
    %v548 = vmul.f32 %v547, %v106
    %v549 = vmul.f32 %v547, %v107
    %v552 = vrot.slane %v548, 3
    %v553 = vrot.slane %v549, 3
    %v556 = vadd.f32 %v544, %v552
    %v557 = vadd.f32 %v545, %v553
    %s558 = sld [smem:[#allocation8 + $0x2]]
    %v559 = vstv %s558
    %v562 = vrot.slane %v557, 7
    %v563 = vsel %vm251, %v562, %v556
    %v564 = vsel %vm253, %v563, 0
    %566 = vmatpush.msra.mxu0 0.0
    %567 = vmatpush.msra.mxu0 0.0
    %568 = vmatpush.msra.mxu0 0.0
    %569 = vmatpush.msra.mxu0 0.0
    %570 = vmatpush.msra.mxu0 0.0
    %571 = vmatpush.msra.mxu0 0.0
    %572 = vmatpush.msra.mxu0 0.0
    %573 = vmatpush.msra.mxu0 0.0
    %574 = vmatpush.msra.mxu0 0.0
    %575 = vmatpush.msra.mxu0 0.0
    %576 = vmatpush.msra.mxu0 0.0
    %577 = vmatpush.msra.mxu0 0.0
    %578 = vmatpush.msra.mxu0 0.0
    %579 = vmatpush.msra.mxu0 0.0
    %580 = vmatpush.msra.mxu0 %v119
    %581 = vmatpush.msra.mxu0 %v118
    %582 = vmatmul.f32.gmra.mxu0 %v564
    %v583 = vpop.f32.mrf.mxu0
    %v584 = vadd.f32 %v559, %v583
    %585 = vdwg.mxu0
    %v586 = vmax.f32 %v584, 0.0
    %s587 = sld [smem:[#allocation7 + $0x24]]
    %v588 = vstv %s587
    %v589 = vmul.f32 %v588, %v97
    %v590 = vmul.f32 %v588, %v98
    %v591 = vadd.f32 %v589, 0.0
    %v592 = vadd.f32 %v590, 0.0
    %s593 = sld [smem:[#allocation7 + $0x27]]
    %v594 = vstv %s593
    %v595 = vmul.f32 %v594, %v97
    %v596 = vmul.f32 %v594, %v98
    %v599 = vrot.slane %v595, 1
    %v600 = vrot.slane %v596, 1
    %v603 = vadd.f32 %v591, %v599
    %v604 = vadd.f32 %v592, %v600
    %s605 = sld [smem:[#allocation7 + $0x2a]]
    %v606 = vstv %s605
    %v607 = vmul.f32 %v606, %v97
    %v608 = vmul.f32 %v606, %v98
    %v611 = vrot.slane %v607, 2
    %v612 = vrot.slane %v608, 2
    %v615 = vadd.f32 %v603, %v611
    %v616 = vadd.f32 %v604, %v612
    %s617 = sld [smem:[#allocation7 + $0x2d]]
    %v618 = vstv %s617
    %v619 = vmul.f32 %v618, %v97
    %v620 = vmul.f32 %v618, %v98
    %v623 = vrot.slane %v619, 3
    %v624 = vrot.slane %v620, 3
    %v627 = vadd.f32 %v615, %v623
    %v628 = vadd.f32 %v616, %v624
    %s629 = sld [smem:[#allocation7 + $0x25]]
    %v630 = vstv %s629
    %v631 = vmul.f32 %v630, %v86
    %v632 = vmul.f32 %v630, %v87
    %v633 = vadd.f32 %v627, %v631
    %v634 = vadd.f32 %v628, %v632
    %s635 = sld [smem:[#allocation7 + $0x28]]
    %v636 = vstv %s635
    %v637 = vmul.f32 %v636, %v86
    %v638 = vmul.f32 %v636, %v87
    %v641 = vrot.slane %v637, 1
    %v642 = vrot.slane %v638, 1
    %v645 = vadd.f32 %v633, %v641
    %v646 = vadd.f32 %v634, %v642
    %s647 = sld [smem:[#allocation7 + $0x2b]]
    %v648 = vstv %s647
    %v649 = vmul.f32 %v648, %v86
    %v650 = vmul.f32 %v648, %v87
    %v653 = vrot.slane %v649, 2
    %v654 = vrot.slane %v650, 2
    %v657 = vadd.f32 %v645, %v653
    %v658 = vadd.f32 %v646, %v654
    %s659 = sld [smem:[#allocation7 + $0x2e]]
    %v660 = vstv %s659
    %v661 = vmul.f32 %v660, %v86
    %v662 = vmul.f32 %v660, %v87
    %v665 = vrot.slane %v661, 3
    %v666 = vrot.slane %v662, 3
    %v669 = vadd.f32 %v657, %v665
    %v670 = vadd.f32 %v658, %v666
    %s671 = sld [smem:[#allocation7 + $0x26]]
    %v672 = vstv %s671
    %v673 = vmul.f32 %v672, %v106
    %v674 = vmul.f32 %v672, %v107
    %v675 = vadd.f32 %v669, %v673
    %v676 = vadd.f32 %v670, %v674
    %s677 = sld [smem:[#allocation7 + $0x29]]
    %v678 = vstv %s677
    %v679 = vmul.f32 %v678, %v106
    %v680 = vmul.f32 %v678, %v107
    %v683 = vrot.slane %v679, 1
    %v684 = vrot.slane %v680, 1
    %v687 = vadd.f32 %v675, %v683
    %v688 = vadd.f32 %v676, %v684
    %s689 = sld [smem:[#allocation7 + $0x2c]]
    %v690 = vstv %s689
    %v691 = vmul.f32 %v690, %v106
    %v692 = vmul.f32 %v690, %v107
    %v695 = vrot.slane %v691, 2
    %v696 = vrot.slane %v692, 2
    %v699 = vadd.f32 %v687, %v695
    %v700 = vadd.f32 %v688, %v696
    %s701 = sld [smem:[#allocation7 + $0x2f]]
    %v702 = vstv %s701
    %v703 = vmul.f32 %v702, %v106
    %v704 = vmul.f32 %v702, %v107
    %v707 = vrot.slane %v703, 3
    %v708 = vrot.slane %v704, 3
    %v711 = vadd.f32 %v699, %v707
    %v712 = vadd.f32 %v700, %v708
    %s713 = sld [smem:[#allocation8 + $0x3]]
    %v714 = vstv %s713
    %v717 = vrot.slane %v712, 7
    %v718 = vsel %vm251, %v717, %v711
    %v719 = vsel %vm253, %v718, 0
    %721 = vmatpush.msra.mxu0 0.0
    %722 = vmatpush.msra.mxu0 0.0
    %723 = vmatpush.msra.mxu0 0.0
    %724 = vmatpush.msra.mxu0 0.0
    %725 = vmatpush.msra.mxu0 0.0
    %726 = vmatpush.msra.mxu0 0.0
    %727 = vmatpush.msra.mxu0 0.0
    %728 = vmatpush.msra.mxu0 0.0
    %729 = vmatpush.msra.mxu0 0.0
    %730 = vmatpush.msra.mxu0 0.0
    %731 = vmatpush.msra.mxu0 0.0
    %732 = vmatpush.msra.mxu0 0.0
    %733 = vmatpush.msra.mxu0 0.0
    %734 = vmatpush.msra.mxu0 0.0
    %735 = vmatpush.msra.mxu0 %v119
    %736 = vmatpush.msra.mxu0 %v118
    %737 = vmatmul.f32.gmra.mxu0 %v719
    %v738 = vpop.f32.mrf.mxu0
    %v739 = vadd.f32 %v714, %v738
    %740 = vdwg.mxu0
    %v741 = vmax.f32 %v739, 0.0
    %s742 = sld [smem:[#allocation7 + $0x30]]
    %v743 = vstv %s742
    %v744 = vmul.f32 %v743, %v97
    %v745 = vmul.f32 %v743, %v98
    %v746 = vadd.f32 %v744, 0.0
    %v747 = vadd.f32 %v745, 0.0
    %s748 = sld [smem:[#allocation7 + $0x33]]
    %v749 = vstv %s748
    %v750 = vmul.f32 %v749, %v97
    %v751 = vmul.f32 %v749, %v98
    %v754 = vrot.slane %v750, 1
    %v755 = vrot.slane %v751, 1
    %v758 = vadd.f32 %v746, %v754
    %v759 = vadd.f32 %v747, %v755
    %s760 = sld [smem:[#allocation7 + $0x36]]
    %v761 = vstv %s760
    %v762 = vmul.f32 %v761, %v97
    %v763 = vmul.f32 %v761, %v98
    %v766 = vrot.slane %v762, 2
    %v767 = vrot.slane %v763, 2
    %v770 = vadd.f32 %v758, %v766
    %v771 = vadd.f32 %v759, %v767
    %s772 = sld [smem:[#allocation7 + $0x39]]
    %v773 = vstv %s772
    %v774 = vmul.f32 %v773, %v97
    %v775 = vmul.f32 %v773, %v98
    %v778 = vrot.slane %v774, 3
    %v779 = vrot.slane %v775, 3
    %v782 = vadd.f32 %v770, %v778
    %v783 = vadd.f32 %v771, %v779
    %s784 = sld [smem:[#allocation7 + $0x31]]
    %v785 = vstv %s784
    %v786 = vmul.f32 %v785, %v86
    %v787 = vmul.f32 %v785, %v87
    %v788 = vadd.f32 %v782, %v786
    %v789 = vadd.f32 %v783, %v787
    %s790 = sld [smem:[#allocation7 + $0x34]]
    %v791 = vstv %s790
    %v792 = vmul.f32 %v791, %v86
    %v793 = vmul.f32 %v791, %v87
    %v796 = vrot.slane %v792, 1
    %v797 = vrot.slane %v793, 1
    %v800 = vadd.f32 %v788, %v796
    %v801 = vadd.f32 %v789, %v797
    %s802 = sld [smem:[#allocation7 + $0x37]]
    %v803 = vstv %s802
    %v804 = vmul.f32 %v803, %v86
    %v805 = vmul.f32 %v803, %v87
    %v808 = vrot.slane %v804, 2
    %v809 = vrot.slane %v805, 2
    %v812 = vadd.f32 %v800, %v808
    %v813 = vadd.f32 %v801, %v809
    %s814 = sld [smem:[#allocation7 + $0x3a]]
    %v815 = vstv %s814
    %v816 = vmul.f32 %v815, %v86
    %v817 = vmul.f32 %v815, %v87
    %v820 = vrot.slane %v816, 3
    %v821 = vrot.slane %v817, 3
    %v824 = vadd.f32 %v812, %v820
    %v825 = vadd.f32 %v813, %v821
    %s826 = sld [smem:[#allocation7 + $0x32]]
    %v827 = vstv %s826
    %v828 = vmul.f32 %v827, %v106
    %v829 = vmul.f32 %v827, %v107
    %v830 = vadd.f32 %v824, %v828
    %v831 = vadd.f32 %v825, %v829
    %s832 = sld [smem:[#allocation7 + $0x35]]
    %v833 = vstv %s832
    %v834 = vmul.f32 %v833, %v106
    %v835 = vmul.f32 %v833, %v107
    %v838 = vrot.slane %v834, 1
    %v839 = vrot.slane %v835, 1
    %v842 = vadd.f32 %v830, %v838
    %v843 = vadd.f32 %v831, %v839
    %s844 = sld [smem:[#allocation7 + $0x38]]
    %v845 = vstv %s844
    %v846 = vmul.f32 %v845, %v106
    %v847 = vmul.f32 %v845, %v107
    %v850 = vrot.slane %v846, 2
    %v851 = vrot.slane %v847, 2
    %v854 = vadd.f32 %v842, %v850
    %v855 = vadd.f32 %v843, %v851
    %s856 = sld [smem:[#allocation7 + $0x3b]]
    %v857 = vstv %s856
    %v858 = vmul.f32 %v857, %v106
    %v859 = vmul.f32 %v857, %v107
    %v862 = vrot.slane %v858, 3
    %v863 = vrot.slane %v859, 3
    %v866 = vadd.f32 %v854, %v862
    %v867 = vadd.f32 %v855, %v863
    %s868 = sld [smem:[#allocation8 + $0x4]]
    %v869 = vstv %s868
    %v872 = vrot.slane %v867, 7
    %v873 = vsel %vm251, %v872, %v866
    %v874 = vsel %vm253, %v873, 0
    %876 = vmatpush.msra.mxu0 0.0
    %877 = vmatpush.msra.mxu0 0.0
    %878 = vmatpush.msra.mxu0 0.0
    %879 = vmatpush.msra.mxu0 0.0
    %880 = vmatpush.msra.mxu0 0.0
    %881 = vmatpush.msra.mxu0 0.0
    %882 = vmatpush.msra.mxu0 0.0
    %883 = vmatpush.msra.mxu0 0.0
    %884 = vmatpush.msra.mxu0 0.0
    %885 = vmatpush.msra.mxu0 0.0
    %886 = vmatpush.msra.mxu0 0.0
    %887 = vmatpush.msra.mxu0 0.0
    %888 = vmatpush.msra.mxu0 0.0
    %889 = vmatpush.msra.mxu0 0.0
    %890 = vmatpush.msra.mxu0 %v119
    %891 = vmatpush.msra.mxu0 %v118
    %892 = vmatmul.f32.gmra.mxu0 %v874
    %v893 = vpop.f32.mrf.mxu0
    %v894 = vadd.f32 %v869, %v893
    %895 = vdwg.mxu0
    %v896 = vmax.f32 %v894, 0.0
    %s897 = sld [smem:[#allocation7 + $0x3c]]
    %v898 = vstv %s897
    %v899 = vmul.f32 %v898, %v97
    %v900 = vmul.f32 %v898, %v98
    %v901 = vadd.f32 %v899, 0.0
    %v902 = vadd.f32 %v900, 0.0
    %s903 = sld [smem:[#allocation7 + $0x3f]]
    %v904 = vstv %s903
    %v905 = vmul.f32 %v904, %v97
    %v906 = vmul.f32 %v904, %v98
    %v909 = vrot.slane %v905, 1
    %v910 = vrot.slane %v906, 1
    %v913 = vadd.f32 %v901, %v909
    %v914 = vadd.f32 %v902, %v910
    %s915 = sld [smem:[#allocation7 + $0x42]]
    %v916 = vstv %s915
    %v917 = vmul.f32 %v916, %v97
    %v918 = vmul.f32 %v916, %v98
    %v921 = vrot.slane %v917, 2
    %v922 = vrot.slane %v918, 2
    %v925 = vadd.f32 %v913, %v921
    %v926 = vadd.f32 %v914, %v922
    %s927 = sld [smem:[#allocation7 + $0x45]]
    %v928 = vstv %s927
    %v929 = vmul.f32 %v928, %v97
    %v930 = vmul.f32 %v928, %v98
    %v933 = vrot.slane %v929, 3
    %v934 = vrot.slane %v930, 3
    %v937 = vadd.f32 %v925, %v933
    %v938 = vadd.f32 %v926, %v934
    %s939 = sld [smem:[#allocation7 + $0x3d]]
    %v940 = vstv %s939
    %v941 = vmul.f32 %v940, %v86
    %v942 = vmul.f32 %v940, %v87
    %v943 = vadd.f32 %v937, %v941
    %v944 = vadd.f32 %v938, %v942
    %s945 = sld [smem:[#allocation7 + $0x40]]
    %v946 = vstv %s945
    %v947 = vmul.f32 %v946, %v86
    %v948 = vmul.f32 %v946, %v87
    %v951 = vrot.slane %v947, 1
    %v952 = vrot.slane %v948, 1
    %v955 = vadd.f32 %v943, %v951
    %v956 = vadd.f32 %v944, %v952
    %s957 = sld [smem:[#allocation7 + $0x43]]
    %v958 = vstv %s957
    %v959 = vmul.f32 %v958, %v86
    %v960 = vmul.f32 %v958, %v87
    %v963 = vrot.slane %v959, 2
    %v964 = vrot.slane %v960, 2
    %v967 = vadd.f32 %v955, %v963
    %v968 = vadd.f32 %v956, %v964
    %s969 = sld [smem:[#allocation7 + $0x46]]
    %v970 = vstv %s969
    %v971 = vmul.f32 %v970, %v86
    %v972 = vmul.f32 %v970, %v87
    %v975 = vrot.slane %v971, 3
    %v976 = vrot.slane %v972, 3
    %v979 = vadd.f32 %v967, %v975
    %v980 = vadd.f32 %v968, %v976
    %s981 = sld [smem:[#allocation7 + $0x3e]]
    %v982 = vstv %s981
    %v983 = vmul.f32 %v982, %v106
    %v984 = vmul.f32 %v982, %v107
    %v985 = vadd.f32 %v979, %v983
    %v986 = vadd.f32 %v980, %v984
    %s987 = sld [smem:[#allocation7 + $0x41]]
    %v988 = vstv %s987
    %v989 = vmul.f32 %v988, %v106
    %v990 = vmul.f32 %v988, %v107
    %v993 = vrot.slane %v989, 1
    %v994 = vrot.slane %v990, 1
    %v997 = vadd.f32 %v985, %v993
    %v998 = vadd.f32 %v986, %v994
    %s999 = sld [smem:[#allocation7 + $0x44]]
    %v1000 = vstv %s999
    %v1001 = vmul.f32 %v1000, %v106
    %v1002 = vmul.f32 %v1000, %v107
    %v1005 = vrot.slane %v1001, 2
    %v1006 = vrot.slane %v1002, 2
    %v1009 = vadd.f32 %v997, %v1005
    %v1010 = vadd.f32 %v998, %v1006
    %s1011 = sld [smem:[#allocation7 + $0x47]]
    %v1012 = vstv %s1011
    %v1013 = vmul.f32 %v1012, %v106
    %v1014 = vmul.f32 %v1012, %v107
    %v1017 = vrot.slane %v1013, 3
    %v1018 = vrot.slane %v1014, 3
    %v1021 = vadd.f32 %v1009, %v1017
    %v1022 = vadd.f32 %v1010, %v1018
    %s1023 = sld [smem:[#allocation8 + $0x5]]
    %v1024 = vstv %s1023
    %v1027 = vrot.slane %v1022, 7
    %v1028 = vsel %vm251, %v1027, %v1021
    %v1029 = vsel %vm253, %v1028, 0
    %1031 = vmatpush.msra.mxu0 0.0
    %1032 = vmatpush.msra.mxu0 0.0
    %1033 = vmatpush.msra.mxu0 0.0
    %1034 = vmatpush.msra.mxu0 0.0
    %1035 = vmatpush.msra.mxu0 0.0
    %1036 = vmatpush.msra.mxu0 0.0
    %1037 = vmatpush.msra.mxu0 0.0
    %1038 = vmatpush.msra.mxu0 0.0
    %1039 = vmatpush.msra.mxu0 0.0
    %1040 = vmatpush.msra.mxu0 0.0
    %1041 = vmatpush.msra.mxu0 0.0
    %1042 = vmatpush.msra.mxu0 0.0
    %1043 = vmatpush.msra.mxu0 0.0
    %1044 = vmatpush.msra.mxu0 0.0
    %1045 = vmatpush.msra.mxu0 %v119
    %1046 = vmatpush.msra.mxu0 %v118
    %1047 = vmatmul.f32.gmra.mxu0 %v1029
    %v1048 = vpop.f32.mrf.mxu0
    %v1049 = vadd.f32 %v1024, %v1048
    %1050 = vdwg.mxu0
    %v1051 = vmax.f32 %v1049, 0.0
    %s1052 = sld [smem:[#allocation7 + $0x48]]
    %v1053 = vstv %s1052
    %v1054 = vmul.f32 %v1053, %v97
    %v1055 = vmul.f32 %v1053, %v98
    %v1056 = vadd.f32 %v1054, 0.0
    %v1057 = vadd.f32 %v1055, 0.0
    %s1058 = sld [smem:[#allocation7 + $0x4b]]
    %v1059 = vstv %s1058
    %v1060 = vmul.f32 %v1059, %v97
    %v1061 = vmul.f32 %v1059, %v98
    %v1064 = vrot.slane %v1060, 1
    %v1065 = vrot.slane %v1061, 1
    %v1068 = vadd.f32 %v1056, %v1064
    %v1069 = vadd.f32 %v1057, %v1065
    %s1070 = sld [smem:[#allocation7 + $0x4e]]
    %v1071 = vstv %s1070
    %v1072 = vmul.f32 %v1071, %v97
    %v1073 = vmul.f32 %v1071, %v98
    %v1076 = vrot.slane %v1072, 2
    %v1077 = vrot.slane %v1073, 2
    %v1080 = vadd.f32 %v1068, %v1076
    %v1081 = vadd.f32 %v1069, %v1077
    %s1082 = sld [smem:[#allocation7 + $0x51]]
    %v1083 = vstv %s1082
    %v1084 = vmul.f32 %v1083, %v97
    %v1085 = vmul.f32 %v1083, %v98
    %v1088 = vrot.slane %v1084, 3
    %v1089 = vrot.slane %v1085, 3
    %v1092 = vadd.f32 %v1080, %v1088
    %v1093 = vadd.f32 %v1081, %v1089
    %s1094 = sld [smem:[#allocation7 + $0x49]]
    %v1095 = vstv %s1094
    %v1096 = vmul.f32 %v1095, %v86
    %v1097 = vmul.f32 %v1095, %v87
    %v1098 = vadd.f32 %v1092, %v1096
    %v1099 = vadd.f32 %v1093, %v1097
    %s1100 = sld [smem:[#allocation7 + $0x4c]]
    %v1101 = vstv %s1100
    %v1102 = vmul.f32 %v1101, %v86
    %v1103 = vmul.f32 %v1101, %v87
    %v1106 = vrot.slane %v1102, 1
    %v1107 = vrot.slane %v1103, 1
    %v1110 = vadd.f32 %v1098, %v1106
    %v1111 = vadd.f32 %v1099, %v1107
    %s1112 = sld [smem:[#allocation7 + $0x4f]]
    %v1113 = vstv %s1112
    %v1114 = vmul.f32 %v1113, %v86
    %v1115 = vmul.f32 %v1113, %v87
    %v1118 = vrot.slane %v1114, 2
    %v1119 = vrot.slane %v1115, 2
    %v1122 = vadd.f32 %v1110, %v1118
    %v1123 = vadd.f32 %v1111, %v1119
    %s1124 = sld [smem:[#allocation7 + $0x52]]
    %v1125 = vstv %s1124
    %v1126 = vmul.f32 %v1125, %v86
    %v1127 = vmul.f32 %v1125, %v87
    %v1130 = vrot.slane %v1126, 3
    %v1131 = vrot.slane %v1127, 3
    %v1134 = vadd.f32 %v1122, %v1130
    %v1135 = vadd.f32 %v1123, %v1131
    %s1136 = sld [smem:[#allocation7 + $0x4a]]
    %v1137 = vstv %s1136
    %v1138 = vmul.f32 %v1137, %v106
    %v1139 = vmul.f32 %v1137, %v107
    %v1140 = vadd.f32 %v1134, %v1138
    %v1141 = vadd.f32 %v1135, %v1139
    %s1142 = sld [smem:[#allocation7 + $0x4d]]
    %v1143 = vstv %s1142
    %v1144 = vmul.f32 %v1143, %v106
    %v1145 = vmul.f32 %v1143, %v107
    %v1148 = vrot.slane %v1144, 1
    %v1149 = vrot.slane %v1145, 1
    %v1152 = vadd.f32 %v1140, %v1148
    %v1153 = vadd.f32 %v1141, %v1149
    %s1154 = sld [smem:[#allocation7 + $0x50]]
    %v1155 = vstv %s1154
    %v1156 = vmul.f32 %v1155, %v106
    %v1157 = vmul.f32 %v1155, %v107
    %v1160 = vrot.slane %v1156, 2
    %v1161 = vrot.slane %v1157, 2
    %v1164 = vadd.f32 %v1152, %v1160
    %v1165 = vadd.f32 %v1153, %v1161
    %s1166 = sld [smem:[#allocation7 + $0x53]]
    %v1167 = vstv %s1166
    %v1168 = vmul.f32 %v1167, %v106
    %v1169 = vmul.f32 %v1167, %v107
    %v1172 = vrot.slane %v1168, 3
    %v1173 = vrot.slane %v1169, 3
    %v1176 = vadd.f32 %v1164, %v1172
    %v1177 = vadd.f32 %v1165, %v1173
    %s1178 = sld [smem:[#allocation8 + $0x6]]
    %v1179 = vstv %s1178
    %v1182 = vrot.slane %v1177, 7
    %v1183 = vsel %vm251, %v1182, %v1176
    %v1184 = vsel %vm253, %v1183, 0
    %1186 = vmatpush.msra.mxu0 0.0
    %1187 = vmatpush.msra.mxu0 0.0
    %1188 = vmatpush.msra.mxu0 0.0
    %1189 = vmatpush.msra.mxu0 0.0
    %1190 = vmatpush.msra.mxu0 0.0
    %1191 = vmatpush.msra.mxu0 0.0
    %1192 = vmatpush.msra.mxu0 0.0
    %1193 = vmatpush.msra.mxu0 0.0
    %1194 = vmatpush.msra.mxu0 0.0
    %1195 = vmatpush.msra.mxu0 0.0
    %1196 = vmatpush.msra.mxu0 0.0
    %1197 = vmatpush.msra.mxu0 0.0
    %1198 = vmatpush.msra.mxu0 0.0
    %1199 = vmatpush.msra.mxu0 0.0
    %1200 = vmatpush.msra.mxu0 %v119
    %1201 = vmatpush.msra.mxu0 %v118
    %1202 = vmatmul.f32.gmra.mxu0 %v1184
    %v1203 = vpop.f32.mrf.mxu0
    %v1204 = vadd.f32 %v1179, %v1203
    %1205 = vdwg.mxu0
    %v1206 = vmax.f32 %v1204, 0.0
    %s1207 = sld [smem:[#allocation7 + $0x54]]
    %v1208 = vstv %s1207
    %v1209 = vmul.f32 %v1208, %v97
    %v1210 = vmul.f32 %v1208, %v98
    %v1211 = vadd.f32 %v1209, 0.0
    %v1212 = vadd.f32 %v1210, 0.0
    %s1213 = sld [smem:[#allocation7 + $0x57]]
    %v1214 = vstv %s1213
    %v1215 = vmul.f32 %v1214, %v97
    %v1216 = vmul.f32 %v1214, %v98
    %v1219 = vrot.slane %v1215, 1
    %v1220 = vrot.slane %v1216, 1
    %v1223 = vadd.f32 %v1211, %v1219
    %v1224 = vadd.f32 %v1212, %v1220
    %s1225 = sld [smem:[#allocation7 + $0x5a]]
    %v1226 = vstv %s1225
    %v1227 = vmul.f32 %v1226, %v97
    %v1228 = vmul.f32 %v1226, %v98
    %v1231 = vrot.slane %v1227, 2
    %v1232 = vrot.slane %v1228, 2
    %v1235 = vadd.f32 %v1223, %v1231
    %v1236 = vadd.f32 %v1224, %v1232
    %s1237 = sld [smem:[#allocation7 + $0x5d]]
    %v1238 = vstv %s1237
    %v1239 = vmul.f32 %v1238, %v97
    %v1240 = vmul.f32 %v1238, %v98
    %v1243 = vrot.slane %v1239, 3
    %v1244 = vrot.slane %v1240, 3
    %v1247 = vadd.f32 %v1235, %v1243
    %v1248 = vadd.f32 %v1236, %v1244
    %s1249 = sld [smem:[#allocation7 + $0x55]]
    %v1250 = vstv %s1249
    %v1251 = vmul.f32 %v1250, %v86
    %v1252 = vmul.f32 %v1250, %v87
    %v1253 = vadd.f32 %v1247, %v1251
    %v1254 = vadd.f32 %v1248, %v1252
    %s1255 = sld [smem:[#allocation7 + $0x58]]
    %v1256 = vstv %s1255
    %v1257 = vmul.f32 %v1256, %v86
    %v1258 = vmul.f32 %v1256, %v87
    %v1261 = vrot.slane %v1257, 1
    %v1262 = vrot.slane %v1258, 1
    %v1265 = vadd.f32 %v1253, %v1261
    %v1266 = vadd.f32 %v1254, %v1262
    %s1267 = sld [smem:[#allocation7 + $0x5b]]
    %v1268 = vstv %s1267
    %v1269 = vmul.f32 %v1268, %v86
    %v1270 = vmul.f32 %v1268, %v87
    %v1273 = vrot.slane %v1269, 2
    %v1274 = vrot.slane %v1270, 2
    %v1277 = vadd.f32 %v1265, %v1273
    %v1278 = vadd.f32 %v1266, %v1274
    %s1279 = sld [smem:[#allocation7 + $0x5e]]
    %v1280 = vstv %s1279
    %v1281 = vmul.f32 %v1280, %v86
    %v1282 = vmul.f32 %v1280, %v87
    %v1285 = vrot.slane %v1281, 3
    %v1286 = vrot.slane %v1282, 3
    %v1289 = vadd.f32 %v1277, %v1285
    %v1290 = vadd.f32 %v1278, %v1286
    %s1291 = sld [smem:[#allocation7 + $0x56]]
    %v1292 = vstv %s1291
    %v1293 = vmul.f32 %v1292, %v106
    %v1294 = vmul.f32 %v1292, %v107
    %v1295 = vadd.f32 %v1289, %v1293
    %v1296 = vadd.f32 %v1290, %v1294
    %s1297 = sld [smem:[#allocation7 + $0x59]]
    %v1298 = vstv %s1297
    %v1299 = vmul.f32 %v1298, %v106
    %v1300 = vmul.f32 %v1298, %v107
    %v1303 = vrot.slane %v1299, 1
    %v1304 = vrot.slane %v1300, 1
    %v1307 = vadd.f32 %v1295, %v1303
    %v1308 = vadd.f32 %v1296, %v1304
    %s1309 = sld [smem:[#allocation7 + $0x5c]]
    %v1310 = vstv %s1309
    %v1311 = vmul.f32 %v1310, %v106
    %v1312 = vmul.f32 %v1310, %v107
    %v1315 = vrot.slane %v1311, 2
    %v1316 = vrot.slane %v1312, 2
    %v1319 = vadd.f32 %v1307, %v1315
    %v1320 = vadd.f32 %v1308, %v1316
    %s1321 = sld [smem:[#allocation7 + $0x5f]]
    %v1322 = vstv %s1321
    %v1323 = vmul.f32 %v1322, %v106
    %v1324 = vmul.f32 %v1322, %v107
    %v1327 = vrot.slane %v1323, 3
    %v1328 = vrot.slane %v1324, 3
    %v1331 = vadd.f32 %v1319, %v1327
    %v1332 = vadd.f32 %v1320, %v1328
    %s1333 = sld [smem:[#allocation8 + $0x7]]
    %v1334 = vstv %s1333
    %v1337 = vrot.slane %v1332, 7
    %v1338 = vsel %vm251, %v1337, %v1331
    %v1339 = vsel %vm253, %v1338, 0
    %1341 = vmatpush.msra.mxu0 0.0
    %1342 = vmatpush.msra.mxu0 0.0
    %1343 = vmatpush.msra.mxu0 0.0
    %1344 = vmatpush.msra.mxu0 0.0
    %1345 = vmatpush.msra.mxu0 0.0
    %1346 = vmatpush.msra.mxu0 0.0
    %1347 = vmatpush.msra.mxu0 0.0
    %1348 = vmatpush.msra.mxu0 0.0
    %1349 = vmatpush.msra.mxu0 0.0
    %1350 = vmatpush.msra.mxu0 0.0
    %1351 = vmatpush.msra.mxu0 0.0
    %1352 = vmatpush.msra.mxu0 0.0
    %1353 = vmatpush.msra.mxu0 0.0
    %1354 = vmatpush.msra.mxu0 0.0
    %1355 = vmatpush.msra.mxu0 %v119
    %1356 = vmatpush.msra.mxu0 %v118
    %1357 = vmatmul.f32.gmra.mxu0 %v1339
    %v1358 = vpop.f32.mrf.mxu0
    %v1359 = vadd.f32 %v1334, %v1358
    %1360 = vdwg.mxu0
    %v1361 = vmax.f32 %v1359, 0.0
    %v1363 = vrot.slane %v276, 1
    %v1366 = vrot.slane %v431, 1
    %v1368 = vrot.slane %v586, 1
    %v1370 = vrot.slane %v741, 1
    %v1372 = vrot.slane %v896, 1
    %v1374 = vrot.slane %v1051, 1
    %v1376 = vrot.slane %v1206, 1
    %v1378 = vrot.slane %v1361, 1
    %v1379 = vperm.slane %v431, 0
    %v1380 = vperm.slane %v1366, 0
    %v1383 = vperm.slane %v586, 0
    %v1384 = vperm.slane %v1368, 0
    %v1387 = vperm.slane %v741, 0
    %v1388 = vperm.slane %v1370, 0
    %v1391 = vperm.slane %v896, 0
    %v1392 = vperm.slane %v1372, 0
    %v1395 = vperm.slane %v1051, 0
    %v1396 = vperm.slane %v1374, 0
    %v1399 = vperm.slane %v1206, 0
    %v1400 = vperm.slane %v1376, 0
    %v1403 = vperm.slane %v1361, 0
    %v1404 = vperm.slane %v1378, 0
    %vm1407 = vcmask 1040384
    %v1408 = vsel %vm1407, %v276, %v1379
    %v1409 = vsel %vm1407, %v1363, %v1380
    %vm1410 = vcmask 1041408
    %v1411 = vsel %vm1410, %v1408, %v1383
    %v1412 = vsel %vm1410, %v1409, %v1384
    %vm1413 = vcmask 1042432
    %v1414 = vsel %vm1413, %v1411, %v1387
    %v1415 = vsel %vm1413, %v1412, %v1388
    %vm1416 = vcmask 1043456
    %v1417 = vsel %vm1416, %v1414, %v1391
    %v1418 = vsel %vm1416, %v1415, %v1392
    %vm1419 = vcmask 1044480
    %v1420 = vsel %vm1419, %v1417, %v1395
    %v1421 = vsel %vm1419, %v1418, %v1396
    %vm1422 = vcmask 1045504
    %v1423 = vsel %vm1422, %v1420, %v1399
    %v1424 = vsel %vm1422, %v1421, %v1400
    %vm1425 = vcmask 1046528
    %v1426 = vsel %vm1425, %v1423, %v1403
    %v1427 = vsel %vm1425, %v1424, %v1404
    %1430 = vrot.lane.b32.xlu0 %v1426, 2
    %v1431 = vpop.permute.xlu0 %1430
    %1432 = vrot.lane.b32.xlu0 %v1427, 2
    %v1433 = vpop.permute.xlu0 %1432
    %vm1436 = vcmask 15360
    %v1437 = vsel %vm1436, 0.0, %v1431
    %v1438 = vsel %vm1436, 0.0, %v1433
    %1439 = vrot.lane.b32.xlu0 %v1426, 126
    %v1440 = vpop.permute.xlu0 %1439
    %1441 = vrot.lane.b32.xlu0 %v1427, 126
    %v1442 = vpop.permute.xlu0 %1441
    %vm1445 = vcmask 48128
    %v1446 = vsel %vm1445, %v1440, 0.0
    %v1447 = vsel %vm1445, %v1442, 0.0
    %s1448 = sld [smem:[#allocation10]]
    %v1449 = vstv %s1448
    %v1450 = vmul.f32 %v1449, %v1437
    %v1451 = vmul.f32 %v1449, %v1438
    %v1452 = vadd.f32 %v1450, 0.0
    %v1453 = vadd.f32 %v1451, 0.0
    %s1454 = sld [smem:[#allocation10 + $0x3]]
    %v1455 = vstv %s1454
    %v1456 = vmul.f32 %v1455, %v1437
    %v1457 = vmul.f32 %v1455, %v1438
    %v1460 = vrot.slane %v1456, 1
    %v1461 = vrot.slane %v1457, 1
    %v1464 = vadd.f32 %v1452, %v1460
    %v1465 = vadd.f32 %v1453, %v1461
    %s1466 = sld [smem:[#allocation10 + $0x6]]
    %v1467 = vstv %s1466
    %v1468 = vmul.f32 %v1467, %v1437
    %v1469 = vmul.f32 %v1467, %v1438
    %v1472 = vrot.slane %v1468, 2
    %v1473 = vrot.slane %v1469, 2
    %v1476 = vadd.f32 %v1464, %v1472
    %v1477 = vadd.f32 %v1465, %v1473
    %s1478 = sld [smem:[#allocation10 + $0x9]]
    %v1479 = vstv %s1478
    %v1480 = vmul.f32 %v1479, %v1437
    %v1481 = vmul.f32 %v1479, %v1438
    %v1484 = vrot.slane %v1480, 3
    %v1485 = vrot.slane %v1481, 3
    %v1488 = vadd.f32 %v1476, %v1484
    %v1489 = vadd.f32 %v1477, %v1485
    %s1490 = sld [smem:[#allocation10 + $0xc]]
    %v1491 = vstv %s1490
    %v1492 = vmul.f32 %v1491, %v1437
    %v1493 = vmul.f32 %v1491, %v1438
    %v1496 = vrot.slane %v1492, 4
    %v1497 = vrot.slane %v1493, 4
    %v1500 = vadd.f32 %v1488, %v1496
    %v1501 = vadd.f32 %v1489, %v1497
    %s1502 = sld [smem:[#allocation10 + $0xf]]
    %v1503 = vstv %s1502
    %v1504 = vmul.f32 %v1503, %v1437
    %v1505 = vmul.f32 %v1503, %v1438
    %v1508 = vrot.slane %v1504, 5
    %v1509 = vrot.slane %v1505, 5
    %v1512 = vadd.f32 %v1500, %v1508
    %v1513 = vadd.f32 %v1501, %v1509
    %s1514 = sld [smem:[#allocation10 + $0x12]]
    %v1515 = vstv %s1514
    %v1516 = vmul.f32 %v1515, %v1437
    %v1517 = vmul.f32 %v1515, %v1438
    %v1520 = vrot.slane %v1516, 6
    %v1521 = vrot.slane %v1517, 6
    %v1524 = vadd.f32 %v1512, %v1520
    %v1525 = vadd.f32 %v1513, %v1521
    %s1526 = sld [smem:[#allocation10 + $0x15]]
    %v1527 = vstv %s1526
    %v1528 = vmul.f32 %v1527, %v1437
    %v1529 = vmul.f32 %v1527, %v1438
    %v1532 = vrot.slane %v1528, 7
    %v1533 = vrot.slane %v1529, 7
    %v1536 = vadd.f32 %v1524, %v1532
    %v1537 = vadd.f32 %v1525, %v1533
    %s1538 = sld [smem:[#allocation10 + $0x1]]
    %v1539 = vstv %s1538
    %v1540 = vmul.f32 %v1539, %v1426
    %v1541 = vmul.f32 %v1539, %v1427
    %v1542 = vadd.f32 %v1536, %v1540
    %v1543 = vadd.f32 %v1537, %v1541
    %s1544 = sld [smem:[#allocation10 + $0x4]]
    %v1545 = vstv %s1544
    %v1546 = vmul.f32 %v1545, %v1426
    %v1547 = vmul.f32 %v1545, %v1427
    %v1550 = vrot.slane %v1546, 1
    %v1551 = vrot.slane %v1547, 1
    %v1554 = vadd.f32 %v1542, %v1550
    %v1555 = vadd.f32 %v1543, %v1551
    %s1556 = sld [smem:[#allocation10 + $0x7]]
    %v1557 = vstv %s1556
    %v1558 = vmul.f32 %v1557, %v1426
    %v1559 = vmul.f32 %v1557, %v1427
    %v1562 = vrot.slane %v1558, 2
    %v1563 = vrot.slane %v1559, 2
    %v1566 = vadd.f32 %v1554, %v1562
    %v1567 = vadd.f32 %v1555, %v1563
    %s1568 = sld [smem:[#allocation10 + $0xa]]
    %v1569 = vstv %s1568
    %v1570 = vmul.f32 %v1569, %v1426
    %v1571 = vmul.f32 %v1569, %v1427
    %v1574 = vrot.slane %v1570, 3
    %v1575 = vrot.slane %v1571, 3
    %v1578 = vadd.f32 %v1566, %v1574
    %v1579 = vadd.f32 %v1567, %v1575
    %s1580 = sld [smem:[#allocation10 + $0xd]]
    %v1581 = vstv %s1580
    %v1582 = vmul.f32 %v1581, %v1426
    %v1583 = vmul.f32 %v1581, %v1427
    %v1586 = vrot.slane %v1582, 4
    %v1587 = vrot.slane %v1583, 4
    %v1590 = vadd.f32 %v1578, %v1586
    %v1591 = vadd.f32 %v1579, %v1587
    %s1592 = sld [smem:[#allocation10 + $0x10]]
    %v1593 = vstv %s1592
    %v1594 = vmul.f32 %v1593, %v1426
    %v1595 = vmul.f32 %v1593, %v1427
    %v1598 = vrot.slane %v1594, 5
    %v1599 = vrot.slane %v1595, 5
    %v1602 = vadd.f32 %v1590, %v1598
    %v1603 = vadd.f32 %v1591, %v1599
    %s1604 = sld [smem:[#allocation10 + $0x13]]
    %v1605 = vstv %s1604
    %v1606 = vmul.f32 %v1605, %v1426
    %v1607 = vmul.f32 %v1605, %v1427
    %v1610 = vrot.slane %v1606, 6
    %v1611 = vrot.slane %v1607, 6
    %v1614 = vadd.f32 %v1602, %v1610
    %v1615 = vadd.f32 %v1603, %v1611
    %s1616 = sld [smem:[#allocation10 + $0x16]]
    %v1617 = vstv %s1616
    %v1618 = vmul.f32 %v1617, %v1426
    %v1619 = vmul.f32 %v1617, %v1427
    %v1622 = vrot.slane %v1618, 7
    %v1623 = vrot.slane %v1619, 7
    %v1626 = vadd.f32 %v1614, %v1622
    %v1627 = vadd.f32 %v1615, %v1623
    %s1628 = sld [smem:[#allocation10 + $0x2]]
    %v1629 = vstv %s1628
    %v1630 = vmul.f32 %v1629, %v1446
    %v1631 = vmul.f32 %v1629, %v1447
    %v1632 = vadd.f32 %v1626, %v1630
    %v1633 = vadd.f32 %v1627, %v1631
    %s1634 = sld [smem:[#allocation10 + $0x5]]
    %v1635 = vstv %s1634
    %v1636 = vmul.f32 %v1635, %v1446
    %v1637 = vmul.f32 %v1635, %v1447
    %v1640 = vrot.slane %v1636, 1
    %v1641 = vrot.slane %v1637, 1
    %v1644 = vadd.f32 %v1632, %v1640
    %v1645 = vadd.f32 %v1633, %v1641
    %s1646 = sld [smem:[#allocation10 + $0x8]]
    %v1647 = vstv %s1646
    %v1648 = vmul.f32 %v1647, %v1446
    %v1649 = vmul.f32 %v1647, %v1447
    %v1652 = vrot.slane %v1648, 2
    %v1653 = vrot.slane %v1649, 2
    %v1656 = vadd.f32 %v1644, %v1652
    %v1657 = vadd.f32 %v1645, %v1653
    %s1658 = sld [smem:[#allocation10 + $0xb]]
    %v1659 = vstv %s1658
    %v1660 = vmul.f32 %v1659, %v1446
    %v1661 = vmul.f32 %v1659, %v1447
    %v1664 = vrot.slane %v1660, 3
    %v1665 = vrot.slane %v1661, 3
    %v1668 = vadd.f32 %v1656, %v1664
    %v1669 = vadd.f32 %v1657, %v1665
    %s1670 = sld [smem:[#allocation10 + $0xe]]
    %v1671 = vstv %s1670
    %v1672 = vmul.f32 %v1671, %v1446
    %v1673 = vmul.f32 %v1671, %v1447
    %v1676 = vrot.slane %v1672, 4
    %v1677 = vrot.slane %v1673, 4
    %v1680 = vadd.f32 %v1668, %v1676
    %v1681 = vadd.f32 %v1669, %v1677
    %s1682 = sld [smem:[#allocation10 + $0x11]]
    %v1683 = vstv %s1682
    %v1684 = vmul.f32 %v1683, %v1446
    %v1685 = vmul.f32 %v1683, %v1447
    %v1688 = vrot.slane %v1684, 5
    %v1689 = vrot.slane %v1685, 5
    %v1692 = vadd.f32 %v1680, %v1688
    %v1693 = vadd.f32 %v1681, %v1689
    %s1694 = sld [smem:[#allocation10 + $0x14]]
    %v1695 = vstv %s1694
    %v1696 = vmul.f32 %v1695, %v1446
    %v1697 = vmul.f32 %v1695, %v1447
    %v1700 = vrot.slane %v1696, 6
    %v1701 = vrot.slane %v1697, 6
    %v1704 = vadd.f32 %v1692, %v1700
    %v1705 = vadd.f32 %v1693, %v1701
    %s1706 = sld [smem:[#allocation10 + $0x17]]
    %v1707 = vstv %s1706
    %v1708 = vmul.f32 %v1707, %v1446
    %v1709 = vmul.f32 %v1707, %v1447
    %v1712 = vrot.slane %v1708, 7
    %v1713 = vrot.slane %v1709, 7
    %v1716 = vadd.f32 %v1704, %v1712
    %v1717 = vadd.f32 %v1705, %v1713
    %s1718 = sld [smem:[#allocation11]]
    %v1719 = vstv %s1718
    %v1720 = vadd.f32 %v1716, %v1719
    %v1721 = vadd.f32 %v1717, %v1719
    %v1722 = vmax.f32 %v1720, 0.0
    %v1723 = vmax.f32 %v1721, 0.0
    %s1724 = sld [smem:[#allocation10 + $0x18]]
    %v1725 = vstv %s1724
    %v1726 = vmul.f32 %v1725, %v1437
    %v1727 = vmul.f32 %v1725, %v1438
    %v1728 = vadd.f32 %v1726, 0.0
    %v1729 = vadd.f32 %v1727, 0.0
    %s1730 = sld [smem:[#allocation10 + $0x1b]]
    %v1731 = vstv %s1730
    %v1732 = vmul.f32 %v1731, %v1437
    %v1733 = vmul.f32 %v1731, %v1438
    %v1736 = vrot.slane %v1732, 1
    %v1737 = vrot.slane %v1733, 1
    %v1740 = vadd.f32 %v1728, %v1736
    %v1741 = vadd.f32 %v1729, %v1737
    %s1742 = sld [smem:[#allocation10 + $0x1e]]
    %v1743 = vstv %s1742
    %v1744 = vmul.f32 %v1743, %v1437
    %v1745 = vmul.f32 %v1743, %v1438
    %v1748 = vrot.slane %v1744, 2
    %v1749 = vrot.slane %v1745, 2
    %v1752 = vadd.f32 %v1740, %v1748
    %v1753 = vadd.f32 %v1741, %v1749
    %s1754 = sld [smem:[#allocation10 + $0x21]]
    %v1755 = vstv %s1754
    %v1756 = vmul.f32 %v1755, %v1437
    %v1757 = vmul.f32 %v1755, %v1438
    %v1760 = vrot.slane %v1756, 3
    %v1761 = vrot.slane %v1757, 3
    %v1764 = vadd.f32 %v1752, %v1760
    %v1765 = vadd.f32 %v1753, %v1761
    %s1766 = sld [smem:[#allocation10 + $0x24]]
    %v1767 = vstv %s1766
    %v1768 = vmul.f32 %v1767, %v1437
    %v1769 = vmul.f32 %v1767, %v1438
    %v1772 = vrot.slane %v1768, 4
    %v1773 = vrot.slane %v1769, 4
    %v1776 = vadd.f32 %v1764, %v1772
    %v1777 = vadd.f32 %v1765, %v1773
    %s1778 = sld [smem:[#allocation10 + $0x27]]
    %v1779 = vstv %s1778
    %v1780 = vmul.f32 %v1779, %v1437
    %v1781 = vmul.f32 %v1779, %v1438
    %v1784 = vrot.slane %v1780, 5
    %v1785 = vrot.slane %v1781, 5
    %v1788 = vadd.f32 %v1776, %v1784
    %v1789 = vadd.f32 %v1777, %v1785
    %s1790 = sld [smem:[#allocation10 + $0x2a]]
    %v1791 = vstv %s1790
    %v1792 = vmul.f32 %v1791, %v1437
    %v1793 = vmul.f32 %v1791, %v1438
    %v1796 = vrot.slane %v1792, 6
    %v1797 = vrot.slane %v1793, 6
    %v1800 = vadd.f32 %v1788, %v1796
    %v1801 = vadd.f32 %v1789, %v1797
    %s1802 = sld [smem:[#allocation10 + $0x2d]]
    %v1803 = vstv %s1802
    %v1804 = vmul.f32 %v1803, %v1437
    %v1805 = vmul.f32 %v1803, %v1438
    %v1808 = vrot.slane %v1804, 7
    %v1809 = vrot.slane %v1805, 7
    %v1812 = vadd.f32 %v1800, %v1808
    %v1813 = vadd.f32 %v1801, %v1809
    %s1814 = sld [smem:[#allocation10 + $0x19]]
    %v1815 = vstv %s1814
    %v1816 = vmul.f32 %v1815, %v1426
    %v1817 = vmul.f32 %v1815, %v1427
    %v1818 = vadd.f32 %v1812, %v1816
    %v1819 = vadd.f32 %v1813, %v1817
    %s1820 = sld [smem:[#allocation10 + $0x1c]]
    %v1821 = vstv %s1820
    %v1822 = vmul.f32 %v1821, %v1426
    %v1823 = vmul.f32 %v1821, %v1427
    %v1826 = vrot.slane %v1822, 1
    %v1827 = vrot.slane %v1823, 1
    %v1830 = vadd.f32 %v1818, %v1826
    %v1831 = vadd.f32 %v1819, %v1827
    %s1832 = sld [smem:[#allocation10 + $0x1f]]
    %v1833 = vstv %s1832
    %v1834 = vmul.f32 %v1833, %v1426
    %v1835 = vmul.f32 %v1833, %v1427
    %v1838 = vrot.slane %v1834, 2
    %v1839 = vrot.slane %v1835, 2
    %v1842 = vadd.f32 %v1830, %v1838
    %v1843 = vadd.f32 %v1831, %v1839
    %s1844 = sld [smem:[#allocation10 + $0x22]]
    %v1845 = vstv %s1844
    %v1846 = vmul.f32 %v1845, %v1426
    %v1847 = vmul.f32 %v1845, %v1427
    %v1850 = vrot.slane %v1846, 3
    %v1851 = vrot.slane %v1847, 3
    %v1854 = vadd.f32 %v1842, %v1850
    %v1855 = vadd.f32 %v1843, %v1851
    %s1856 = sld [smem:[#allocation10 + $0x25]]
    %v1857 = vstv %s1856
    %v1858 = vmul.f32 %v1857, %v1426
    %v1859 = vmul.f32 %v1857, %v1427
    %v1862 = vrot.slane %v1858, 4
    %v1863 = vrot.slane %v1859, 4
    %v1866 = vadd.f32 %v1854, %v1862
    %v1867 = vadd.f32 %v1855, %v1863
    %s1868 = sld [smem:[#allocation10 + $0x28]]
    %v1869 = vstv %s1868
    %v1870 = vmul.f32 %v1869, %v1426
    %v1871 = vmul.f32 %v1869, %v1427
    %v1874 = vrot.slane %v1870, 5
    %v1875 = vrot.slane %v1871, 5
    %v1878 = vadd.f32 %v1866, %v1874
    %v1879 = vadd.f32 %v1867, %v1875
    %s1880 = sld [smem:[#allocation10 + $0x2b]]
    %v1881 = vstv %s1880
    %v1882 = vmul.f32 %v1881, %v1426
    %v1883 = vmul.f32 %v1881, %v1427
    %v1886 = vrot.slane %v1882, 6
    %v1887 = vrot.slane %v1883, 6
    %v1890 = vadd.f32 %v1878, %v1886
    %v1891 = vadd.f32 %v1879, %v1887
    %s1892 = sld [smem:[#allocation10 + $0x2e]]
    %v1893 = vstv %s1892
    %v1894 = vmul.f32 %v1893, %v1426
    %v1895 = vmul.f32 %v1893, %v1427
    %v1898 = vrot.slane %v1894, 7
    %v1899 = vrot.slane %v1895, 7
    %v1902 = vadd.f32 %v1890, %v1898
    %v1903 = vadd.f32 %v1891, %v1899
    %s1904 = sld [smem:[#allocation10 + $0x1a]]
    %v1905 = vstv %s1904
    %v1906 = vmul.f32 %v1905, %v1446
    %v1907 = vmul.f32 %v1905, %v1447
    %v1908 = vadd.f32 %v1902, %v1906
    %v1909 = vadd.f32 %v1903, %v1907
    %s1910 = sld [smem:[#allocation10 + $0x1d]]
    %v1911 = vstv %s1910
    %v1912 = vmul.f32 %v1911, %v1446
    %v1913 = vmul.f32 %v1911, %v1447
    %v1916 = vrot.slane %v1912, 1
    %v1917 = vrot.slane %v1913, 1
    %v1920 = vadd.f32 %v1908, %v1916
    %v1921 = vadd.f32 %v1909, %v1917
    %s1922 = sld [smem:[#allocation10 + $0x20]]
    %v1923 = vstv %s1922
    %v1924 = vmul.f32 %v1923, %v1446
    %v1925 = vmul.f32 %v1923, %v1447
    %v1928 = vrot.slane %v1924, 2
    %v1929 = vrot.slane %v1925, 2
    %v1932 = vadd.f32 %v1920, %v1928
    %v1933 = vadd.f32 %v1921, %v1929
    %s1934 = sld [smem:[#allocation10 + $0x23]]
    %v1935 = vstv %s1934
    %v1936 = vmul.f32 %v1935, %v1446
    %v1937 = vmul.f32 %v1935, %v1447
    %v1940 = vrot.slane %v1936, 3
    %v1941 = vrot.slane %v1937, 3
    %v1944 = vadd.f32 %v1932, %v1940
    %v1945 = vadd.f32 %v1933, %v1941
    %s1946 = sld [smem:[#allocation10 + $0x26]]
    %v1947 = vstv %s1946
    %v1948 = vmul.f32 %v1947, %v1446
    %v1949 = vmul.f32 %v1947, %v1447
    %v1952 = vrot.slane %v1948, 4
    %v1953 = vrot.slane %v1949, 4
    %v1956 = vadd.f32 %v1944, %v1952
    %v1957 = vadd.f32 %v1945, %v1953
    %s1958 = sld [smem:[#allocation10 + $0x29]]
    %v1959 = vstv %s1958
    %v1960 = vmul.f32 %v1959, %v1446
    %v1961 = vmul.f32 %v1959, %v1447
    %v1964 = vrot.slane %v1960, 5
    %v1965 = vrot.slane %v1961, 5
    %v1968 = vadd.f32 %v1956, %v1964
    %v1969 = vadd.f32 %v1957, %v1965
    %s1970 = sld [smem:[#allocation10 + $0x2c]]
    %v1971 = vstv %s1970
    %v1972 = vmul.f32 %v1971, %v1446
    %v1973 = vmul.f32 %v1971, %v1447
    %v1976 = vrot.slane %v1972, 6
    %v1977 = vrot.slane %v1973, 6
    %v1980 = vadd.f32 %v1968, %v1976
    %v1981 = vadd.f32 %v1969, %v1977
    %s1982 = sld [smem:[#allocation10 + $0x2f]]
    %v1983 = vstv %s1982
    %v1984 = vmul.f32 %v1983, %v1446
    %v1985 = vmul.f32 %v1983, %v1447
    %v1988 = vrot.slane %v1984, 7
    %v1989 = vrot.slane %v1985, 7
    %v1992 = vadd.f32 %v1980, %v1988
    %v1993 = vadd.f32 %v1981, %v1989
    %s1994 = sld [smem:[#allocation11 + $0x1]]
    %v1995 = vstv %s1994
    %v1996 = vadd.f32 %v1992, %v1995
    %v1997 = vadd.f32 %v1993, %v1995
    %v1998 = vmax.f32 %v1996, 0.0
    %v1999 = vmax.f32 %v1997, 0.0
    %s2000 = sld [smem:[#allocation10 + $0x30]]
    %v2001 = vstv %s2000
    %v2002 = vmul.f32 %v2001, %v1437
    %v2003 = vmul.f32 %v2001, %v1438
    %v2004 = vadd.f32 %v2002, 0.0
    %v2005 = vadd.f32 %v2003, 0.0
    %s2006 = sld [smem:[#allocation10 + $0x33]]
    %v2007 = vstv %s2006
    %v2008 = vmul.f32 %v2007, %v1437
    %v2009 = vmul.f32 %v2007, %v1438
    %v2012 = vrot.slane %v2008, 1
    %v2013 = vrot.slane %v2009, 1
    %v2016 = vadd.f32 %v2004, %v2012
    %v2017 = vadd.f32 %v2005, %v2013
    %s2018 = sld [smem:[#allocation10 + $0x36]]
    %v2019 = vstv %s2018
    %v2020 = vmul.f32 %v2019, %v1437
    %v2021 = vmul.f32 %v2019, %v1438
    %v2024 = vrot.slane %v2020, 2
    %v2025 = vrot.slane %v2021, 2
    %v2028 = vadd.f32 %v2016, %v2024
    %v2029 = vadd.f32 %v2017, %v2025
    %s2030 = sld [smem:[#allocation10 + $0x39]]
    %v2031 = vstv %s2030
    %v2032 = vmul.f32 %v2031, %v1437
    %v2033 = vmul.f32 %v2031, %v1438
    %v2036 = vrot.slane %v2032, 3
    %v2037 = vrot.slane %v2033, 3
    %v2040 = vadd.f32 %v2028, %v2036
    %v2041 = vadd.f32 %v2029, %v2037
    %s2042 = sld [smem:[#allocation10 + $0x3c]]
    %v2043 = vstv %s2042
    %v2044 = vmul.f32 %v2043, %v1437
    %v2045 = vmul.f32 %v2043, %v1438
    %v2048 = vrot.slane %v2044, 4
    %v2049 = vrot.slane %v2045, 4
    %v2052 = vadd.f32 %v2040, %v2048
    %v2053 = vadd.f32 %v2041, %v2049
    %s2054 = sld [smem:[#allocation10 + $0x3f]]
    %v2055 = vstv %s2054
    %v2056 = vmul.f32 %v2055, %v1437
    %v2057 = vmul.f32 %v2055, %v1438
    %v2060 = vrot.slane %v2056, 5
    %v2061 = vrot.slane %v2057, 5
    %v2064 = vadd.f32 %v2052, %v2060
    %v2065 = vadd.f32 %v2053, %v2061
    %s2066 = sld [smem:[#allocation10 + $0x42]]
    %v2067 = vstv %s2066
    %v2068 = vmul.f32 %v2067, %v1437
    %v2069 = vmul.f32 %v2067, %v1438
    %v2072 = vrot.slane %v2068, 6
    %v2073 = vrot.slane %v2069, 6
    %v2076 = vadd.f32 %v2064, %v2072
    %v2077 = vadd.f32 %v2065, %v2073
    %s2078 = sld [smem:[#allocation10 + $0x45]]
    %v2079 = vstv %s2078
    %v2080 = vmul.f32 %v2079, %v1437
    %v2081 = vmul.f32 %v2079, %v1438
    %v2084 = vrot.slane %v2080, 7
    %v2085 = vrot.slane %v2081, 7
    %v2088 = vadd.f32 %v2076, %v2084
    %v2089 = vadd.f32 %v2077, %v2085
    %s2090 = sld [smem:[#allocation10 + $0x31]]
    %v2091 = vstv %s2090
    %v2092 = vmul.f32 %v2091, %v1426
    %v2093 = vmul.f32 %v2091, %v1427
    %v2094 = vadd.f32 %v2088, %v2092
    %v2095 = vadd.f32 %v2089, %v2093
    %s2096 = sld [smem:[#allocation10 + $0x34]]
    %v2097 = vstv %s2096
    %v2098 = vmul.f32 %v2097, %v1426
    %v2099 = vmul.f32 %v2097, %v1427
    %v2102 = vrot.slane %v2098, 1
    %v2103 = vrot.slane %v2099, 1
    %v2106 = vadd.f32 %v2094, %v2102
    %v2107 = vadd.f32 %v2095, %v2103
    %s2108 = sld [smem:[#allocation10 + $0x37]]
    %v2109 = vstv %s2108
    %v2110 = vmul.f32 %v2109, %v1426
    %v2111 = vmul.f32 %v2109, %v1427
    %v2114 = vrot.slane %v2110, 2
    %v2115 = vrot.slane %v2111, 2
    %v2118 = vadd.f32 %v2106, %v2114
    %v2119 = vadd.f32 %v2107, %v2115
    %s2120 = sld [smem:[#allocation10 + $0x3a]]
    %v2121 = vstv %s2120
    %v2122 = vmul.f32 %v2121, %v1426
    %v2123 = vmul.f32 %v2121, %v1427
    %v2126 = vrot.slane %v2122, 3
    %v2127 = vrot.slane %v2123, 3
    %v2130 = vadd.f32 %v2118, %v2126
    %v2131 = vadd.f32 %v2119, %v2127
    %s2132 = sld [smem:[#allocation10 + $0x3d]]
    %v2133 = vstv %s2132
    %v2134 = vmul.f32 %v2133, %v1426
    %v2135 = vmul.f32 %v2133, %v1427
    %v2138 = vrot.slane %v2134, 4
    %v2139 = vrot.slane %v2135, 4
    %v2142 = vadd.f32 %v2130, %v2138
    %v2143 = vadd.f32 %v2131, %v2139
    %s2144 = sld [smem:[#allocation10 + $0x40]]
    %v2145 = vstv %s2144
    %v2146 = vmul.f32 %v2145, %v1426
    %v2147 = vmul.f32 %v2145, %v1427
    %v2150 = vrot.slane %v2146, 5
    %v2151 = vrot.slane %v2147, 5
    %v2154 = vadd.f32 %v2142, %v2150
    %v2155 = vadd.f32 %v2143, %v2151
    %s2156 = sld [smem:[#allocation10 + $0x43]]
    %v2157 = vstv %s2156
    %v2158 = vmul.f32 %v2157, %v1426
    %v2159 = vmul.f32 %v2157, %v1427
    %v2162 = vrot.slane %v2158, 6
    %v2163 = vrot.slane %v2159, 6
    %v2166 = vadd.f32 %v2154, %v2162
    %v2167 = vadd.f32 %v2155, %v2163
    %s2168 = sld [smem:[#allocation10 + $0x46]]
    %v2169 = vstv %s2168
    %v2170 = vmul.f32 %v2169, %v1426
    %v2171 = vmul.f32 %v2169, %v1427
    %v2174 = vrot.slane %v2170, 7
    %v2175 = vrot.slane %v2171, 7
    %v2178 = vadd.f32 %v2166, %v2174
    %v2179 = vadd.f32 %v2167, %v2175
    %s2180 = sld [smem:[#allocation10 + $0x32]]
    %v2181 = vstv %s2180
    %v2182 = vmul.f32 %v2181, %v1446
    %v2183 = vmul.f32 %v2181, %v1447
    %v2184 = vadd.f32 %v2178, %v2182
    %v2185 = vadd.f32 %v2179, %v2183
    %s2186 = sld [smem:[#allocation10 + $0x35]]
    %v2187 = vstv %s2186
    %v2188 = vmul.f32 %v2187, %v1446
    %v2189 = vmul.f32 %v2187, %v1447
    %v2192 = vrot.slane %v2188, 1
    %v2193 = vrot.slane %v2189, 1
    %v2196 = vadd.f32 %v2184, %v2192
    %v2197 = vadd.f32 %v2185, %v2193
    %s2198 = sld [smem:[#allocation10 + $0x38]]
    %v2199 = vstv %s2198
    %v2200 = vmul.f32 %v2199, %v1446
    %v2201 = vmul.f32 %v2199, %v1447
    %v2204 = vrot.slane %v2200, 2
    %v2205 = vrot.slane %v2201, 2
    %v2208 = vadd.f32 %v2196, %v2204
    %v2209 = vadd.f32 %v2197, %v2205
    %s2210 = sld [smem:[#allocation10 + $0x3b]]
    %v2211 = vstv %s2210
    %v2212 = vmul.f32 %v2211, %v1446
    %v2213 = vmul.f32 %v2211, %v1447
    %v2216 = vrot.slane %v2212, 3
    %v2217 = vrot.slane %v2213, 3
    %v2220 = vadd.f32 %v2208, %v2216
    %v2221 = vadd.f32 %v2209, %v2217
    %s2222 = sld [smem:[#allocation10 + $0x3e]]
    %v2223 = vstv %s2222
    %v2224 = vmul.f32 %v2223, %v1446
    %v2225 = vmul.f32 %v2223, %v1447
    %v2228 = vrot.slane %v2224, 4
    %v2229 = vrot.slane %v2225, 4
    %v2232 = vadd.f32 %v2220, %v2228
    %v2233 = vadd.f32 %v2221, %v2229
    %s2234 = sld [smem:[#allocation10 + $0x41]]
    %v2235 = vstv %s2234
    %v2236 = vmul.f32 %v2235, %v1446
    %v2237 = vmul.f32 %v2235, %v1447
    %v2240 = vrot.slane %v2236, 5
    %v2241 = vrot.slane %v2237, 5
    %v2244 = vadd.f32 %v2232, %v2240
    %v2245 = vadd.f32 %v2233, %v2241
    %s2246 = sld [smem:[#allocation10 + $0x44]]
    %v2247 = vstv %s2246
    %v2248 = vmul.f32 %v2247, %v1446
    %v2249 = vmul.f32 %v2247, %v1447
    %v2252 = vrot.slane %v2248, 6
    %v2253 = vrot.slane %v2249, 6
    %v2256 = vadd.f32 %v2244, %v2252
    %v2257 = vadd.f32 %v2245, %v2253
    %s2258 = sld [smem:[#allocation10 + $0x47]]
    %v2259 = vstv %s2258
    %v2260 = vmul.f32 %v2259, %v1446
    %v2261 = vmul.f32 %v2259, %v1447
    %v2264 = vrot.slane %v2260, 7
    %v2265 = vrot.slane %v2261, 7
    %v2268 = vadd.f32 %v2256, %v2264
    %v2269 = vadd.f32 %v2257, %v2265
    %s2270 = sld [smem:[#allocation11 + $0x2]]
    %v2271 = vstv %s2270
    %v2272 = vadd.f32 %v2268, %v2271
    %v2273 = vadd.f32 %v2269, %v2271
    %v2274 = vmax.f32 %v2272, 0.0
    %v2275 = vmax.f32 %v2273, 0.0
    %s2276 = sld [smem:[#allocation10 + $0x48]]
    %v2277 = vstv %s2276
    %v2278 = vmul.f32 %v2277, %v1437
    %v2279 = vmul.f32 %v2277, %v1438
    %v2280 = vadd.f32 %v2278, 0.0
    %v2281 = vadd.f32 %v2279, 0.0
    %s2282 = sld [smem:[#allocation10 + $0x4b]]
    %v2283 = vstv %s2282
    %v2284 = vmul.f32 %v2283, %v1437
    %v2285 = vmul.f32 %v2283, %v1438
    %v2288 = vrot.slane %v2284, 1
    %v2289 = vrot.slane %v2285, 1
    %v2292 = vadd.f32 %v2280, %v2288
    %v2293 = vadd.f32 %v2281, %v2289
    %s2294 = sld [smem:[#allocation10 + $0x4e]]
    %v2295 = vstv %s2294
    %v2296 = vmul.f32 %v2295, %v1437
    %v2297 = vmul.f32 %v2295, %v1438
    %v2300 = vrot.slane %v2296, 2
    %v2301 = vrot.slane %v2297, 2
    %v2304 = vadd.f32 %v2292, %v2300
    %v2305 = vadd.f32 %v2293, %v2301
    %s2306 = sld [smem:[#allocation10 + $0x51]]
    %v2307 = vstv %s2306
    %v2308 = vmul.f32 %v2307, %v1437
    %v2309 = vmul.f32 %v2307, %v1438
    %v2312 = vrot.slane %v2308, 3
    %v2313 = vrot.slane %v2309, 3
    %v2316 = vadd.f32 %v2304, %v2312
    %v2317 = vadd.f32 %v2305, %v2313
    %s2318 = sld [smem:[#allocation10 + $0x54]]
    %v2319 = vstv %s2318
    %v2320 = vmul.f32 %v2319, %v1437
    %v2321 = vmul.f32 %v2319, %v1438
    %v2324 = vrot.slane %v2320, 4
    %v2325 = vrot.slane %v2321, 4
    %v2328 = vadd.f32 %v2316, %v2324
    %v2329 = vadd.f32 %v2317, %v2325
    %s2330 = sld [smem:[#allocation10 + $0x57]]
    %v2331 = vstv %s2330
    %v2332 = vmul.f32 %v2331, %v1437
    %v2333 = vmul.f32 %v2331, %v1438
    %v2336 = vrot.slane %v2332, 5
    %v2337 = vrot.slane %v2333, 5
    %v2340 = vadd.f32 %v2328, %v2336
    %v2341 = vadd.f32 %v2329, %v2337
    %s2342 = sld [smem:[#allocation10 + $0x5a]]
    %v2343 = vstv %s2342
    %v2344 = vmul.f32 %v2343, %v1437
    %v2345 = vmul.f32 %v2343, %v1438
    %v2348 = vrot.slane %v2344, 6
    %v2349 = vrot.slane %v2345, 6
    %v2352 = vadd.f32 %v2340, %v2348
    %v2353 = vadd.f32 %v2341, %v2349
    %s2354 = sld [smem:[#allocation10 + $0x5d]]
    %v2355 = vstv %s2354
    %v2356 = vmul.f32 %v2355, %v1437
    %v2357 = vmul.f32 %v2355, %v1438
    %v2360 = vrot.slane %v2356, 7
    %v2361 = vrot.slane %v2357, 7
    %v2364 = vadd.f32 %v2352, %v2360
    %v2365 = vadd.f32 %v2353, %v2361
    %s2366 = sld [smem:[#allocation10 + $0x49]]
    %v2367 = vstv %s2366
    %v2368 = vmul.f32 %v2367, %v1426
    %v2369 = vmul.f32 %v2367, %v1427
    %v2370 = vadd.f32 %v2364, %v2368
    %v2371 = vadd.f32 %v2365, %v2369
    %s2372 = sld [smem:[#allocation10 + $0x4c]]
    %v2373 = vstv %s2372
    %v2374 = vmul.f32 %v2373, %v1426
    %v2375 = vmul.f32 %v2373, %v1427
    %v2378 = vrot.slane %v2374, 1
    %v2379 = vrot.slane %v2375, 1
    %v2382 = vadd.f32 %v2370, %v2378
    %v2383 = vadd.f32 %v2371, %v2379
    %s2384 = sld [smem:[#allocation10 + $0x4f]]
    %v2385 = vstv %s2384
    %v2386 = vmul.f32 %v2385, %v1426
    %v2387 = vmul.f32 %v2385, %v1427
    %v2390 = vrot.slane %v2386, 2
    %v2391 = vrot.slane %v2387, 2
    %v2394 = vadd.f32 %v2382, %v2390
    %v2395 = vadd.f32 %v2383, %v2391
    %s2396 = sld [smem:[#allocation10 + $0x52]]
    %v2397 = vstv %s2396
    %v2398 = vmul.f32 %v2397, %v1426
    %v2399 = vmul.f32 %v2397, %v1427
    %v2402 = vrot.slane %v2398, 3
    %v2403 = vrot.slane %v2399, 3
    %v2406 = vadd.f32 %v2394, %v2402
    %v2407 = vadd.f32 %v2395, %v2403
    %s2408 = sld [smem:[#allocation10 + $0x55]]
    %v2409 = vstv %s2408
    %v2410 = vmul.f32 %v2409, %v1426
    %v2411 = vmul.f32 %v2409, %v1427
    %v2414 = vrot.slane %v2410, 4
    %v2415 = vrot.slane %v2411, 4
    %v2418 = vadd.f32 %v2406, %v2414
    %v2419 = vadd.f32 %v2407, %v2415
    %s2420 = sld [smem:[#allocation10 + $0x58]]
    %v2421 = vstv %s2420
    %v2422 = vmul.f32 %v2421, %v1426
    %v2423 = vmul.f32 %v2421, %v1427
    %v2426 = vrot.slane %v2422, 5
    %v2427 = vrot.slane %v2423, 5
    %v2430 = vadd.f32 %v2418, %v2426
    %v2431 = vadd.f32 %v2419, %v2427
    %s2432 = sld [smem:[#allocation10 + $0x5b]]
    %v2433 = vstv %s2432
    %v2434 = vmul.f32 %v2433, %v1426
    %v2435 = vmul.f32 %v2433, %v1427
    %v2438 = vrot.slane %v2434, 6
    %v2439 = vrot.slane %v2435, 6
    %v2442 = vadd.f32 %v2430, %v2438
    %v2443 = vadd.f32 %v2431, %v2439
    %s2444 = sld [smem:[#allocation10 + $0x5e]]
    %v2445 = vstv %s2444
    %v2446 = vmul.f32 %v2445, %v1426
    %v2447 = vmul.f32 %v2445, %v1427
    %v2450 = vrot.slane %v2446, 7
    %v2451 = vrot.slane %v2447, 7
    %v2454 = vadd.f32 %v2442, %v2450
    %v2455 = vadd.f32 %v2443, %v2451
    %s2456 = sld [smem:[#allocation10 + $0x4a]]
    %v2457 = vstv %s2456
    %v2458 = vmul.f32 %v2457, %v1446
    %v2459 = vmul.f32 %v2457, %v1447
    %v2460 = vadd.f32 %v2454, %v2458
    %v2461 = vadd.f32 %v2455, %v2459
    %s2462 = sld [smem:[#allocation10 + $0x4d]]
    %v2463 = vstv %s2462
    %v2464 = vmul.f32 %v2463, %v1446
    %v2465 = vmul.f32 %v2463, %v1447
    %v2468 = vrot.slane %v2464, 1
    %v2469 = vrot.slane %v2465, 1
    %v2472 = vadd.f32 %v2460, %v2468
    %v2473 = vadd.f32 %v2461, %v2469
    %s2474 = sld [smem:[#allocation10 + $0x50]]
    %v2475 = vstv %s2474
    %v2476 = vmul.f32 %v2475, %v1446
    %v2477 = vmul.f32 %v2475, %v1447
    %v2480 = vrot.slane %v2476, 2
    %v2481 = vrot.slane %v2477, 2
    %v2484 = vadd.f32 %v2472, %v2480
    %v2485 = vadd.f32 %v2473, %v2481
    %s2486 = sld [smem:[#allocation10 + $0x53]]
    %v2487 = vstv %s2486
    %v2488 = vmul.f32 %v2487, %v1446
    %v2489 = vmul.f32 %v2487, %v1447
    %v2492 = vrot.slane %v2488, 3
    %v2493 = vrot.slane %v2489, 3
    %v2496 = vadd.f32 %v2484, %v2492
    %v2497 = vadd.f32 %v2485, %v2493
    %s2498 = sld [smem:[#allocation10 + $0x56]]
    %v2499 = vstv %s2498
    %v2500 = vmul.f32 %v2499, %v1446
    %v2501 = vmul.f32 %v2499, %v1447
    %v2504 = vrot.slane %v2500, 4
    %v2505 = vrot.slane %v2501, 4
    %v2508 = vadd.f32 %v2496, %v2504
    %v2509 = vadd.f32 %v2497, %v2505
    %s2510 = sld [smem:[#allocation10 + $0x59]]
    %v2511 = vstv %s2510
    %v2512 = vmul.f32 %v2511, %v1446
    %v2513 = vmul.f32 %v2511, %v1447
    %v2516 = vrot.slane %v2512, 5
    %v2517 = vrot.slane %v2513, 5
    %v2520 = vadd.f32 %v2508, %v2516
    %v2521 = vadd.f32 %v2509, %v2517
    %s2522 = sld [smem:[#allocation10 + $0x5c]]
    %v2523 = vstv %s2522
    %v2524 = vmul.f32 %v2523, %v1446
    %v2525 = vmul.f32 %v2523, %v1447
    %v2528 = vrot.slane %v2524, 6
    %v2529 = vrot.slane %v2525, 6
    %v2532 = vadd.f32 %v2520, %v2528
    %v2533 = vadd.f32 %v2521, %v2529
    %s2534 = sld [smem:[#allocation10 + $0x5f]]
    %v2535 = vstv %s2534
    %v2536 = vmul.f32 %v2535, %v1446
    %v2537 = vmul.f32 %v2535, %v1447
    %v2540 = vrot.slane %v2536, 7
    %v2541 = vrot.slane %v2537, 7
    %v2544 = vadd.f32 %v2532, %v2540
    %v2545 = vadd.f32 %v2533, %v2541
    %s2546 = sld [smem:[#allocation11 + $0x3]]
    %v2547 = vstv %s2546
    %v2548 = vadd.f32 %v2544, %v2547
    %v2549 = vadd.f32 %v2545, %v2547
    %v2550 = vmax.f32 %v2548, 0.0
    %v2551 = vmax.f32 %v2549, 0.0
    %s2552 = sld [smem:[#allocation10 + $0x60]]
    %v2553 = vstv %s2552
    %v2554 = vmul.f32 %v2553, %v1437
    %v2555 = vmul.f32 %v2553, %v1438
    %v2556 = vadd.f32 %v2554, 0.0
    %v2557 = vadd.f32 %v2555, 0.0
    %s2558 = sld [smem:[#allocation10 + $0x63]]
    %v2559 = vstv %s2558
    %v2560 = vmul.f32 %v2559, %v1437
    %v2561 = vmul.f32 %v2559, %v1438
    %v2564 = vrot.slane %v2560, 1
    %v2565 = vrot.slane %v2561, 1
    %v2568 = vadd.f32 %v2556, %v2564
    %v2569 = vadd.f32 %v2557, %v2565
    %s2570 = sld [smem:[#allocation10 + $0x66]]
    %v2571 = vstv %s2570
    %v2572 = vmul.f32 %v2571, %v1437
    %v2573 = vmul.f32 %v2571, %v1438
    %v2576 = vrot.slane %v2572, 2
    %v2577 = vrot.slane %v2573, 2
    %v2580 = vadd.f32 %v2568, %v2576
    %v2581 = vadd.f32 %v2569, %v2577
    %s2582 = sld [smem:[#allocation10 + $0x69]]
    %v2583 = vstv %s2582
    %v2584 = vmul.f32 %v2583, %v1437
    %v2585 = vmul.f32 %v2583, %v1438
    %v2588 = vrot.slane %v2584, 3
    %v2589 = vrot.slane %v2585, 3
    %v2592 = vadd.f32 %v2580, %v2588
    %v2593 = vadd.f32 %v2581, %v2589
    %s2594 = sld [smem:[#allocation10 + $0x6c]]
    %v2595 = vstv %s2594
    %v2596 = vmul.f32 %v2595, %v1437
    %v2597 = vmul.f32 %v2595, %v1438
    %v2600 = vrot.slane %v2596, 4
    %v2601 = vrot.slane %v2597, 4
    %v2604 = vadd.f32 %v2592, %v2600
    %v2605 = vadd.f32 %v2593, %v2601
    %s2606 = sld [smem:[#allocation10 + $0x6f]]
    %v2607 = vstv %s2606
    %v2608 = vmul.f32 %v2607, %v1437
    %v2609 = vmul.f32 %v2607, %v1438
    %v2612 = vrot.slane %v2608, 5
    %v2613 = vrot.slane %v2609, 5
    %v2616 = vadd.f32 %v2604, %v2612
    %v2617 = vadd.f32 %v2605, %v2613
    %s2618 = sld [smem:[#allocation10 + $0x72]]
    %v2619 = vstv %s2618
    %v2620 = vmul.f32 %v2619, %v1437
    %v2621 = vmul.f32 %v2619, %v1438
    %v2624 = vrot.slane %v2620, 6
    %v2625 = vrot.slane %v2621, 6
    %v2628 = vadd.f32 %v2616, %v2624
    %v2629 = vadd.f32 %v2617, %v2625
    %s2630 = sld [smem:[#allocation10 + $0x75]]
    %v2631 = vstv %s2630
    %v2632 = vmul.f32 %v2631, %v1437
    %v2633 = vmul.f32 %v2631, %v1438
    %v2636 = vrot.slane %v2632, 7
    %v2637 = vrot.slane %v2633, 7
    %v2640 = vadd.f32 %v2628, %v2636
    %v2641 = vadd.f32 %v2629, %v2637
    %s2642 = sld [smem:[#allocation10 + $0x61]]
    %v2643 = vstv %s2642
    %v2644 = vmul.f32 %v2643, %v1426
    %v2645 = vmul.f32 %v2643, %v1427
    %v2646 = vadd.f32 %v2640, %v2644
    %v2647 = vadd.f32 %v2641, %v2645
    %s2648 = sld [smem:[#allocation10 + $0x64]]
    %v2649 = vstv %s2648
    %v2650 = vmul.f32 %v2649, %v1426
    %v2651 = vmul.f32 %v2649, %v1427
    %v2654 = vrot.slane %v2650, 1
    %v2655 = vrot.slane %v2651, 1
    %v2658 = vadd.f32 %v2646, %v2654
    %v2659 = vadd.f32 %v2647, %v2655
    %s2660 = sld [smem:[#allocation10 + $0x67]]
    %v2661 = vstv %s2660
    %v2662 = vmul.f32 %v2661, %v1426
    %v2663 = vmul.f32 %v2661, %v1427
    %v2666 = vrot.slane %v2662, 2
    %v2667 = vrot.slane %v2663, 2
    %v2670 = vadd.f32 %v2658, %v2666
    %v2671 = vadd.f32 %v2659, %v2667
    %s2672 = sld [smem:[#allocation10 + $0x6a]]
    %v2673 = vstv %s2672
    %v2674 = vmul.f32 %v2673, %v1426
    %v2675 = vmul.f32 %v2673, %v1427
    %v2678 = vrot.slane %v2674, 3
    %v2679 = vrot.slane %v2675, 3
    %v2682 = vadd.f32 %v2670, %v2678
    %v2683 = vadd.f32 %v2671, %v2679
    %s2684 = sld [smem:[#allocation10 + $0x6d]]
    %v2685 = vstv %s2684
    %v2686 = vmul.f32 %v2685, %v1426
    %v2687 = vmul.f32 %v2685, %v1427
    %v2690 = vrot.slane %v2686, 4
    %v2691 = vrot.slane %v2687, 4
    %v2694 = vadd.f32 %v2682, %v2690
    %v2695 = vadd.f32 %v2683, %v2691
    %s2696 = sld [smem:[#allocation10 + $0x70]]
    %v2697 = vstv %s2696
    %v2698 = vmul.f32 %v2697, %v1426
    %v2699 = vmul.f32 %v2697, %v1427
    %v2702 = vrot.slane %v2698, 5
    %v2703 = vrot.slane %v2699, 5
    %v2706 = vadd.f32 %v2694, %v2702
    %v2707 = vadd.f32 %v2695, %v2703
    %s2708 = sld [smem:[#allocation10 + $0x73]]
    %v2709 = vstv %s2708
    %v2710 = vmul.f32 %v2709, %v1426
    %v2711 = vmul.f32 %v2709, %v1427
    %v2714 = vrot.slane %v2710, 6
    %v2715 = vrot.slane %v2711, 6
    %v2718 = vadd.f32 %v2706, %v2714
    %v2719 = vadd.f32 %v2707, %v2715
    %s2720 = sld [smem:[#allocation10 + $0x76]]
    %v2721 = vstv %s2720
    %v2722 = vmul.f32 %v2721, %v1426
    %v2723 = vmul.f32 %v2721, %v1427
    %v2726 = vrot.slane %v2722, 7
    %v2727 = vrot.slane %v2723, 7
    %v2730 = vadd.f32 %v2718, %v2726
    %v2731 = vadd.f32 %v2719, %v2727
    %s2732 = sld [smem:[#allocation10 + $0x62]]
    %v2733 = vstv %s2732
    %v2734 = vmul.f32 %v2733, %v1446
    %v2735 = vmul.f32 %v2733, %v1447
    %v2736 = vadd.f32 %v2730, %v2734
    %v2737 = vadd.f32 %v2731, %v2735
    %s2738 = sld [smem:[#allocation10 + $0x65]]
    %v2739 = vstv %s2738
    %v2740 = vmul.f32 %v2739, %v1446
    %v2741 = vmul.f32 %v2739, %v1447
    %v2744 = vrot.slane %v2740, 1
    %v2745 = vrot.slane %v2741, 1
    %v2748 = vadd.f32 %v2736, %v2744
    %v2749 = vadd.f32 %v2737, %v2745
    %s2750 = sld [smem:[#allocation10 + $0x68]]
    %v2751 = vstv %s2750
    %v2752 = vmul.f32 %v2751, %v1446
    %v2753 = vmul.f32 %v2751, %v1447
    %v2756 = vrot.slane %v2752, 2
    %v2757 = vrot.slane %v2753, 2
    %v2760 = vadd.f32 %v2748, %v2756
    %v2761 = vadd.f32 %v2749, %v2757
    %s2762 = sld [smem:[#allocation10 + $0x6b]]
    %v2763 = vstv %s2762
    %v2764 = vmul.f32 %v2763, %v1446
    %v2765 = vmul.f32 %v2763, %v1447
    %v2768 = vrot.slane %v2764, 3
    %v2769 = vrot.slane %v2765, 3
    %v2772 = vadd.f32 %v2760, %v2768
    %v2773 = vadd.f32 %v2761, %v2769
    %s2774 = sld [smem:[#allocation10 + $0x6e]]
    %v2775 = vstv %s2774
    %v2776 = vmul.f32 %v2775, %v1446
    %v2777 = vmul.f32 %v2775, %v1447
    %v2780 = vrot.slane %v2776, 4
    %v2781 = vrot.slane %v2777, 4
    %v2784 = vadd.f32 %v2772, %v2780
    %v2785 = vadd.f32 %v2773, %v2781
    %s2786 = sld [smem:[#allocation10 + $0x71]]
    %v2787 = vstv %s2786
    %v2788 = vmul.f32 %v2787, %v1446
    %v2789 = vmul.f32 %v2787, %v1447
    %v2792 = vrot.slane %v2788, 5
    %v2793 = vrot.slane %v2789, 5
    %v2796 = vadd.f32 %v2784, %v2792
    %v2797 = vadd.f32 %v2785, %v2793
    %s2798 = sld [smem:[#allocation10 + $0x74]]
    %v2799 = vstv %s2798
    %v2800 = vmul.f32 %v2799, %v1446
    %v2801 = vmul.f32 %v2799, %v1447
    %v2804 = vrot.slane %v2800, 6
    %v2805 = vrot.slane %v2801, 6
    %v2808 = vadd.f32 %v2796, %v2804
    %v2809 = vadd.f32 %v2797, %v2805
    %s2810 = sld [smem:[#allocation10 + $0x77]]
    %v2811 = vstv %s2810
    %v2812 = vmul.f32 %v2811, %v1446
    %v2813 = vmul.f32 %v2811, %v1447
    %v2816 = vrot.slane %v2812, 7
    %v2817 = vrot.slane %v2813, 7
    %v2820 = vadd.f32 %v2808, %v2816
    %v2821 = vadd.f32 %v2809, %v2817
    %s2822 = sld [smem:[#allocation11 + $0x4]]
    %v2823 = vstv %s2822
    %v2824 = vadd.f32 %v2820, %v2823
    %v2825 = vadd.f32 %v2821, %v2823
    %v2826 = vmax.f32 %v2824, 0.0
    %v2827 = vmax.f32 %v2825, 0.0
    %s2828 = sld [smem:[#allocation10 + $0x78]]
    %v2829 = vstv %s2828
    %v2830 = vmul.f32 %v2829, %v1437
    %v2831 = vmul.f32 %v2829, %v1438
    %v2832 = vadd.f32 %v2830, 0.0
    %v2833 = vadd.f32 %v2831, 0.0
    %s2834 = sld [smem:[#allocation10 + $0x7b]]
    %v2835 = vstv %s2834
    %v2836 = vmul.f32 %v2835, %v1437
    %v2837 = vmul.f32 %v2835, %v1438
    %v2840 = vrot.slane %v2836, 1
    %v2841 = vrot.slane %v2837, 1
    %v2844 = vadd.f32 %v2832, %v2840
    %v2845 = vadd.f32 %v2833, %v2841
    %s2846 = sld [smem:[#allocation10 + $0x7e]]
    %v2847 = vstv %s2846
    %v2848 = vmul.f32 %v2847, %v1437
    %v2849 = vmul.f32 %v2847, %v1438
    %v2852 = vrot.slane %v2848, 2
    %v2853 = vrot.slane %v2849, 2
    %v2856 = vadd.f32 %v2844, %v2852
    %v2857 = vadd.f32 %v2845, %v2853
    %s2858 = sld [smem:[#allocation10 + $0x81]]
    %v2859 = vstv %s2858
    %v2860 = vmul.f32 %v2859, %v1437
    %v2861 = vmul.f32 %v2859, %v1438
    %v2864 = vrot.slane %v2860, 3
    %v2865 = vrot.slane %v2861, 3
    %v2868 = vadd.f32 %v2856, %v2864
    %v2869 = vadd.f32 %v2857, %v2865
    %s2870 = sld [smem:[#allocation10 + $0x84]]
    %v2871 = vstv %s2870
    %v2872 = vmul.f32 %v2871, %v1437
    %v2873 = vmul.f32 %v2871, %v1438
    %v2876 = vrot.slane %v2872, 4
    %v2877 = vrot.slane %v2873, 4
    %v2880 = vadd.f32 %v2868, %v2876
    %v2881 = vadd.f32 %v2869, %v2877
    %s2882 = sld [smem:[#allocation10 + $0x87]]
    %v2883 = vstv %s2882
    %v2884 = vmul.f32 %v2883, %v1437
    %v2885 = vmul.f32 %v2883, %v1438
    %v2888 = vrot.slane %v2884, 5
    %v2889 = vrot.slane %v2885, 5
    %v2892 = vadd.f32 %v2880, %v2888
    %v2893 = vadd.f32 %v2881, %v2889
    %s2894 = sld [smem:[#allocation10 + $0x8a]]
    %v2895 = vstv %s2894
    %v2896 = vmul.f32 %v2895, %v1437
    %v2897 = vmul.f32 %v2895, %v1438
    %v2900 = vrot.slane %v2896, 6
    %v2901 = vrot.slane %v2897, 6
    %v2904 = vadd.f32 %v2892, %v2900
    %v2905 = vadd.f32 %v2893, %v2901
    %s2906 = sld [smem:[#allocation10 + $0x8d]]
    %v2907 = vstv %s2906
    %v2908 = vmul.f32 %v2907, %v1437
    %v2909 = vmul.f32 %v2907, %v1438
    %v2912 = vrot.slane %v2908, 7
    %v2913 = vrot.slane %v2909, 7
    %v2916 = vadd.f32 %v2904, %v2912
    %v2917 = vadd.f32 %v2905, %v2913
    %s2918 = sld [smem:[#allocation10 + $0x79]]
    %v2919 = vstv %s2918
    %v2920 = vmul.f32 %v2919, %v1426
    %v2921 = vmul.f32 %v2919, %v1427
    %v2922 = vadd.f32 %v2916, %v2920
    %v2923 = vadd.f32 %v2917, %v2921
    %s2924 = sld [smem:[#allocation10 + $0x7c]]
    %v2925 = vstv %s2924
    %v2926 = vmul.f32 %v2925, %v1426
    %v2927 = vmul.f32 %v2925, %v1427
    %v2930 = vrot.slane %v2926, 1
    %v2931 = vrot.slane %v2927, 1
    %v2934 = vadd.f32 %v2922, %v2930
    %v2935 = vadd.f32 %v2923, %v2931
    %s2936 = sld [smem:[#allocation10 + $0x7f]]
    %v2937 = vstv %s2936
    %v2938 = vmul.f32 %v2937, %v1426
    %v2939 = vmul.f32 %v2937, %v1427
    %v2942 = vrot.slane %v2938, 2
    %v2943 = vrot.slane %v2939, 2
    %v2946 = vadd.f32 %v2934, %v2942
    %v2947 = vadd.f32 %v2935, %v2943
    %s2948 = sld [smem:[#allocation10 + $0x82]]
    %v2949 = vstv %s2948
    %v2950 = vmul.f32 %v2949, %v1426
    %v2951 = vmul.f32 %v2949, %v1427
    %v2954 = vrot.slane %v2950, 3
    %v2955 = vrot.slane %v2951, 3
    %v2958 = vadd.f32 %v2946, %v2954
    %v2959 = vadd.f32 %v2947, %v2955
    %s2960 = sld [smem:[#allocation10 + $0x85]]
    %v2961 = vstv %s2960
    %v2962 = vmul.f32 %v2961, %v1426
    %v2963 = vmul.f32 %v2961, %v1427
    %v2966 = vrot.slane %v2962, 4
    %v2967 = vrot.slane %v2963, 4
    %v2970 = vadd.f32 %v2958, %v2966
    %v2971 = vadd.f32 %v2959, %v2967
    %s2972 = sld [smem:[#allocation10 + $0x88]]
    %v2973 = vstv %s2972
    %v2974 = vmul.f32 %v2973, %v1426
    %v2975 = vmul.f32 %v2973, %v1427
    %v2978 = vrot.slane %v2974, 5
    %v2979 = vrot.slane %v2975, 5
    %v2982 = vadd.f32 %v2970, %v2978
    %v2983 = vadd.f32 %v2971, %v2979
    %s2984 = sld [smem:[#allocation10 + $0x8b]]
    %v2985 = vstv %s2984
    %v2986 = vmul.f32 %v2985, %v1426
    %v2987 = vmul.f32 %v2985, %v1427
    %v2990 = vrot.slane %v2986, 6
    %v2991 = vrot.slane %v2987, 6
    %v2994 = vadd.f32 %v2982, %v2990
    %v2995 = vadd.f32 %v2983, %v2991
    %s2996 = sld [smem:[#allocation10 + $0x8e]]
    %v2997 = vstv %s2996
    %v2998 = vmul.f32 %v2997, %v1426
    %v2999 = vmul.f32 %v2997, %v1427
    %v3002 = vrot.slane %v2998, 7
    %v3003 = vrot.slane %v2999, 7
    %v3006 = vadd.f32 %v2994, %v3002
    %v3007 = vadd.f32 %v2995, %v3003
    %s3008 = sld [smem:[#allocation10 + $0x7a]]
    %v3009 = vstv %s3008
    %v3010 = vmul.f32 %v3009, %v1446
    %v3011 = vmul.f32 %v3009, %v1447
    %v3012 = vadd.f32 %v3006, %v3010
    %v3013 = vadd.f32 %v3007, %v3011
    %s3014 = sld [smem:[#allocation10 + $0x7d]]
    %v3015 = vstv %s3014
    %v3016 = vmul.f32 %v3015, %v1446
    %v3017 = vmul.f32 %v3015, %v1447
    %v3020 = vrot.slane %v3016, 1
    %v3021 = vrot.slane %v3017, 1
    %v3024 = vadd.f32 %v3012, %v3020
    %v3025 = vadd.f32 %v3013, %v3021
    %s3026 = sld [smem:[#allocation10 + $0x80]]
    %v3027 = vstv %s3026
    %v3028 = vmul.f32 %v3027, %v1446
    %v3029 = vmul.f32 %v3027, %v1447
    %v3032 = vrot.slane %v3028, 2
    %v3033 = vrot.slane %v3029, 2
    %v3036 = vadd.f32 %v3024, %v3032
    %v3037 = vadd.f32 %v3025, %v3033
    %s3038 = sld [smem:[#allocation10 + $0x83]]
    %v3039 = vstv %s3038
    %v3040 = vmul.f32 %v3039, %v1446
    %v3041 = vmul.f32 %v3039, %v1447
    %v3044 = vrot.slane %v3040, 3
    %v3045 = vrot.slane %v3041, 3
    %v3048 = vadd.f32 %v3036, %v3044
    %v3049 = vadd.f32 %v3037, %v3045
    %s3050 = sld [smem:[#allocation10 + $0x86]]
    %v3051 = vstv %s3050
    %v3052 = vmul.f32 %v3051, %v1446
    %v3053 = vmul.f32 %v3051, %v1447
    %v3056 = vrot.slane %v3052, 4
    %v3057 = vrot.slane %v3053, 4
    %v3060 = vadd.f32 %v3048, %v3056
    %v3061 = vadd.f32 %v3049, %v3057
    %s3062 = sld [smem:[#allocation10 + $0x89]]
    %v3063 = vstv %s3062
    %v3064 = vmul.f32 %v3063, %v1446
    %v3065 = vmul.f32 %v3063, %v1447
    %v3068 = vrot.slane %v3064, 5
    %v3069 = vrot.slane %v3065, 5
    %v3072 = vadd.f32 %v3060, %v3068
    %v3073 = vadd.f32 %v3061, %v3069
    %s3074 = sld [smem:[#allocation10 + $0x8c]]
    %v3075 = vstv %s3074
    %v3076 = vmul.f32 %v3075, %v1446
    %v3077 = vmul.f32 %v3075, %v1447
    %v3080 = vrot.slane %v3076, 6
    %v3081 = vrot.slane %v3077, 6
    %v3084 = vadd.f32 %v3072, %v3080
    %v3085 = vadd.f32 %v3073, %v3081
    %s3086 = sld [smem:[#allocation10 + $0x8f]]
    %v3087 = vstv %s3086
    %v3088 = vmul.f32 %v3087, %v1446
    %v3089 = vmul.f32 %v3087, %v1447
    %v3092 = vrot.slane %v3088, 7
    %v3093 = vrot.slane %v3089, 7
    %v3096 = vadd.f32 %v3084, %v3092
    %v3097 = vadd.f32 %v3085, %v3093
    %s3098 = sld [smem:[#allocation11 + $0x5]]
    %v3099 = vstv %s3098
    %v3100 = vadd.f32 %v3096, %v3099
    %v3101 = vadd.f32 %v3097, %v3099
    %v3102 = vmax.f32 %v3100, 0.0
    %v3103 = vmax.f32 %v3101, 0.0
    %s3104 = sld [smem:[#allocation10 + $0x90]]
    %v3105 = vstv %s3104
    %v3106 = vmul.f32 %v3105, %v1437
    %v3107 = vmul.f32 %v3105, %v1438
    %v3108 = vadd.f32 %v3106, 0.0
    %v3109 = vadd.f32 %v3107, 0.0
    %s3110 = sld [smem:[#allocation10 + $0x93]]
    %v3111 = vstv %s3110
    %v3112 = vmul.f32 %v3111, %v1437
    %v3113 = vmul.f32 %v3111, %v1438
    %v3116 = vrot.slane %v3112, 1
    %v3117 = vrot.slane %v3113, 1
    %v3120 = vadd.f32 %v3108, %v3116
    %v3121 = vadd.f32 %v3109, %v3117
    %s3122 = sld [smem:[#allocation10 + $0x96]]
    %v3123 = vstv %s3122
    %v3124 = vmul.f32 %v3123, %v1437
    %v3125 = vmul.f32 %v3123, %v1438
    %v3128 = vrot.slane %v3124, 2
    %v3129 = vrot.slane %v3125, 2
    %v3132 = vadd.f32 %v3120, %v3128
    %v3133 = vadd.f32 %v3121, %v3129
    %s3134 = sld [smem:[#allocation10 + $0x99]]
    %v3135 = vstv %s3134
    %v3136 = vmul.f32 %v3135, %v1437
    %v3137 = vmul.f32 %v3135, %v1438
    %v3140 = vrot.slane %v3136, 3
    %v3141 = vrot.slane %v3137, 3
    %v3144 = vadd.f32 %v3132, %v3140
    %v3145 = vadd.f32 %v3133, %v3141
    %s3146 = sld [smem:[#allocation10 + $0x9c]]
    %v3147 = vstv %s3146
    %v3148 = vmul.f32 %v3147, %v1437
    %v3149 = vmul.f32 %v3147, %v1438
    %v3152 = vrot.slane %v3148, 4
    %v3153 = vrot.slane %v3149, 4
    %v3156 = vadd.f32 %v3144, %v3152
    %v3157 = vadd.f32 %v3145, %v3153
    %s3158 = sld [smem:[#allocation10 + $0x9f]]
    %v3159 = vstv %s3158
    %v3160 = vmul.f32 %v3159, %v1437
    %v3161 = vmul.f32 %v3159, %v1438
    %v3164 = vrot.slane %v3160, 5
    %v3165 = vrot.slane %v3161, 5
    %v3168 = vadd.f32 %v3156, %v3164
    %v3169 = vadd.f32 %v3157, %v3165
    %s3170 = sld [smem:[#allocation10 + $0xa2]]
    %v3171 = vstv %s3170
    %v3172 = vmul.f32 %v3171, %v1437
    %v3173 = vmul.f32 %v3171, %v1438
    %v3176 = vrot.slane %v3172, 6
    %v3177 = vrot.slane %v3173, 6
    %v3180 = vadd.f32 %v3168, %v3176
    %v3181 = vadd.f32 %v3169, %v3177
    %s3182 = sld [smem:[#allocation10 + $0xa5]]
    %v3183 = vstv %s3182
    %v3184 = vmul.f32 %v3183, %v1437
    %v3185 = vmul.f32 %v3183, %v1438
    %v3188 = vrot.slane %v3184, 7
    %v3189 = vrot.slane %v3185, 7
    %v3192 = vadd.f32 %v3180, %v3188
    %v3193 = vadd.f32 %v3181, %v3189
    %s3194 = sld [smem:[#allocation10 + $0x91]]
    %v3195 = vstv %s3194
    %v3196 = vmul.f32 %v3195, %v1426
    %v3197 = vmul.f32 %v3195, %v1427
    %v3198 = vadd.f32 %v3192, %v3196
    %v3199 = vadd.f32 %v3193, %v3197
    %s3200 = sld [smem:[#allocation10 + $0x94]]
    %v3201 = vstv %s3200
    %v3202 = vmul.f32 %v3201, %v1426
    %v3203 = vmul.f32 %v3201, %v1427
    %v3206 = vrot.slane %v3202, 1
    %v3207 = vrot.slane %v3203, 1
    %v3210 = vadd.f32 %v3198, %v3206
    %v3211 = vadd.f32 %v3199, %v3207
    %s3212 = sld [smem:[#allocation10 + $0x97]]
    %v3213 = vstv %s3212
    %v3214 = vmul.f32 %v3213, %v1426
    %v3215 = vmul.f32 %v3213, %v1427
    %v3218 = vrot.slane %v3214, 2
    %v3219 = vrot.slane %v3215, 2
    %v3222 = vadd.f32 %v3210, %v3218
    %v3223 = vadd.f32 %v3211, %v3219
    %s3224 = sld [smem:[#allocation10 + $0x9a]]
    %v3225 = vstv %s3224
    %v3226 = vmul.f32 %v3225, %v1426
    %v3227 = vmul.f32 %v3225, %v1427
    %v3230 = vrot.slane %v3226, 3
    %v3231 = vrot.slane %v3227, 3
    %v3234 = vadd.f32 %v3222, %v3230
    %v3235 = vadd.f32 %v3223, %v3231
    %s3236 = sld [smem:[#allocation10 + $0x9d]]
    %v3237 = vstv %s3236
    %v3238 = vmul.f32 %v3237, %v1426
    %v3239 = vmul.f32 %v3237, %v1427
    %v3242 = vrot.slane %v3238, 4
    %v3243 = vrot.slane %v3239, 4
    %v3246 = vadd.f32 %v3234, %v3242
    %v3247 = vadd.f32 %v3235, %v3243
    %s3248 = sld [smem:[#allocation10 + $0xa0]]
    %v3249 = vstv %s3248
    %v3250 = vmul.f32 %v3249, %v1426
    %v3251 = vmul.f32 %v3249, %v1427
    %v3254 = vrot.slane %v3250, 5
    %v3255 = vrot.slane %v3251, 5
    %v3258 = vadd.f32 %v3246, %v3254
    %v3259 = vadd.f32 %v3247, %v3255
    %s3260 = sld [smem:[#allocation10 + $0xa3]]
    %v3261 = vstv %s3260
    %v3262 = vmul.f32 %v3261, %v1426
    %v3263 = vmul.f32 %v3261, %v1427
    %v3266 = vrot.slane %v3262, 6
    %v3267 = vrot.slane %v3263, 6
    %v3270 = vadd.f32 %v3258, %v3266
    %v3271 = vadd.f32 %v3259, %v3267
    %s3272 = sld [smem:[#allocation10 + $0xa6]]
    %v3273 = vstv %s3272
    %v3274 = vmul.f32 %v3273, %v1426
    %v3275 = vmul.f32 %v3273, %v1427
    %v3278 = vrot.slane %v3274, 7
    %v3279 = vrot.slane %v3275, 7
    %v3282 = vadd.f32 %v3270, %v3278
    %v3283 = vadd.f32 %v3271, %v3279
    %s3284 = sld [smem:[#allocation10 + $0x92]]
    %v3285 = vstv %s3284
    %v3286 = vmul.f32 %v3285, %v1446
    %v3287 = vmul.f32 %v3285, %v1447
    %v3288 = vadd.f32 %v3282, %v3286
    %v3289 = vadd.f32 %v3283, %v3287
    %s3290 = sld [smem:[#allocation10 + $0x95]]
    %v3291 = vstv %s3290
    %v3292 = vmul.f32 %v3291, %v1446
    %v3293 = vmul.f32 %v3291, %v1447
    %v3296 = vrot.slane %v3292, 1
    %v3297 = vrot.slane %v3293, 1
    %v3300 = vadd.f32 %v3288, %v3296
    %v3301 = vadd.f32 %v3289, %v3297
    %s3302 = sld [smem:[#allocation10 + $0x98]]
    %v3303 = vstv %s3302
    %v3304 = vmul.f32 %v3303, %v1446
    %v3305 = vmul.f32 %v3303, %v1447
    %v3308 = vrot.slane %v3304, 2
    %v3309 = vrot.slane %v3305, 2
    %v3312 = vadd.f32 %v3300, %v3308
    %v3313 = vadd.f32 %v3301, %v3309
    %s3314 = sld [smem:[#allocation10 + $0x9b]]
    %v3315 = vstv %s3314
    %v3316 = vmul.f32 %v3315, %v1446
    %v3317 = vmul.f32 %v3315, %v1447
    %v3320 = vrot.slane %v3316, 3
    %v3321 = vrot.slane %v3317, 3
    %v3324 = vadd.f32 %v3312, %v3320
    %v3325 = vadd.f32 %v3313, %v3321
    %s3326 = sld [smem:[#allocation10 + $0x9e]]
    %v3327 = vstv %s3326
    %v3328 = vmul.f32 %v3327, %v1446
    %v3329 = vmul.f32 %v3327, %v1447
    %v3332 = vrot.slane %v3328, 4
    %v3333 = vrot.slane %v3329, 4
    %v3336 = vadd.f32 %v3324, %v3332
    %v3337 = vadd.f32 %v3325, %v3333
    %s3338 = sld [smem:[#allocation10 + $0xa1]]
    %v3339 = vstv %s3338
    %v3340 = vmul.f32 %v3339, %v1446
    %v3341 = vmul.f32 %v3339, %v1447
    %v3344 = vrot.slane %v3340, 5
    %v3345 = vrot.slane %v3341, 5
    %v3348 = vadd.f32 %v3336, %v3344
    %v3349 = vadd.f32 %v3337, %v3345
    %s3350 = sld [smem:[#allocation10 + $0xa4]]
    %v3351 = vstv %s3350
    %v3352 = vmul.f32 %v3351, %v1446
    %v3353 = vmul.f32 %v3351, %v1447
    %v3356 = vrot.slane %v3352, 6
    %v3357 = vrot.slane %v3353, 6
    %v3360 = vadd.f32 %v3348, %v3356
    %v3361 = vadd.f32 %v3349, %v3357
    %s3362 = sld [smem:[#allocation10 + $0xa7]]
    %v3363 = vstv %s3362
    %v3364 = vmul.f32 %v3363, %v1446
    %v3365 = vmul.f32 %v3363, %v1447
    %v3368 = vrot.slane %v3364, 7
    %v3369 = vrot.slane %v3365, 7
    %v3372 = vadd.f32 %v3360, %v3368
    %v3373 = vadd.f32 %v3361, %v3369
    %s3374 = sld [smem:[#allocation11 + $0x6]]
    %v3375 = vstv %s3374
    %v3376 = vadd.f32 %v3372, %v3375
    %v3377 = vadd.f32 %v3373, %v3375
    %v3378 = vmax.f32 %v3376, 0.0
    %v3379 = vmax.f32 %v3377, 0.0
    %s3380 = sld [smem:[#allocation10 + $0xa8]]
    %v3381 = vstv %s3380
    %v3382 = vmul.f32 %v3381, %v1437
    %v3383 = vmul.f32 %v3381, %v1438
    %v3384 = vadd.f32 %v3382, 0.0
    %v3385 = vadd.f32 %v3383, 0.0
    %s3386 = sld [smem:[#allocation10 + $0xab]]
    %v3387 = vstv %s3386
    %v3388 = vmul.f32 %v3387, %v1437
    %v3389 = vmul.f32 %v3387, %v1438
    %v3392 = vrot.slane %v3388, 1
    %v3393 = vrot.slane %v3389, 1
    %v3396 = vadd.f32 %v3384, %v3392
    %v3397 = vadd.f32 %v3385, %v3393
    %s3398 = sld [smem:[#allocation10 + $0xae]]
    %v3399 = vstv %s3398
    %v3400 = vmul.f32 %v3399, %v1437
    %v3401 = vmul.f32 %v3399, %v1438
    %v3404 = vrot.slane %v3400, 2
    %v3405 = vrot.slane %v3401, 2
    %v3408 = vadd.f32 %v3396, %v3404
    %v3409 = vadd.f32 %v3397, %v3405
    %s3410 = sld [smem:[#allocation10 + $0xb1]]
    %v3411 = vstv %s3410
    %v3412 = vmul.f32 %v3411, %v1437
    %v3413 = vmul.f32 %v3411, %v1438
    %v3416 = vrot.slane %v3412, 3
    %v3417 = vrot.slane %v3413, 3
    %v3420 = vadd.f32 %v3408, %v3416
    %v3421 = vadd.f32 %v3409, %v3417
    %s3422 = sld [smem:[#allocation10 + $0xb4]]
    %v3423 = vstv %s3422
    %v3424 = vmul.f32 %v3423, %v1437
    %v3425 = vmul.f32 %v3423, %v1438
    %v3428 = vrot.slane %v3424, 4
    %v3429 = vrot.slane %v3425, 4
    %v3432 = vadd.f32 %v3420, %v3428
    %v3433 = vadd.f32 %v3421, %v3429
    %s3434 = sld [smem:[#allocation10 + $0xb7]]
    %v3435 = vstv %s3434
    %v3436 = vmul.f32 %v3435, %v1437
    %v3437 = vmul.f32 %v3435, %v1438
    %v3440 = vrot.slane %v3436, 5
    %v3441 = vrot.slane %v3437, 5
    %v3444 = vadd.f32 %v3432, %v3440
    %v3445 = vadd.f32 %v3433, %v3441
    %s3446 = sld [smem:[#allocation10 + $0xba]]
    %v3447 = vstv %s3446
    %v3448 = vmul.f32 %v3447, %v1437
    %v3449 = vmul.f32 %v3447, %v1438
    %v3452 = vrot.slane %v3448, 6
    %v3453 = vrot.slane %v3449, 6
    %v3456 = vadd.f32 %v3444, %v3452
    %v3457 = vadd.f32 %v3445, %v3453
    %s3458 = sld [smem:[#allocation10 + $0xbd]]
    %v3459 = vstv %s3458
    %v3460 = vmul.f32 %v3459, %v1437
    %v3461 = vmul.f32 %v3459, %v1438
    %v3464 = vrot.slane %v3460, 7
    %v3465 = vrot.slane %v3461, 7
    %v3468 = vadd.f32 %v3456, %v3464
    %v3469 = vadd.f32 %v3457, %v3465
    %s3470 = sld [smem:[#allocation10 + $0xa9]]
    %v3471 = vstv %s3470
    %v3472 = vmul.f32 %v3471, %v1426
    %v3473 = vmul.f32 %v3471, %v1427
    %v3474 = vadd.f32 %v3468, %v3472
    %v3475 = vadd.f32 %v3469, %v3473
    %s3476 = sld [smem:[#allocation10 + $0xac]]
    %v3477 = vstv %s3476
    %v3478 = vmul.f32 %v3477, %v1426
    %v3479 = vmul.f32 %v3477, %v1427
    %v3482 = vrot.slane %v3478, 1
    %v3483 = vrot.slane %v3479, 1
    %v3486 = vadd.f32 %v3474, %v3482
    %v3487 = vadd.f32 %v3475, %v3483
    %s3488 = sld [smem:[#allocation10 + $0xaf]]
    %v3489 = vstv %s3488
    %v3490 = vmul.f32 %v3489, %v1426
    %v3491 = vmul.f32 %v3489, %v1427
    %v3494 = vrot.slane %v3490, 2
    %v3495 = vrot.slane %v3491, 2
    %v3498 = vadd.f32 %v3486, %v3494
    %v3499 = vadd.f32 %v3487, %v3495
    %s3500 = sld [smem:[#allocation10 + $0xb2]]
    %v3501 = vstv %s3500
    %v3502 = vmul.f32 %v3501, %v1426
    %v3503 = vmul.f32 %v3501, %v1427
    %v3506 = vrot.slane %v3502, 3
    %v3507 = vrot.slane %v3503, 3
    %v3510 = vadd.f32 %v3498, %v3506
    %v3511 = vadd.f32 %v3499, %v3507
    %s3512 = sld [smem:[#allocation10 + $0xb5]]
    %v3513 = vstv %s3512
    %v3514 = vmul.f32 %v3513, %v1426
    %v3515 = vmul.f32 %v3513, %v1427
    %v3518 = vrot.slane %v3514, 4
    %v3519 = vrot.slane %v3515, 4
    %v3522 = vadd.f32 %v3510, %v3518
    %v3523 = vadd.f32 %v3511, %v3519
    %s3524 = sld [smem:[#allocation10 + $0xb8]]
    %v3525 = vstv %s3524
    %v3526 = vmul.f32 %v3525, %v1426
    %v3527 = vmul.f32 %v3525, %v1427
    %v3530 = vrot.slane %v3526, 5
    %v3531 = vrot.slane %v3527, 5
    %v3534 = vadd.f32 %v3522, %v3530
    %v3535 = vadd.f32 %v3523, %v3531
    %s3536 = sld [smem:[#allocation10 + $0xbb]]
    %v3537 = vstv %s3536
    %v3538 = vmul.f32 %v3537, %v1426
    %v3539 = vmul.f32 %v3537, %v1427
    %v3542 = vrot.slane %v3538, 6
    %v3543 = vrot.slane %v3539, 6
    %v3546 = vadd.f32 %v3534, %v3542
    %v3547 = vadd.f32 %v3535, %v3543
    %s3548 = sld [smem:[#allocation10 + $0xbe]]
    %v3549 = vstv %s3548
    %v3550 = vmul.f32 %v3549, %v1426
    %v3551 = vmul.f32 %v3549, %v1427
    %v3554 = vrot.slane %v3550, 7
    %v3555 = vrot.slane %v3551, 7
    %v3558 = vadd.f32 %v3546, %v3554
    %v3559 = vadd.f32 %v3547, %v3555
    %s3560 = sld [smem:[#allocation10 + $0xaa]]
    %v3561 = vstv %s3560
    %v3562 = vmul.f32 %v3561, %v1446
    %v3563 = vmul.f32 %v3561, %v1447
    %v3564 = vadd.f32 %v3558, %v3562
    %v3565 = vadd.f32 %v3559, %v3563
    %s3566 = sld [smem:[#allocation10 + $0xad]]
    %v3567 = vstv %s3566
    %v3568 = vmul.f32 %v3567, %v1446
    %v3569 = vmul.f32 %v3567, %v1447
    %v3572 = vrot.slane %v3568, 1
    %v3573 = vrot.slane %v3569, 1
    %v3576 = vadd.f32 %v3564, %v3572
    %v3577 = vadd.f32 %v3565, %v3573
    %s3578 = sld [smem:[#allocation10 + $0xb0]]
    %v3579 = vstv %s3578
    %v3580 = vmul.f32 %v3579, %v1446
    %v3581 = vmul.f32 %v3579, %v1447
    %v3584 = vrot.slane %v3580, 2
    %v3585 = vrot.slane %v3581, 2
    %v3588 = vadd.f32 %v3576, %v3584
    %v3589 = vadd.f32 %v3577, %v3585
    %s3590 = sld [smem:[#allocation10 + $0xb3]]
    %v3591 = vstv %s3590
    %v3592 = vmul.f32 %v3591, %v1446
    %v3593 = vmul.f32 %v3591, %v1447
    %v3596 = vrot.slane %v3592, 3
    %v3597 = vrot.slane %v3593, 3
    %v3600 = vadd.f32 %v3588, %v3596
    %v3601 = vadd.f32 %v3589, %v3597
    %s3602 = sld [smem:[#allocation10 + $0xb6]]
    %v3603 = vstv %s3602
    %v3604 = vmul.f32 %v3603, %v1446
    %v3605 = vmul.f32 %v3603, %v1447
    %v3608 = vrot.slane %v3604, 4
    %v3609 = vrot.slane %v3605, 4
    %v3612 = vadd.f32 %v3600, %v3608
    %v3613 = vadd.f32 %v3601, %v3609
    %s3614 = sld [smem:[#allocation10 + $0xb9]]
    %v3615 = vstv %s3614
    %v3616 = vmul.f32 %v3615, %v1446
    %v3617 = vmul.f32 %v3615, %v1447
    %v3620 = vrot.slane %v3616, 5
    %v3621 = vrot.slane %v3617, 5
    %v3624 = vadd.f32 %v3612, %v3620
    %v3625 = vadd.f32 %v3613, %v3621
    %s3626 = sld [smem:[#allocation10 + $0xbc]]
    %v3627 = vstv %s3626
    %v3628 = vmul.f32 %v3627, %v1446
    %v3629 = vmul.f32 %v3627, %v1447
    %v3632 = vrot.slane %v3628, 6
    %v3633 = vrot.slane %v3629, 6
    %v3636 = vadd.f32 %v3624, %v3632
    %v3637 = vadd.f32 %v3625, %v3633
    %s3638 = sld [smem:[#allocation10 + $0xbf]]
    %v3639 = vstv %s3638
    %v3640 = vmul.f32 %v3639, %v1446
    %v3641 = vmul.f32 %v3639, %v1447
    %v3644 = vrot.slane %v3640, 7
    %v3645 = vrot.slane %v3641, 7
    %v3648 = vadd.f32 %v3636, %v3644
    %v3649 = vadd.f32 %v3637, %v3645
    %s3650 = sld [smem:[#allocation11 + $0x7]]
    %v3651 = vstv %s3650
    %v3652 = vadd.f32 %v3648, %v3651
    %v3653 = vadd.f32 %v3649, %v3651
    %v3654 = vmax.f32 %v3652, 0.0
    %v3655 = vmax.f32 %v3653, 0.0
    %v3658 = vrot.slane %v1998, 7
    %v3659 = vrot.slane %v1999, 7
    %v3664 = vrot.slane %v2274, 6
    %v3665 = vrot.slane %v2275, 6
    %v3670 = vrot.slane %v2550, 5
    %v3671 = vrot.slane %v2551, 5
    %v3676 = vrot.slane %v2826, 4
    %v3677 = vrot.slane %v2827, 4
    %v3682 = vrot.slane %v3102, 3
    %v3683 = vrot.slane %v3103, 3
    %v3688 = vrot.slane %v3378, 2
    %v3689 = vrot.slane %v3379, 2
    %v3694 = vrot.slane %v3654, 1
    %v3695 = vrot.slane %v3655, 1
    %v3698 = vsel %vm1407, %v1722, %v3658
    %v3699 = vsel %vm1407, %v1723, %v3659
    %v3700 = vsel %vm1410, %v3698, %v3664
    %v3701 = vsel %vm1410, %v3699, %v3665
    %v3702 = vsel %vm1413, %v3700, %v3670
    %v3703 = vsel %vm1413, %v3701, %v3671
    %v3704 = vsel %vm1416, %v3702, %v3676
    %v3705 = vsel %vm1416, %v3703, %v3677
    %v3706 = vsel %vm1419, %v3704, %v3682
    %v3707 = vsel %vm1419, %v3705, %v3683
    %v3708 = vsel %vm1422, %v3706, %v3688
    %v3709 = vsel %vm1422, %v3707, %v3689
    %v3710 = vsel %vm1425, %v3708, %v3694
    %v3711 = vsel %vm1425, %v3709, %v3695
    %vm3712 = vcmask 64512
    %3713 = vst.msk [vmem:[#allocation13] sm:$0xff] %vm3712, %v3710
    %3714 = vst.msk [vmem:[#allocation13 + $0x8] sm:$0xff] %vm3712, %v3711
    // Predicated region
    $region42: #{tpu_custom_call.1} parent=1 // pred_check
      _
    $region43: #{tpu_custom_call.1} parent=1 // pred_check_branch
      %3716 = sbr.rel (0) target = $region45
    $region44: #{tpu_custom_call.1} parent=1 // pred_region
      %3718 = vsyncadd [#allocation4], 0
      %s3719 = sshll.u32 [#allocation13], 4
      %s3720 = int_to_ptr.vmem [resolvable:$true] %s3719
      %s3721 = sshll.u32 %s5, 4
      %s3722 = int_to_ptr.hbm [resolvable:$true] %s3721
      %3727 = dma.vmem_to_hbm [thread:$0]  %s3720, 256, %s3722, [#allocation4], 128, 128, 8
    $region45: #{tpu_custom_call.1} parent=1 // pred_fallthru
      _
    // Predicated region
    $region46: #{tpu_custom_call.1} parent=1 // pred_check
      _
    $region47: #{tpu_custom_call.1} parent=1 // pred_check_branch
      %3729 = sbr.rel (0) target = $region49
    $region48: #{tpu_custom_call.1} parent=1 // pred_region
      %3731 = dma.done [#allocation4], 256
    $region49: #{tpu_custom_call.1} parent=1 // pred_fallthru
      _
    %3732 = vsyncpa [#allocation3], 1
    %3733 = vsyncpa [#allocation4], 1
    %3734 = vsyncpa [#allocation5], 1
    %3735 = vsyncpa [#allocation9], 1
    %3736 = vsyncpa [#allocation6], 1
    %3737 = vsyncpa [#allocation12], 1

</llo_original>
